<compile_context>
chip_gen: v6e
topology: v6e:2x2x1
jax: 0.10.0
libtpu: 0.0.40
codegen_flags: <defaults>
</compile_context>

<pallas_src>
import jax
import jax.numpy as jnp
import numpy as np
from jax.experimental import pallas as pl
from jax.experimental.pallas import tpu as pltpu

FEATURE_DIM = 64           # feature_dim
NUM_CLASSES = 5            # num_classes
N_CLUSTERS = 5             # n_clusters_per_class
HIDDEN = FEATURE_DIM // 2  # 32
BLOCK_M = 128              # queries per grid step (one full lane tile)
M_QUERIES = 512            # queries per call (4 parallel grid steps)

# Packed weight-slab row offsets (all multiples of 8 -> free in-kernel slices).
_R_W1Q = 0                        # rows   0- 63: W1 query half  (torch [out, in])
_R_W1PT = FEATURE_DIM             # rows  64-127: W1 proto half  ([in, out])
_R_W2 = 2 * FEATURE_DIM           # rows 128-159: W2             (torch [out, in])
_R_B1 = 2 * FEATURE_DIM + HIDDEN  # row  160    : b1 as a [1, D] row
_R_COL = _R_B1 + 8                # rows 168-199: lane0 = b2, lane1 = w3 (columns)
_R_TOT = _R_COL + HIDDEN          # 200 rows total


def _proto_classifier_kernel(qT_ref, p_ref, w_ref, out_ref):
    # qT_ref : [D, Mb]    query block (features on sublanes, queries on lanes)
    # p_ref  : [C*K, D]   prototypes        (constant block -> DMA'd once)
    # w_ref  : [200, D]   packed parameters (constant block -> DMA'd once)
    # out_ref: [C, Mb]    -distances, lane-dense; wrapper transposes to [M, C]
    f32 = jnp.float32
    D = qT_ref.shape[0]
    C, K, H = NUM_CLASSES, N_CLUSTERS, HIDDEN

    qT = qT_ref[...]                                   # [D, Mb]
    p_flat = p_ref[...]                                # [C*K, D]

    w1q = w_ref[_R_W1Q:_R_W1Q + D, :]                  # [D, D]
    w1pT = w_ref[_R_W1PT:_R_W1PT + D, :]               # [D, D]
    w2 = w_ref[_R_W2:_R_W2 + H, :]                     # [H, D]
    b1 = w_ref[_R_B1:_R_B1 + 1, :]                     # [1, D]
    colblk = w_ref[_R_COL:_R_COL + H, :]               # [H, D]
    b2col = colblk[:, 0:1]                             # [H, 1]
    w3col = colblk[:, 1:2]                             # [H, 1]

    # Layer 1, factored over the concat: query half once per block, proto half
    # once over all C*K prototypes.  (b3 of the score head is omitted: adding a
    # constant to every attention score is a softmax no-op.)
    qhT = jnp.dot(w1q, qT, preferred_element_type=f32)             # [D, Mb]
    ph = jnp.dot(p_flat, w1pT, preferred_element_type=f32) + b1    # [C*K, D]
    phT = ph.T                                                     # [D, C*K] per-(c,k) columns
    pT = p_flat.T                                                  # [D, C*K] for the combine

    out_rows = []
    for c in range(C):                       # unrolled: 5 classes
        s_rows = []
        for k in range(K):                   # unrolled: 5 clusters per class
            ck = c * K + k
            h1 = jnp.maximum(qhT + phT[:, ck:ck + 1], 0.0)                   # [D, Mb]
            h2 = jnp.maximum(
                jnp.dot(w2, h1, preferred_element_type=f32) + b2col, 0.0)    # [H, Mb]
            # Linear(H -> 1) as a VPU weighted sublane-reduce (no N=1 matmul).
            s_rows.append(jnp.sum(h2 * w3col, axis=0, keepdims=True))        # [1, Mb]
        s = jnp.concatenate(s_rows, axis=0)                                  # [K, Mb] lane-dense
        # Exact softmax over the K cluster prototypes.
        s = s - jnp.max(s, axis=0, keepdims=True)
        e = jnp.exp(s)
        attn = e / jnp.sum(e, axis=0, keepdims=True)                         # [K, Mb]
        # Attention-weighted prototype for every query in the block (MXU).
        wp = jnp.dot(pT[:, c * K:(c + 1) * K], attn,
                     preferred_element_type=f32)                             # [D, Mb]
        diff = qT - wp
        dist = jnp.sqrt(jnp.sum(diff * diff, axis=0, keepdims=True))         # [1, Mb]
        out_rows.append(-dist)
    out_ref[...] = jnp.concatenate(out_rows, axis=0)                         # [C, Mb]


def prototypical_classifier_forward(query_features, prototypes, params, *,
                                    block_m=BLOCK_M):
    """forward() with precomputed prototypes (class_prototypes_dict path).

    query_features: [M, D] f32, prototypes: [C, K, D] f32,
    params = (w1 [D, 2D], b1 [D], w2 [H, D], b2 [H], w3 [1, H], b3 [1])
    (torch nn.Linear convention: weight is [out, in]).  Returns logits [M, C].
    """
    w1, b1, w2, b2, w3, b3 = params
    del b3  # softmax-invariant constant shift of the attention scores
    D, H = FEATURE_DIM, HIDDEN
    C, K, _ = prototypes.shape

    # --- pack all parameters into ONE [200, 64] f32 slab (1 prologue DMA) ---
    w1 = w1.astype(jnp.float32)
    b1blk = jnp.zeros((8, D), jnp.float32).at[0, :].set(b1.astype(jnp.float32))
    colblk = (jnp.zeros((H, D), jnp.float32)
              .at[:, 0].set(b2.astype(jnp.float32))
              .at[:, 1].set(w3.reshape(H).astype(jnp.float32)))
    slab = jnp.concatenate(
        [w1[:, :D],                   # rows   0- 63: W1 query half  [out, in]
         w1[:, D:].T,                 # rows  64-127: W1 proto half  [in, out]
         w2.astype(jnp.float32),      # rows 128-159: W2             [out, in]
         b1blk,                       # row  160    : b1 row
         colblk],                     # rows 168-199: b2 / w3 columns
        axis=0)                                                   # [200, 64]

    q = query_features.astype(jnp.float32)
    M = q.shape[0]
    m_pad = ((M + block_m - 1) // block_m) * block_m
    if m_pad != M:                    # pad so every block is a full 128-lane tile
        q = jnp.concatenate([q, jnp.zeros((m_pad - M, D), jnp.float32)], axis=0)
    qT = q.T                                                      # [D, m_pad]
    p_flat = prototypes.reshape(C * K, D).astype(jnp.float32)

    neg_dist = pl.pallas_call(
        _proto_classifier_kernel,
        out_shape=jax.ShapeDtypeStruct((C, m_pad), jnp.float32),
        grid_spec=pltpu.PrefetchScalarGridSpec(
            num_scalar_prefetch=0,
            grid=(m_pad // block_m,),
            in_specs=[
                pl.BlockSpec((D, block_m), lambda i: (0, i)),     # query block
                pl.BlockSpec((C * K, D), lambda i: (0, 0)),       # prototypes (resident)
                pl.BlockSpec((_R_TOT, D), lambda i: (0, 0)),      # weight slab (resident)
            ],
            out_specs=pl.BlockSpec((C, block_m), lambda i: (0, i)),
        ),
        compiler_params=pltpu.CompilerParams(
            dimension_semantics=("parallel",)),   # megacore sharding on v7x
    )(qT, p_flat, slab)
    return neg_dist.T[:M, :]                                      # [M, C]


def _reference_numpy(q, protos, params):
    """Vectorized NumPy transcription of the PyTorch forward for verification."""
    w1, b1, w2, b2, w3, b3 = [np.asarray(p, np.float32) for p in params]
    q = np.asarray(q, np.float32)
    P = np.asarray(protos, np.float32)                            # [C, K, D]
    M, D = q.shape
    C, K, _ = P.shape
    qe = np.broadcast_to(q[:, None, None, :], (M, C, K, D))
    pe = np.broadcast_to(P[None, :, :, :], (M, C, K, D))
    comb = np.concatenate([qe, pe], axis=-1)                      # [M, C, K, 2D]
    h1 = np.maximum(comb @ w1.T + b1, 0.0)
    h2 = np.maximum(h1 @ w2.T + b2, 0.0)
    s = (h2 @ w3.T + b3)[..., 0]                                  # [M, C, K]
    s = s - s.max(-1, keepdims=True)
    a = np.exp(s)
    a = a / a.sum(-1, keepdims=True)
    wp = np.einsum('mck,ckd->mcd', a, P)                          # [M, C, D]
    return -np.linalg.norm(q[:, None, :] - wp, axis=-1)           # [M, C]


if __name__ == "__main__":
    key = jax.random.PRNGKey(0)
    k_q, k_p, k1, k2, k3, k4, k5, k6 = jax.random.split(key, 8)

    D, H = FEATURE_DIM, HIDDEN
    # Deterministic synthetic parameters (torch nn.Linear shapes: weight [out, in]).
    w1 = jax.random.uniform(k1, (D, 2 * D), jnp.float32, -0.1, 0.1)
    b1 = jax.random.uniform(k2, (D,), jnp.float32, -0.1, 0.1)
    w2 = jax.random.uniform(k3, (H, D), jnp.float32, -0.1, 0.1)
    b2 = jax.random.uniform(k4, (H,), jnp.float32, -0.1, 0.1)
    w3 = jax.random.uniform(k5, (1, H), jnp.float32, -0.1, 0.1)
    b3 = jax.random.uniform(k6, (1,), jnp.float32, -0.1, 0.1)
    params = (w1, b1, w2, b2, w3, b3)

    query_features = jax.random.normal(k_q, (M_QUERIES, D), jnp.float32)
    prototypes = jax.random.normal(k_p, (NUM_CLASSES, N_CLUSTERS, D), jnp.float32)

    fwd = jax.jit(prototypical_classifier_forward)
    logits = jax.block_until_ready(fwd(query_features, prototypes, params))

    ref = _reference_numpy(query_features, prototypes, params)
    np.testing.assert_allclose(np.asarray(logits), ref, rtol=1e-3, atol=1e-3)
    print("KERNEL_OK")
</pallas_src>

<mosaic_0001>
module attributes {stable_mosaic.version = 11 : i64} {
  func.func @_proto_classifier_kernel(%arg0: i32, %arg1: memref<64x128xf32, #tpu.memory_space<vmem>>, %arg2: memref<25x64xf32, #tpu.memory_space<vmem>>, %arg3: memref<200x64xf32, #tpu.memory_space<vmem>>, %arg4: memref<5x128xf32, #tpu.memory_space<vmem>>) attributes {dimension_semantics = [#tpu.dimension_semantics<parallel>], iteration_bounds = array<i64: 4>, scalar_prefetch = 0 : i64, scratch_operands = 0 : i64, tpu.core_type = #tpu.core_type<tc>, window_params = [{transform_indices = @transform_0, window_bounds = array<i64: 64, 128>}, {pipeline_mode = #tpu.pipeline_mode<synchronous>, transform_indices = @transform_1, window_bounds = array<i64: 25, 64>}, {pipeline_mode = #tpu.pipeline_mode<synchronous>, transform_indices = @transform_2, window_bounds = array<i64: 200, 64>}, {transform_indices = @transform_3, window_bounds = array<i64: 5, 128>}]} {
    %c0 = arith.constant 0 : index
    %c0_0 = arith.constant 0 : index
    %0 = vector.load %arg1[%c0, %c0_0] : memref<64x128xf32, #tpu.memory_space<vmem>>, vector<64x128xf32>
    %c0_1 = arith.constant 0 : index
    %c0_2 = arith.constant 0 : index
    %1 = vector.load %arg2[%c0_1, %c0_2] : memref<25x64xf32, #tpu.memory_space<vmem>>, vector<25x64xf32>
    %c0_3 = arith.constant 0 : index
    %c0_4 = arith.constant 0 : index
    %2 = vector.load %arg3[%c0_3, %c0_4] : memref<200x64xf32, #tpu.memory_space<vmem>>, vector<64x64xf32>
    %c64 = arith.constant 64 : index
    %c0_5 = arith.constant 0 : index
    %3 = vector.load %arg3[%c64, %c0_5] : memref<200x64xf32, #tpu.memory_space<vmem>>, vector<64x64xf32>
    %c128 = arith.constant 128 : index
    %c0_6 = arith.constant 0 : index
    %4 = vector.load %arg3[%c128, %c0_6] : memref<200x64xf32, #tpu.memory_space<vmem>>, vector<32x64xf32>
    %c160 = arith.constant 160 : index
    %c0_7 = arith.constant 0 : index
    %5 = vector.load %arg3[%c160, %c0_7] : memref<200x64xf32, #tpu.memory_space<vmem>>, vector<1x64xf32>
    %c168 = arith.constant 168 : index
    %c0_8 = arith.constant 0 : index
    %6 = vector.load %arg3[%c168, %c0_8] : memref<200x64xf32, #tpu.memory_space<vmem>>, vector<32x64xf32>
    %7 = vector.extract_strided_slice %6 {offsets = [0, 0], sizes = [32, 1], strides = [1, 1]} : vector<32x64xf32> to vector<32x1xf32>
    %8 = vector.extract_strided_slice %6 {offsets = [0, 1], sizes = [32, 1], strides = [1, 1]} : vector<32x64xf32> to vector<32x1xf32>
    %cst = arith.constant dense<0.000000e+00> : vector<64x128xf32>
    %9 = tpu.matmul %2, %0, %cst {dimension_numbers = #tpu.dot_dimension_numbers<[1], [0], [0], [1], [0, 0, 1, 1], [], []>} : vector<64x64xf32>, vector<64x128xf32>, vector<64x128xf32> -> vector<64x128xf32>
    %cst_9 = arith.constant dense<0.000000e+00> : vector<25x64xf32>
    %10 = tpu.matmul %1, %3, %cst_9 {dimension_numbers = #tpu.dot_dimension_numbers<[1], [0], [0], [1], [0, 0, 1, 1], [], []>} : vector<25x64xf32>, vector<64x64xf32>, vector<25x64xf32> -> vector<25x64xf32>
    %11 = vector.broadcast %5 : vector<1x64xf32> to vector<25x64xf32>
    %12 = arith.addf %10, %11 : vector<25x64xf32>
    %13 = tpu.transpose %12, [1, 0] : vector<25x64xf32> -> vector<64x25xf32>
    %14 = tpu.transpose %1, [1, 0] : vector<25x64xf32> -> vector<64x25xf32>
    %15 = vector.extract_strided_slice %13 {offsets = [0, 0], sizes = [64, 1], strides = [1, 1]} : vector<64x25xf32> to vector<64x1xf32>
    %16 = vector.broadcast %15 : vector<64x1xf32> to vector<64x128xf32>
    %17 = arith.addf %9, %16 : vector<64x128xf32>
    %cst_10 = arith.constant 0.000000e+00 : f32
    %18 = vector.broadcast %cst_10 : f32 to vector<64x128xf32>
    %19 = arith.maximumf %17, %18 : vector<64x128xf32>
    %cst_11 = arith.constant dense<0.000000e+00> : vector<32x128xf32>
    %20 = tpu.matmul %4, %19, %cst_11 {dimension_numbers = #tpu.dot_dimension_numbers<[1], [0], [0], [1], [0, 0, 1, 1], [], []>} : vector<32x64xf32>, vector<64x128xf32>, vector<32x128xf32> -> vector<32x128xf32>
    %21 = vector.broadcast %7 : vector<32x1xf32> to vector<32x128xf32>
    %22 = arith.addf %20, %21 : vector<32x128xf32>
    %cst_12 = arith.constant 0.000000e+00 : f32
    %23 = vector.broadcast %cst_12 : f32 to vector<32x128xf32>
    %24 = arith.maximumf %22, %23 : vector<32x128xf32>
    %25 = vector.broadcast %8 : vector<32x1xf32> to vector<32x128xf32>
    %26 = arith.mulf %24, %25 : vector<32x128xf32>
    %cst_13 = arith.constant dense<0.000000e+00> : vector<128xf32>
    %27 = vector.multi_reduction <add>, %26, %cst_13 [0] : vector<32x128xf32> to vector<128xf32>
    %28 = vector.shape_cast %27 : vector<128xf32> to vector<1x128xf32>
    %29 = vector.extract_strided_slice %13 {offsets = [0, 1], sizes = [64, 1], strides = [1, 1]} : vector<64x25xf32> to vector<64x1xf32>
    %30 = vector.broadcast %29 : vector<64x1xf32> to vector<64x128xf32>
    %31 = arith.addf %9, %30 : vector<64x128xf32>
    %cst_14 = arith.constant 0.000000e+00 : f32
    %32 = vector.broadcast %cst_14 : f32 to vector<64x128xf32>
    %33 = arith.maximumf %31, %32 : vector<64x128xf32>
    %cst_15 = arith.constant dense<0.000000e+00> : vector<32x128xf32>
    %34 = tpu.matmul %4, %33, %cst_15 {dimension_numbers = #tpu.dot_dimension_numbers<[1], [0], [0], [1], [0, 0, 1, 1], [], []>} : vector<32x64xf32>, vector<64x128xf32>, vector<32x128xf32> -> vector<32x128xf32>
    %35 = vector.broadcast %7 : vector<32x1xf32> to vector<32x128xf32>
    %36 = arith.addf %34, %35 : vector<32x128xf32>
    %cst_16 = arith.constant 0.000000e+00 : f32
    %37 = vector.broadcast %cst_16 : f32 to vector<32x128xf32>
    %38 = arith.maximumf %36, %37 : vector<32x128xf32>
    %39 = vector.broadcast %8 : vector<32x1xf32> to vector<32x128xf32>
    %40 = arith.mulf %38, %39 : vector<32x128xf32>
    %cst_17 = arith.constant dense<0.000000e+00> : vector<128xf32>
    %41 = vector.multi_reduction <add>, %40, %cst_17 [0] : vector<32x128xf32> to vector<128xf32>
    %42 = vector.shape_cast %41 : vector<128xf32> to vector<1x128xf32>
    %43 = vector.extract_strided_slice %13 {offsets = [0, 2], sizes = [64, 1], strides = [1, 1]} : vector<64x25xf32> to vector<64x1xf32>
    %44 = vector.broadcast %43 : vector<64x1xf32> to vector<64x128xf32>
    %45 = arith.addf %9, %44 : vector<64x128xf32>
    %cst_18 = arith.constant 0.000000e+00 : f32
    %46 = vector.broadcast %cst_18 : f32 to vector<64x128xf32>
    %47 = arith.maximumf %45, %46 : vector<64x128xf32>
    %cst_19 = arith.constant dense<0.000000e+00> : vector<32x128xf32>
    %48 = tpu.matmul %4, %47, %cst_19 {dimension_numbers = #tpu.dot_dimension_numbers<[1], [0], [0], [1], [0, 0, 1, 1], [], []>} : vector<32x64xf32>, vector<64x128xf32>, vector<32x128xf32> -> vector<32x128xf32>
    %49 = vector.broadcast %7 : vector<32x1xf32> to vector<32x128xf32>
    %50 = arith.addf %48, %49 : vector<32x128xf32>
    %cst_20 = arith.constant 0.000000e+00 : f32
    %51 = vector.broadcast %cst_20 : f32 to vector<32x128xf32>
    %52 = arith.maximumf %50, %51 : vector<32x128xf32>
    %53 = vector.broadcast %8 : vector<32x1xf32> to vector<32x128xf32>
    %54 = arith.mulf %52, %53 : vector<32x128xf32>
    %cst_21 = arith.constant dense<0.000000e+00> : vector<128xf32>
    %55 = vector.multi_reduction <add>, %54, %cst_21 [0] : vector<32x128xf32> to vector<128xf32>
    %56 = vector.shape_cast %55 : vector<128xf32> to vector<1x128xf32>
    %57 = vector.extract_strided_slice %13 {offsets = [0, 3], sizes = [64, 1], strides = [1, 1]} : vector<64x25xf32> to vector<64x1xf32>
    %58 = vector.broadcast %57 : vector<64x1xf32> to vector<64x128xf32>
    %59 = arith.addf %9, %58 : vector<64x128xf32>
    %cst_22 = arith.constant 0.000000e+00 : f32
    %60 = vector.broadcast %cst_22 : f32 to vector<64x128xf32>
    %61 = arith.maximumf %59, %60 : vector<64x128xf32>
    %cst_23 = arith.constant dense<0.000000e+00> : vector<32x128xf32>
    %62 = tpu.matmul %4, %61, %cst_23 {dimension_numbers = #tpu.dot_dimension_numbers<[1], [0], [0], [1], [0, 0, 1, 1], [], []>} : vector<32x64xf32>, vector<64x128xf32>, vector<32x128xf32> -> vector<32x128xf32>
    %63 = vector.broadcast %7 : vector<32x1xf32> to vector<32x128xf32>
    %64 = arith.addf %62, %63 : vector<32x128xf32>
    %cst_24 = arith.constant 0.000000e+00 : f32
    %65 = vector.broadcast %cst_24 : f32 to vector<32x128xf32>
    %66 = arith.maximumf %64, %65 : vector<32x128xf32>
    %67 = vector.broadcast %8 : vector<32x1xf32> to vector<32x128xf32>
    %68 = arith.mulf %66, %67 : vector<32x128xf32>
    %cst_25 = arith.constant dense<0.000000e+00> : vector<128xf32>
    %69 = vector.multi_reduction <add>, %68, %cst_25 [0] : vector<32x128xf32> to vector<128xf32>
    %70 = vector.shape_cast %69 : vector<128xf32> to vector<1x128xf32>
    %71 = vector.extract_strided_slice %13 {offsets = [0, 4], sizes = [64, 1], strides = [1, 1]} : vector<64x25xf32> to vector<64x1xf32>
    %72 = vector.broadcast %71 : vector<64x1xf32> to vector<64x128xf32>
    %73 = arith.addf %9, %72 : vector<64x128xf32>
    %cst_26 = arith.constant 0.000000e+00 : f32
    %74 = vector.broadcast %cst_26 : f32 to vector<64x128xf32>
    %75 = arith.maximumf %73, %74 : vector<64x128xf32>
    %cst_27 = arith.constant dense<0.000000e+00> : vector<32x128xf32>
    %76 = tpu.matmul %4, %75, %cst_27 {dimension_numbers = #tpu.dot_dimension_numbers<[1], [0], [0], [1], [0, 0, 1, 1], [], []>} : vector<32x64xf32>, vector<64x128xf32>, vector<32x128xf32> -> vector<32x128xf32>
    %77 = vector.broadcast %7 : vector<32x1xf32> to vector<32x128xf32>
    %78 = arith.addf %76, %77 : vector<32x128xf32>
    %cst_28 = arith.constant 0.000000e+00 : f32
    %79 = vector.broadcast %cst_28 : f32 to vector<32x128xf32>
    %80 = arith.maximumf %78, %79 : vector<32x128xf32>
    %81 = vector.broadcast %8 : vector<32x1xf32> to vector<32x128xf32>
    %82 = arith.mulf %80, %81 : vector<32x128xf32>
    %cst_29 = arith.constant dense<0.000000e+00> : vector<128xf32>
    %83 = vector.multi_reduction <add>, %82, %cst_29 [0] : vector<32x128xf32> to vector<128xf32>
    %84 = vector.shape_cast %83 : vector<128xf32> to vector<1x128xf32>
    %85 = tpu.concatenate %28, %42, %56, %70, %84 in 0 : vector<1x128xf32>, vector<1x128xf32>, vector<1x128xf32>, vector<1x128xf32>, vector<1x128xf32> -> vector<5x128xf32>
    %cst_30 = arith.constant dense<0xFF800000> : vector<128xf32>
    %86 = vector.multi_reduction <maximumf>, %85, %cst_30 [0] : vector<5x128xf32> to vector<128xf32>
    %87 = vector.shape_cast %86 : vector<128xf32> to vector<1x128xf32>
    %88 = vector.broadcast %87 : vector<1x128xf32> to vector<5x128xf32>
    %89 = arith.subf %85, %88 : vector<5x128xf32>
    %90 = math.exp %89 : vector<5x128xf32>
    %cst_31 = arith.constant dense<0.000000e+00> : vector<128xf32>
    %91 = vector.multi_reduction <add>, %90, %cst_31 [0] : vector<5x128xf32> to vector<128xf32>
    %92 = vector.shape_cast %91 : vector<128xf32> to vector<1x128xf32>
    %93 = vector.broadcast %92 : vector<1x128xf32> to vector<5x128xf32>
    %94 = arith.divf %90, %93 : vector<5x128xf32>
    %95 = vector.extract_strided_slice %14 {offsets = [0, 0], sizes = [64, 5], strides = [1, 1]} : vector<64x25xf32> to vector<64x5xf32>
    %cst_32 = arith.constant dense<0.000000e+00> : vector<64x128xf32>
    %96 = tpu.matmul %95, %94, %cst_32 {dimension_numbers = #tpu.dot_dimension_numbers<[1], [0], [0], [1], [0, 0, 1, 1], [], []>} : vector<64x5xf32>, vector<5x128xf32>, vector<64x128xf32> -> vector<64x128xf32>
    %97 = arith.subf %0, %96 : vector<64x128xf32>
    %98 = arith.mulf %97, %97 : vector<64x128xf32>
    %cst_33 = arith.constant dense<0.000000e+00> : vector<128xf32>
    %99 = vector.multi_reduction <add>, %98, %cst_33 [0] : vector<64x128xf32> to vector<128xf32>
    %100 = vector.shape_cast %99 : vector<128xf32> to vector<1x128xf32>
    %101 = math.sqrt %100 : vector<1x128xf32>
    %cst_34 = arith.constant 0.000000e+00 : f32
    %102 = vector.broadcast %cst_34 : f32 to vector<1x128xf32>
    %103 = arith.subf %102, %101 : vector<1x128xf32>
    %104 = vector.extract_strided_slice %13 {offsets = [0, 5], sizes = [64, 1], strides = [1, 1]} : vector<64x25xf32> to vector<64x1xf32>
    %105 = vector.broadcast %104 : vector<64x1xf32> to vector<64x128xf32>
    %106 = arith.addf %9, %105 : vector<64x128xf32>
    %cst_35 = arith.constant 0.000000e+00 : f32
    %107 = vector.broadcast %cst_35 : f32 to vector<64x128xf32>
    %108 = arith.maximumf %106, %107 : vector<64x128xf32>
    %cst_36 = arith.constant dense<0.000000e+00> : vector<32x128xf32>
    %109 = tpu.matmul %4, %108, %cst_36 {dimension_numbers = #tpu.dot_dimension_numbers<[1], [0], [0], [1], [0, 0, 1, 1], [], []>} : vector<32x64xf32>, vector<64x128xf32>, vector<32x128xf32> -> vector<32x128xf32>
    %110 = vector.broadcast %7 : vector<32x1xf32> to vector<32x128xf32>
    %111 = arith.addf %109, %110 : vector<32x128xf32>
    %cst_37 = arith.constant 0.000000e+00 : f32
    %112 = vector.broadcast %cst_37 : f32 to vector<32x128xf32>
    %113 = arith.maximumf %111, %112 : vector<32x128xf32>
    %114 = vector.broadcast %8 : vector<32x1xf32> to vector<32x128xf32>
    %115 = arith.mulf %113, %114 : vector<32x128xf32>
    %cst_38 = arith.constant dense<0.000000e+00> : vector<128xf32>
    %116 = vector.multi_reduction <add>, %115, %cst_38 [0] : vector<32x128xf32> to vector<128xf32>
    %117 = vector.shape_cast %116 : vector<128xf32> to vector<1x128xf32>
    %118 = vector.extract_strided_slice %13 {offsets = [0, 6], sizes = [64, 1], strides = [1, 1]} : vector<64x25xf32> to vector<64x1xf32>
    %119 = vector.broadcast %118 : vector<64x1xf32> to vector<64x128xf32>
    %120 = arith.addf %9, %119 : vector<64x128xf32>
    %cst_39 = arith.constant 0.000000e+00 : f32
    %121 = vector.broadcast %cst_39 : f32 to vector<64x128xf32>
    %122 = arith.maximumf %120, %121 : vector<64x128xf32>
    %cst_40 = arith.constant dense<0.000000e+00> : vector<32x128xf32>
    %123 = tpu.matmul %4, %122, %cst_40 {dimension_numbers = #tpu.dot_dimension_numbers<[1], [0], [0], [1], [0, 0, 1, 1], [], []>} : vector<32x64xf32>, vector<64x128xf32>, vector<32x128xf32> -> vector<32x128xf32>
    %124 = vector.broadcast %7 : vector<32x1xf32> to vector<32x128xf32>
    %125 = arith.addf %123, %124 : vector<32x128xf32>
    %cst_41 = arith.constant 0.000000e+00 : f32
    %126 = vector.broadcast %cst_41 : f32 to vector<32x128xf32>
    %127 = arith.maximumf %125, %126 : vector<32x128xf32>
    %128 = vector.broadcast %8 : vector<32x1xf32> to vector<32x128xf32>
    %129 = arith.mulf %127, %128 : vector<32x128xf32>
    %cst_42 = arith.constant dense<0.000000e+00> : vector<128xf32>
    %130 = vector.multi_reduction <add>, %129, %cst_42 [0] : vector<32x128xf32> to vector<128xf32>
    %131 = vector.shape_cast %130 : vector<128xf32> to vector<1x128xf32>
    %132 = vector.extract_strided_slice %13 {offsets = [0, 7], sizes = [64, 1], strides = [1, 1]} : vector<64x25xf32> to vector<64x1xf32>
    %133 = vector.broadcast %132 : vector<64x1xf32> to vector<64x128xf32>
    %134 = arith.addf %9, %133 : vector<64x128xf32>
    %cst_43 = arith.constant 0.000000e+00 : f32
    %135 = vector.broadcast %cst_43 : f32 to vector<64x128xf32>
    %136 = arith.maximumf %134, %135 : vector<64x128xf32>
    %cst_44 = arith.constant dense<0.000000e+00> : vector<32x128xf32>
    %137 = tpu.matmul %4, %136, %cst_44 {dimension_numbers = #tpu.dot_dimension_numbers<[1], [0], [0], [1], [0, 0, 1, 1], [], []>} : vector<32x64xf32>, vector<64x128xf32>, vector<32x128xf32> -> vector<32x128xf32>
    %138 = vector.broadcast %7 : vector<32x1xf32> to vector<32x128xf32>
    %139 = arith.addf %137, %138 : vector<32x128xf32>
    %cst_45 = arith.constant 0.000000e+00 : f32
    %140 = vector.broadcast %cst_45 : f32 to vector<32x128xf32>
    %141 = arith.maximumf %139, %140 : vector<32x128xf32>
    %142 = vector.broadcast %8 : vector<32x1xf32> to vector<32x128xf32>
    %143 = arith.mulf %141, %142 : vector<32x128xf32>
    %cst_46 = arith.constant dense<0.000000e+00> : vector<128xf32>
    %144 = vector.multi_reduction <add>, %143, %cst_46 [0] : vector<32x128xf32> to vector<128xf32>
    %145 = vector.shape_cast %144 : vector<128xf32> to vector<1x128xf32>
    %146 = vector.extract_strided_slice %13 {offsets = [0, 8], sizes = [64, 1], strides = [1, 1]} : vector<64x25xf32> to vector<64x1xf32>
    %147 = vector.broadcast %146 : vector<64x1xf32> to vector<64x128xf32>
    %148 = arith.addf %9, %147 : vector<64x128xf32>
    %cst_47 = arith.constant 0.000000e+00 : f32
    %149 = vector.broadcast %cst_47 : f32 to vector<64x128xf32>
    %150 = arith.maximumf %148, %149 : vector<64x128xf32>
    %cst_48 = arith.constant dense<0.000000e+00> : vector<32x128xf32>
    %151 = tpu.matmul %4, %150, %cst_48 {dimension_numbers = #tpu.dot_dimension_numbers<[1], [0], [0], [1], [0, 0, 1, 1], [], []>} : vector<32x64xf32>, vector<64x128xf32>, vector<32x128xf32> -> vector<32x128xf32>
    %152 = vector.broadcast %7 : vector<32x1xf32> to vector<32x128xf32>
    %153 = arith.addf %151, %152 : vector<32x128xf32>
    %cst_49 = arith.constant 0.000000e+00 : f32
    %154 = vector.broadcast %cst_49 : f32 to vector<32x128xf32>
    %155 = arith.maximumf %153, %154 : vector<32x128xf32>
    %156 = vector.broadcast %8 : vector<32x1xf32> to vector<32x128xf32>
    %157 = arith.mulf %155, %156 : vector<32x128xf32>
    %cst_50 = arith.constant dense<0.000000e+00> : vector<128xf32>
    %158 = vector.multi_reduction <add>, %157, %cst_50 [0] : vector<32x128xf32> to vector<128xf32>
    %159 = vector.shape_cast %158 : vector<128xf32> to vector<1x128xf32>
    %160 = vector.extract_strided_slice %13 {offsets = [0, 9], sizes = [64, 1], strides = [1, 1]} : vector<64x25xf32> to vector<64x1xf32>
    %161 = vector.broadcast %160 : vector<64x1xf32> to vector<64x128xf32>
    %162 = arith.addf %9, %161 : vector<64x128xf32>
    %cst_51 = arith.constant 0.000000e+00 : f32
    %163 = vector.broadcast %cst_51 : f32 to vector<64x128xf32>
    %164 = arith.maximumf %162, %163 : vector<64x128xf32>
    %cst_52 = arith.constant dense<0.000000e+00> : vector<32x128xf32>
    %165 = tpu.matmul %4, %164, %cst_52 {dimension_numbers = #tpu.dot_dimension_numbers<[1], [0], [0], [1], [0, 0, 1, 1], [], []>} : vector<32x64xf32>, vector<64x128xf32>, vector<32x128xf32> -> vector<32x128xf32>
    %166 = vector.broadcast %7 : vector<32x1xf32> to vector<32x128xf32>
    %167 = arith.addf %165, %166 : vector<32x128xf32>
    %cst_53 = arith.constant 0.000000e+00 : f32
    %168 = vector.broadcast %cst_53 : f32 to vector<32x128xf32>
    %169 = arith.maximumf %167, %168 : vector<32x128xf32>
    %170 = vector.broadcast %8 : vector<32x1xf32> to vector<32x128xf32>
    %171 = arith.mulf %169, %170 : vector<32x128xf32>
    %cst_54 = arith.constant dense<0.000000e+00> : vector<128xf32>
    %172 = vector.multi_reduction <add>, %171, %cst_54 [0] : vector<32x128xf32> to vector<128xf32>
    %173 = vector.shape_cast %172 : vector<128xf32> to vector<1x128xf32>
    %174 = tpu.concatenate %117, %131, %145, %159, %173 in 0 : vector<1x128xf32>, vector<1x128xf32>, vector<1x128xf32>, vector<1x128xf32>, vector<1x128xf32> -> vector<5x128xf32>
    %cst_55 = arith.constant dense<0xFF800000> : vector<128xf32>
    %175 = vector.multi_reduction <maximumf>, %174, %cst_55 [0] : vector<5x128xf32> to vector<128xf32>
    %176 = vector.shape_cast %175 : vector<128xf32> to vector<1x128xf32>
    %177 = vector.broadcast %176 : vector<1x128xf32> to vector<5x128xf32>
    %178 = arith.subf %174, %177 : vector<5x128xf32>
    %179 = math.exp %178 : vector<5x128xf32>
    %cst_56 = arith.constant dense<0.000000e+00> : vector<128xf32>
    %180 = vector.multi_reduction <add>, %179, %cst_56 [0] : vector<5x128xf32> to vector<128xf32>
    %181 = vector.shape_cast %180 : vector<128xf32> to vector<1x128xf32>
    %182 = vector.broadcast %181 : vector<1x128xf32> to vector<5x128xf32>
    %183 = arith.divf %179, %182 : vector<5x128xf32>
    %184 = vector.extract_strided_slice %14 {offsets = [0, 5], sizes = [64, 5], strides = [1, 1]} : vector<64x25xf32> to vector<64x5xf32>
    %cst_57 = arith.constant dense<0.000000e+00> : vector<64x128xf32>
    %185 = tpu.matmul %184, %183, %cst_57 {dimension_numbers = #tpu.dot_dimension_numbers<[1], [0], [0], [1], [0, 0, 1, 1], [], []>} : vector<64x5xf32>, vector<5x128xf32>, vector<64x128xf32> -> vector<64x128xf32>
    %186 = arith.subf %0, %185 : vector<64x128xf32>
    %187 = arith.mulf %186, %186 : vector<64x128xf32>
    %cst_58 = arith.constant dense<0.000000e+00> : vector<128xf32>
    %188 = vector.multi_reduction <add>, %187, %cst_58 [0] : vector<64x128xf32> to vector<128xf32>
    %189 = vector.shape_cast %188 : vector<128xf32> to vector<1x128xf32>
    %190 = math.sqrt %189 : vector<1x128xf32>
    %cst_59 = arith.constant 0.000000e+00 : f32
    %191 = vector.broadcast %cst_59 : f32 to vector<1x128xf32>
    %192 = arith.subf %191, %190 : vector<1x128xf32>
    %193 = vector.extract_strided_slice %13 {offsets = [0, 10], sizes = [64, 1], strides = [1, 1]} : vector<64x25xf32> to vector<64x1xf32>
    %194 = vector.broadcast %193 : vector<64x1xf32> to vector<64x128xf32>
    %195 = arith.addf %9, %194 : vector<64x128xf32>
    %cst_60 = arith.constant 0.000000e+00 : f32
    %196 = vector.broadcast %cst_60 : f32 to vector<64x128xf32>
    %197 = arith.maximumf %195, %196 : vector<64x128xf32>
    %cst_61 = arith.constant dense<0.000000e+00> : vector<32x128xf32>
    %198 = tpu.matmul %4, %197, %cst_61 {dimension_numbers = #tpu.dot_dimension_numbers<[1], [0], [0], [1], [0, 0, 1, 1], [], []>} : vector<32x64xf32>, vector<64x128xf32>, vector<32x128xf32> -> vector<32x128xf32>
    %199 = vector.broadcast %7 : vector<32x1xf32> to vector<32x128xf32>
    %200 = arith.addf %198, %199 : vector<32x128xf32>
    %cst_62 = arith.constant 0.000000e+00 : f32
    %201 = vector.broadcast %cst_62 : f32 to vector<32x128xf32>
    %202 = arith.maximumf %200, %201 : vector<32x128xf32>
    %203 = vector.broadcast %8 : vector<32x1xf32> to vector<32x128xf32>
    %204 = arith.mulf %202, %203 : vector<32x128xf32>
    %cst_63 = arith.constant dense<0.000000e+00> : vector<128xf32>
    %205 = vector.multi_reduction <add>, %204, %cst_63 [0] : vector<32x128xf32> to vector<128xf32>
    %206 = vector.shape_cast %205 : vector<128xf32> to vector<1x128xf32>
    %207 = vector.extract_strided_slice %13 {offsets = [0, 11], sizes = [64, 1], strides = [1, 1]} : vector<64x25xf32> to vector<64x1xf32>
    %208 = vector.broadcast %207 : vector<64x1xf32> to vector<64x128xf32>
    %209 = arith.addf %9, %208 : vector<64x128xf32>
    %cst_64 = arith.constant 0.000000e+00 : f32
    %210 = vector.broadcast %cst_64 : f32 to vector<64x128xf32>
    %211 = arith.maximumf %209, %210 : vector<64x128xf32>
    %cst_65 = arith.constant dense<0.000000e+00> : vector<32x128xf32>
    %212 = tpu.matmul %4, %211, %cst_65 {dimension_numbers = #tpu.dot_dimension_numbers<[1], [0], [0], [1], [0, 0, 1, 1], [], []>} : vector<32x64xf32>, vector<64x128xf32>, vector<32x128xf32> -> vector<32x128xf32>
    %213 = vector.broadcast %7 : vector<32x1xf32> to vector<32x128xf32>
    %214 = arith.addf %212, %213 : vector<32x128xf32>
    %cst_66 = arith.constant 0.000000e+00 : f32
    %215 = vector.broadcast %cst_66 : f32 to vector<32x128xf32>
    %216 = arith.maximumf %214, %215 : vector<32x128xf32>
    %217 = vector.broadcast %8 : vector<32x1xf32> to vector<32x128xf32>
    %218 = arith.mulf %216, %217 : vector<32x128xf32>
    %cst_67 = arith.constant dense<0.000000e+00> : vector<128xf32>
    %219 = vector.multi_reduction <add>, %218, %cst_67 [0] : vector<32x128xf32> to vector<128xf32>
    %220 = vector.shape_cast %219 : vector<128xf32> to vector<1x128xf32>
    %221 = vector.extract_strided_slice %13 {offsets = [0, 12], sizes = [64, 1], strides = [1, 1]} : vector<64x25xf32> to vector<64x1xf32>
    %222 = vector.broadcast %221 : vector<64x1xf32> to vector<64x128xf32>
    %223 = arith.addf %9, %222 : vector<64x128xf32>
    %cst_68 = arith.constant 0.000000e+00 : f32
    %224 = vector.broadcast %cst_68 : f32 to vector<64x128xf32>
    %225 = arith.maximumf %223, %224 : vector<64x128xf32>
    %cst_69 = arith.constant dense<0.000000e+00> : vector<32x128xf32>
    %226 = tpu.matmul %4, %225, %cst_69 {dimension_numbers = #tpu.dot_dimension_numbers<[1], [0], [0], [1], [0, 0, 1, 1], [], []>} : vector<32x64xf32>, vector<64x128xf32>, vector<32x128xf32> -> vector<32x128xf32>
    %227 = vector.broadcast %7 : vector<32x1xf32> to vector<32x128xf32>
    %228 = arith.addf %226, %227 : vector<32x128xf32>
    %cst_70 = arith.constant 0.000000e+00 : f32
    %229 = vector.broadcast %cst_70 : f32 to vector<32x128xf32>
    %230 = arith.maximumf %228, %229 : vector<32x128xf32>
    %231 = vector.broadcast %8 : vector<32x1xf32> to vector<32x128xf32>
    %232 = arith.mulf %230, %231 : vector<32x128xf32>
    %cst_71 = arith.constant dense<0.000000e+00> : vector<128xf32>
    %233 = vector.multi_reduction <add>, %232, %cst_71 [0] : vector<32x128xf32> to vector<128xf32>
    %234 = vector.shape_cast %233 : vector<128xf32> to vector<1x128xf32>
    %235 = vector.extract_strided_slice %13 {offsets = [0, 13], sizes = [64, 1], strides = [1, 1]} : vector<64x25xf32> to vector<64x1xf32>
    %236 = vector.broadcast %235 : vector<64x1xf32> to vector<64x128xf32>
    %237 = arith.addf %9, %236 : vector<64x128xf32>
    %cst_72 = arith.constant 0.000000e+00 : f32
    %238 = vector.broadcast %cst_72 : f32 to vector<64x128xf32>
    %239 = arith.maximumf %237, %238 : vector<64x128xf32>
    %cst_73 = arith.constant dense<0.000000e+00> : vector<32x128xf32>
    %240 = tpu.matmul %4, %239, %cst_73 {dimension_numbers = #tpu.dot_dimension_numbers<[1], [0], [0], [1], [0, 0, 1, 1], [], []>} : vector<32x64xf32>, vector<64x128xf32>, vector<32x128xf32> -> vector<32x128xf32>
    %241 = vector.broadcast %7 : vector<32x1xf32> to vector<32x128xf32>
    %242 = arith.addf %240, %241 : vector<32x128xf32>
    %cst_74 = arith.constant 0.000000e+00 : f32
    %243 = vector.broadcast %cst_74 : f32 to vector<32x128xf32>
    %244 = arith.maximumf %242, %243 : vector<32x128xf32>
    %245 = vector.broadcast %8 : vector<32x1xf32> to vector<32x128xf32>
    %246 = arith.mulf %244, %245 : vector<32x128xf32>
    %cst_75 = arith.constant dense<0.000000e+00> : vector<128xf32>
    %247 = vector.multi_reduction <add>, %246, %cst_75 [0] : vector<32x128xf32> to vector<128xf32>
    %248 = vector.shape_cast %247 : vector<128xf32> to vector<1x128xf32>
    %249 = vector.extract_strided_slice %13 {offsets = [0, 14], sizes = [64, 1], strides = [1, 1]} : vector<64x25xf32> to vector<64x1xf32>
    %250 = vector.broadcast %249 : vector<64x1xf32> to vector<64x128xf32>
    %251 = arith.addf %9, %250 : vector<64x128xf32>
    %cst_76 = arith.constant 0.000000e+00 : f32
    %252 = vector.broadcast %cst_76 : f32 to vector<64x128xf32>
    %253 = arith.maximumf %251, %252 : vector<64x128xf32>
    %cst_77 = arith.constant dense<0.000000e+00> : vector<32x128xf32>
    %254 = tpu.matmul %4, %253, %cst_77 {dimension_numbers = #tpu.dot_dimension_numbers<[1], [0], [0], [1], [0, 0, 1, 1], [], []>} : vector<32x64xf32>, vector<64x128xf32>, vector<32x128xf32> -> vector<32x128xf32>
    %255 = vector.broadcast %7 : vector<32x1xf32> to vector<32x128xf32>
    %256 = arith.addf %254, %255 : vector<32x128xf32>
    %cst_78 = arith.constant 0.000000e+00 : f32
    %257 = vector.broadcast %cst_78 : f32 to vector<32x128xf32>
    %258 = arith.maximumf %256, %257 : vector<32x128xf32>
    %259 = vector.broadcast %8 : vector<32x1xf32> to vector<32x128xf32>
    %260 = arith.mulf %258, %259 : vector<32x128xf32>
    %cst_79 = arith.constant dense<0.000000e+00> : vector<128xf32>
    %261 = vector.multi_reduction <add>, %260, %cst_79 [0] : vector<32x128xf32> to vector<128xf32>
    %262 = vector.shape_cast %261 : vector<128xf32> to vector<1x128xf32>
    %263 = tpu.concatenate %206, %220, %234, %248, %262 in 0 : vector<1x128xf32>, vector<1x128xf32>, vector<1x128xf32>, vector<1x128xf32>, vector<1x128xf32> -> vector<5x128xf32>
    %cst_80 = arith.constant dense<0xFF800000> : vector<128xf32>
    %264 = vector.multi_reduction <maximumf>, %263, %cst_80 [0] : vector<5x128xf32> to vector<128xf32>
    %265 = vector.shape_cast %264 : vector<128xf32> to vector<1x128xf32>
    %266 = vector.broadcast %265 : vector<1x128xf32> to vector<5x128xf32>
    %267 = arith.subf %263, %266 : vector<5x128xf32>
    %268 = math.exp %267 : vector<5x128xf32>
    %cst_81 = arith.constant dense<0.000000e+00> : vector<128xf32>
    %269 = vector.multi_reduction <add>, %268, %cst_81 [0] : vector<5x128xf32> to vector<128xf32>
    %270 = vector.shape_cast %269 : vector<128xf32> to vector<1x128xf32>
    %271 = vector.broadcast %270 : vector<1x128xf32> to vector<5x128xf32>
    %272 = arith.divf %268, %271 : vector<5x128xf32>
    %273 = vector.extract_strided_slice %14 {offsets = [0, 10], sizes = [64, 5], strides = [1, 1]} : vector<64x25xf32> to vector<64x5xf32>
    %cst_82 = arith.constant dense<0.000000e+00> : vector<64x128xf32>
    %274 = tpu.matmul %273, %272, %cst_82 {dimension_numbers = #tpu.dot_dimension_numbers<[1], [0], [0], [1], [0, 0, 1, 1], [], []>} : vector<64x5xf32>, vector<5x128xf32>, vector<64x128xf32> -> vector<64x128xf32>
    %275 = arith.subf %0, %274 : vector<64x128xf32>
    %276 = arith.mulf %275, %275 : vector<64x128xf32>
    %cst_83 = arith.constant dense<0.000000e+00> : vector<128xf32>
    %277 = vector.multi_reduction <add>, %276, %cst_83 [0] : vector<64x128xf32> to vector<128xf32>
    %278 = vector.shape_cast %277 : vector<128xf32> to vector<1x128xf32>
    %279 = math.sqrt %278 : vector<1x128xf32>
    %cst_84 = arith.constant 0.000000e+00 : f32
    %280 = vector.broadcast %cst_84 : f32 to vector<1x128xf32>
    %281 = arith.subf %280, %279 : vector<1x128xf32>
    %282 = vector.extract_strided_slice %13 {offsets = [0, 15], sizes = [64, 1], strides = [1, 1]} : vector<64x25xf32> to vector<64x1xf32>
    %283 = vector.broadcast %282 : vector<64x1xf32> to vector<64x128xf32>
    %284 = arith.addf %9, %283 : vector<64x128xf32>
    %cst_85 = arith.constant 0.000000e+00 : f32
    %285 = vector.broadcast %cst_85 : f32 to vector<64x128xf32>
    %286 = arith.maximumf %284, %285 : vector<64x128xf32>
    %cst_86 = arith.constant dense<0.000000e+00> : vector<32x128xf32>
    %287 = tpu.matmul %4, %286, %cst_86 {dimension_numbers = #tpu.dot_dimension_numbers<[1], [0], [0], [1], [0, 0, 1, 1], [], []>} : vector<32x64xf32>, vector<64x128xf32>, vector<32x128xf32> -> vector<32x128xf32>
    %288 = vector.broadcast %7 : vector<32x1xf32> to vector<32x128xf32>
    %289 = arith.addf %287, %288 : vector<32x128xf32>
    %cst_87 = arith.constant 0.000000e+00 : f32
    %290 = vector.broadcast %cst_87 : f32 to vector<32x128xf32>
    %291 = arith.maximumf %289, %290 : vector<32x128xf32>
    %292 = vector.broadcast %8 : vector<32x1xf32> to vector<32x128xf32>
    %293 = arith.mulf %291, %292 : vector<32x128xf32>
    %cst_88 = arith.constant dense<0.000000e+00> : vector<128xf32>
    %294 = vector.multi_reduction <add>, %293, %cst_88 [0] : vector<32x128xf32> to vector<128xf32>
    %295 = vector.shape_cast %294 : vector<128xf32> to vector<1x128xf32>
    %296 = vector.extract_strided_slice %13 {offsets = [0, 16], sizes = [64, 1], strides = [1, 1]} : vector<64x25xf32> to vector<64x1xf32>
    %297 = vector.broadcast %296 : vector<64x1xf32> to vector<64x128xf32>
    %298 = arith.addf %9, %297 : vector<64x128xf32>
    %cst_89 = arith.constant 0.000000e+00 : f32
    %299 = vector.broadcast %cst_89 : f32 to vector<64x128xf32>
    %300 = arith.maximumf %298, %299 : vector<64x128xf32>
    %cst_90 = arith.constant dense<0.000000e+00> : vector<32x128xf32>
    %301 = tpu.matmul %4, %300, %cst_90 {dimension_numbers = #tpu.dot_dimension_numbers<[1], [0], [0], [1], [0, 0, 1, 1], [], []>} : vector<32x64xf32>, vector<64x128xf32>, vector<32x128xf32> -> vector<32x128xf32>
    %302 = vector.broadcast %7 : vector<32x1xf32> to vector<32x128xf32>
    %303 = arith.addf %301, %302 : vector<32x128xf32>
    %cst_91 = arith.constant 0.000000e+00 : f32
    %304 = vector.broadcast %cst_91 : f32 to vector<32x128xf32>
    %305 = arith.maximumf %303, %304 : vector<32x128xf32>
    %306 = vector.broadcast %8 : vector<32x1xf32> to vector<32x128xf32>
    %307 = arith.mulf %305, %306 : vector<32x128xf32>
    %cst_92 = arith.constant dense<0.000000e+00> : vector<128xf32>
    %308 = vector.multi_reduction <add>, %307, %cst_92 [0] : vector<32x128xf32> to vector<128xf32>
    %309 = vector.shape_cast %308 : vector<128xf32> to vector<1x128xf32>
    %310 = vector.extract_strided_slice %13 {offsets = [0, 17], sizes = [64, 1], strides = [1, 1]} : vector<64x25xf32> to vector<64x1xf32>
    %311 = vector.broadcast %310 : vector<64x1xf32> to vector<64x128xf32>
    %312 = arith.addf %9, %311 : vector<64x128xf32>
    %cst_93 = arith.constant 0.000000e+00 : f32
    %313 = vector.broadcast %cst_93 : f32 to vector<64x128xf32>
    %314 = arith.maximumf %312, %313 : vector<64x128xf32>
    %cst_94 = arith.constant dense<0.000000e+00> : vector<32x128xf32>
    %315 = tpu.matmul %4, %314, %cst_94 {dimension_numbers = #tpu.dot_dimension_numbers<[1], [0], [0], [1], [0, 0, 1, 1], [], []>} : vector<32x64xf32>, vector<64x128xf32>, vector<32x128xf32> -> vector<32x128xf32>
    %316 = vector.broadcast %7 : vector<32x1xf32> to vector<32x128xf32>
    %317 = arith.addf %315, %316 : vector<32x128xf32>
    %cst_95 = arith.constant 0.000000e+00 : f32
    %318 = vector.broadcast %cst_95 : f32 to vector<32x128xf32>
    %319 = arith.maximumf %317, %318 : vector<32x128xf32>
    %320 = vector.broadcast %8 : vector<32x1xf32> to vector<32x128xf32>
    %321 = arith.mulf %319, %320 : vector<32x128xf32>
    %cst_96 = arith.constant dense<0.000000e+00> : vector<128xf32>
    %322 = vector.multi_reduction <add>, %321, %cst_96 [0] : vector<32x128xf32> to vector<128xf32>
    %323 = vector.shape_cast %322 : vector<128xf32> to vector<1x128xf32>
    %324 = vector.extract_strided_slice %13 {offsets = [0, 18], sizes = [64, 1], strides = [1, 1]} : vector<64x25xf32> to vector<64x1xf32>
    %325 = vector.broadcast %324 : vector<64x1xf32> to vector<64x128xf32>
    %326 = arith.addf %9, %325 : vector<64x128xf32>
    %cst_97 = arith.constant 0.000000e+00 : f32
    %327 = vector.broadcast %cst_97 : f32 to vector<64x128xf32>
    %328 = arith.maximumf %326, %327 : vector<64x128xf32>
    %cst_98 = arith.constant dense<0.000000e+00> : vector<32x128xf32>
    %329 = tpu.matmul %4, %328, %cst_98 {dimension_numbers = #tpu.dot_dimension_numbers<[1], [0], [0], [1], [0, 0, 1, 1], [], []>} : vector<32x64xf32>, vector<64x128xf32>, vector<32x128xf32> -> vector<32x128xf32>
    %330 = vector.broadcast %7 : vector<32x1xf32> to vector<32x128xf32>
    %331 = arith.addf %329, %330 : vector<32x128xf32>
    %cst_99 = arith.constant 0.000000e+00 : f32
    %332 = vector.broadcast %cst_99 : f32 to vector<32x128xf32>
    %333 = arith.maximumf %331, %332 : vector<32x128xf32>
    %334 = vector.broadcast %8 : vector<32x1xf32> to vector<32x128xf32>
    %335 = arith.mulf %333, %334 : vector<32x128xf32>
    %cst_100 = arith.constant dense<0.000000e+00> : vector<128xf32>
    %336 = vector.multi_reduction <add>, %335, %cst_100 [0] : vector<32x128xf32> to vector<128xf32>
    %337 = vector.shape_cast %336 : vector<128xf32> to vector<1x128xf32>
    %338 = vector.extract_strided_slice %13 {offsets = [0, 19], sizes = [64, 1], strides = [1, 1]} : vector<64x25xf32> to vector<64x1xf32>
    %339 = vector.broadcast %338 : vector<64x1xf32> to vector<64x128xf32>
    %340 = arith.addf %9, %339 : vector<64x128xf32>
    %cst_101 = arith.constant 0.000000e+00 : f32
    %341 = vector.broadcast %cst_101 : f32 to vector<64x128xf32>
    %342 = arith.maximumf %340, %341 : vector<64x128xf32>
    %cst_102 = arith.constant dense<0.000000e+00> : vector<32x128xf32>
    %343 = tpu.matmul %4, %342, %cst_102 {dimension_numbers = #tpu.dot_dimension_numbers<[1], [0], [0], [1], [0, 0, 1, 1], [], []>} : vector<32x64xf32>, vector<64x128xf32>, vector<32x128xf32> -> vector<32x128xf32>
    %344 = vector.broadcast %7 : vector<32x1xf32> to vector<32x128xf32>
    %345 = arith.addf %343, %344 : vector<32x128xf32>
    %cst_103 = arith.constant 0.000000e+00 : f32
    %346 = vector.broadcast %cst_103 : f32 to vector<32x128xf32>
    %347 = arith.maximumf %345, %346 : vector<32x128xf32>
    %348 = vector.broadcast %8 : vector<32x1xf32> to vector<32x128xf32>
    %349 = arith.mulf %347, %348 : vector<32x128xf32>
    %cst_104 = arith.constant dense<0.000000e+00> : vector<128xf32>
    %350 = vector.multi_reduction <add>, %349, %cst_104 [0] : vector<32x128xf32> to vector<128xf32>
    %351 = vector.shape_cast %350 : vector<128xf32> to vector<1x128xf32>
    %352 = tpu.concatenate %295, %309, %323, %337, %351 in 0 : vector<1x128xf32>, vector<1x128xf32>, vector<1x128xf32>, vector<1x128xf32>, vector<1x128xf32> -> vector<5x128xf32>
    %cst_105 = arith.constant dense<0xFF800000> : vector<128xf32>
    %353 = vector.multi_reduction <maximumf>, %352, %cst_105 [0] : vector<5x128xf32> to vector<128xf32>
    %354 = vector.shape_cast %353 : vector<128xf32> to vector<1x128xf32>
    %355 = vector.broadcast %354 : vector<1x128xf32> to vector<5x128xf32>
    %356 = arith.subf %352, %355 : vector<5x128xf32>
    %357 = math.exp %356 : vector<5x128xf32>
    %cst_106 = arith.constant dense<0.000000e+00> : vector<128xf32>
    %358 = vector.multi_reduction <add>, %357, %cst_106 [0] : vector<5x128xf32> to vector<128xf32>
    %359 = vector.shape_cast %358 : vector<128xf32> to vector<1x128xf32>
    %360 = vector.broadcast %359 : vector<1x128xf32> to vector<5x128xf32>
    %361 = arith.divf %357, %360 : vector<5x128xf32>
    %362 = vector.extract_strided_slice %14 {offsets = [0, 15], sizes = [64, 5], strides = [1, 1]} : vector<64x25xf32> to vector<64x5xf32>
    %cst_107 = arith.constant dense<0.000000e+00> : vector<64x128xf32>
    %363 = tpu.matmul %362, %361, %cst_107 {dimension_numbers = #tpu.dot_dimension_numbers<[1], [0], [0], [1], [0, 0, 1, 1], [], []>} : vector<64x5xf32>, vector<5x128xf32>, vector<64x128xf32> -> vector<64x128xf32>
    %364 = arith.subf %0, %363 : vector<64x128xf32>
    %365 = arith.mulf %364, %364 : vector<64x128xf32>
    %cst_108 = arith.constant dense<0.000000e+00> : vector<128xf32>
    %366 = vector.multi_reduction <add>, %365, %cst_108 [0] : vector<64x128xf32> to vector<128xf32>
    %367 = vector.shape_cast %366 : vector<128xf32> to vector<1x128xf32>
    %368 = math.sqrt %367 : vector<1x128xf32>
    %cst_109 = arith.constant 0.000000e+00 : f32
    %369 = vector.broadcast %cst_109 : f32 to vector<1x128xf32>
    %370 = arith.subf %369, %368 : vector<1x128xf32>
    %371 = vector.extract_strided_slice %13 {offsets = [0, 20], sizes = [64, 1], strides = [1, 1]} : vector<64x25xf32> to vector<64x1xf32>
    %372 = vector.broadcast %371 : vector<64x1xf32> to vector<64x128xf32>
    %373 = arith.addf %9, %372 : vector<64x128xf32>
    %cst_110 = arith.constant 0.000000e+00 : f32
    %374 = vector.broadcast %cst_110 : f32 to vector<64x128xf32>
    %375 = arith.maximumf %373, %374 : vector<64x128xf32>
    %cst_111 = arith.constant dense<0.000000e+00> : vector<32x128xf32>
    %376 = tpu.matmul %4, %375, %cst_111 {dimension_numbers = #tpu.dot_dimension_numbers<[1], [0], [0], [1], [0, 0, 1, 1], [], []>} : vector<32x64xf32>, vector<64x128xf32>, vector<32x128xf32> -> vector<32x128xf32>
    %377 = vector.broadcast %7 : vector<32x1xf32> to vector<32x128xf32>
    %378 = arith.addf %376, %377 : vector<32x128xf32>
    %cst_112 = arith.constant 0.000000e+00 : f32
    %379 = vector.broadcast %cst_112 : f32 to vector<32x128xf32>
    %380 = arith.maximumf %378, %379 : vector<32x128xf32>
    %381 = vector.broadcast %8 : vector<32x1xf32> to vector<32x128xf32>
    %382 = arith.mulf %380, %381 : vector<32x128xf32>
    %cst_113 = arith.constant dense<0.000000e+00> : vector<128xf32>
    %383 = vector.multi_reduction <add>, %382, %cst_113 [0] : vector<32x128xf32> to vector<128xf32>
    %384 = vector.shape_cast %383 : vector<128xf32> to vector<1x128xf32>
    %385 = vector.extract_strided_slice %13 {offsets = [0, 21], sizes = [64, 1], strides = [1, 1]} : vector<64x25xf32> to vector<64x1xf32>
    %386 = vector.broadcast %385 : vector<64x1xf32> to vector<64x128xf32>
    %387 = arith.addf %9, %386 : vector<64x128xf32>
    %cst_114 = arith.constant 0.000000e+00 : f32
    %388 = vector.broadcast %cst_114 : f32 to vector<64x128xf32>
    %389 = arith.maximumf %387, %388 : vector<64x128xf32>
    %cst_115 = arith.constant dense<0.000000e+00> : vector<32x128xf32>
    %390 = tpu.matmul %4, %389, %cst_115 {dimension_numbers = #tpu.dot_dimension_numbers<[1], [0], [0], [1], [0, 0, 1, 1], [], []>} : vector<32x64xf32>, vector<64x128xf32>, vector<32x128xf32> -> vector<32x128xf32>
    %391 = vector.broadcast %7 : vector<32x1xf32> to vector<32x128xf32>
    %392 = arith.addf %390, %391 : vector<32x128xf32>
    %cst_116 = arith.constant 0.000000e+00 : f32
    %393 = vector.broadcast %cst_116 : f32 to vector<32x128xf32>
    %394 = arith.maximumf %392, %393 : vector<32x128xf32>
    %395 = vector.broadcast %8 : vector<32x1xf32> to vector<32x128xf32>
    %396 = arith.mulf %394, %395 : vector<32x128xf32>
    %cst_117 = arith.constant dense<0.000000e+00> : vector<128xf32>
    %397 = vector.multi_reduction <add>, %396, %cst_117 [0] : vector<32x128xf32> to vector<128xf32>
    %398 = vector.shape_cast %397 : vector<128xf32> to vector<1x128xf32>
    %399 = vector.extract_strided_slice %13 {offsets = [0, 22], sizes = [64, 1], strides = [1, 1]} : vector<64x25xf32> to vector<64x1xf32>
    %400 = vector.broadcast %399 : vector<64x1xf32> to vector<64x128xf32>
    %401 = arith.addf %9, %400 : vector<64x128xf32>
    %cst_118 = arith.constant 0.000000e+00 : f32
    %402 = vector.broadcast %cst_118 : f32 to vector<64x128xf32>
    %403 = arith.maximumf %401, %402 : vector<64x128xf32>
    %cst_119 = arith.constant dense<0.000000e+00> : vector<32x128xf32>
    %404 = tpu.matmul %4, %403, %cst_119 {dimension_numbers = #tpu.dot_dimension_numbers<[1], [0], [0], [1], [0, 0, 1, 1], [], []>} : vector<32x64xf32>, vector<64x128xf32>, vector<32x128xf32> -> vector<32x128xf32>
    %405 = vector.broadcast %7 : vector<32x1xf32> to vector<32x128xf32>
    %406 = arith.addf %404, %405 : vector<32x128xf32>
    %cst_120 = arith.constant 0.000000e+00 : f32
    %407 = vector.broadcast %cst_120 : f32 to vector<32x128xf32>
    %408 = arith.maximumf %406, %407 : vector<32x128xf32>
    %409 = vector.broadcast %8 : vector<32x1xf32> to vector<32x128xf32>
    %410 = arith.mulf %408, %409 : vector<32x128xf32>
    %cst_121 = arith.constant dense<0.000000e+00> : vector<128xf32>
    %411 = vector.multi_reduction <add>, %410, %cst_121 [0] : vector<32x128xf32> to vector<128xf32>
    %412 = vector.shape_cast %411 : vector<128xf32> to vector<1x128xf32>
    %413 = vector.extract_strided_slice %13 {offsets = [0, 23], sizes = [64, 1], strides = [1, 1]} : vector<64x25xf32> to vector<64x1xf32>
    %414 = vector.broadcast %413 : vector<64x1xf32> to vector<64x128xf32>
    %415 = arith.addf %9, %414 : vector<64x128xf32>
    %cst_122 = arith.constant 0.000000e+00 : f32
    %416 = vector.broadcast %cst_122 : f32 to vector<64x128xf32>
    %417 = arith.maximumf %415, %416 : vector<64x128xf32>
    %cst_123 = arith.constant dense<0.000000e+00> : vector<32x128xf32>
    %418 = tpu.matmul %4, %417, %cst_123 {dimension_numbers = #tpu.dot_dimension_numbers<[1], [0], [0], [1], [0, 0, 1, 1], [], []>} : vector<32x64xf32>, vector<64x128xf32>, vector<32x128xf32> -> vector<32x128xf32>
    %419 = vector.broadcast %7 : vector<32x1xf32> to vector<32x128xf32>
    %420 = arith.addf %418, %419 : vector<32x128xf32>
    %cst_124 = arith.constant 0.000000e+00 : f32
    %421 = vector.broadcast %cst_124 : f32 to vector<32x128xf32>
    %422 = arith.maximumf %420, %421 : vector<32x128xf32>
    %423 = vector.broadcast %8 : vector<32x1xf32> to vector<32x128xf32>
    %424 = arith.mulf %422, %423 : vector<32x128xf32>
    %cst_125 = arith.constant dense<0.000000e+00> : vector<128xf32>
    %425 = vector.multi_reduction <add>, %424, %cst_125 [0] : vector<32x128xf32> to vector<128xf32>
    %426 = vector.shape_cast %425 : vector<128xf32> to vector<1x128xf32>
    %427 = vector.extract_strided_slice %13 {offsets = [0, 24], sizes = [64, 1], strides = [1, 1]} : vector<64x25xf32> to vector<64x1xf32>
    %428 = vector.broadcast %427 : vector<64x1xf32> to vector<64x128xf32>
    %429 = arith.addf %9, %428 : vector<64x128xf32>
    %cst_126 = arith.constant 0.000000e+00 : f32
    %430 = vector.broadcast %cst_126 : f32 to vector<64x128xf32>
    %431 = arith.maximumf %429, %430 : vector<64x128xf32>
    %cst_127 = arith.constant dense<0.000000e+00> : vector<32x128xf32>
    %432 = tpu.matmul %4, %431, %cst_127 {dimension_numbers = #tpu.dot_dimension_numbers<[1], [0], [0], [1], [0, 0, 1, 1], [], []>} : vector<32x64xf32>, vector<64x128xf32>, vector<32x128xf32> -> vector<32x128xf32>
    %433 = vector.broadcast %7 : vector<32x1xf32> to vector<32x128xf32>
    %434 = arith.addf %432, %433 : vector<32x128xf32>
    %cst_128 = arith.constant 0.000000e+00 : f32
    %435 = vector.broadcast %cst_128 : f32 to vector<32x128xf32>
    %436 = arith.maximumf %434, %435 : vector<32x128xf32>
    %437 = vector.broadcast %8 : vector<32x1xf32> to vector<32x128xf32>
    %438 = arith.mulf %436, %437 : vector<32x128xf32>
    %cst_129 = arith.constant dense<0.000000e+00> : vector<128xf32>
    %439 = vector.multi_reduction <add>, %438, %cst_129 [0] : vector<32x128xf32> to vector<128xf32>
    %440 = vector.shape_cast %439 : vector<128xf32> to vector<1x128xf32>
    %441 = tpu.concatenate %384, %398, %412, %426, %440 in 0 : vector<1x128xf32>, vector<1x128xf32>, vector<1x128xf32>, vector<1x128xf32>, vector<1x128xf32> -> vector<5x128xf32>
    %cst_130 = arith.constant dense<0xFF800000> : vector<128xf32>
    %442 = vector.multi_reduction <maximumf>, %441, %cst_130 [0] : vector<5x128xf32> to vector<128xf32>
    %443 = vector.shape_cast %442 : vector<128xf32> to vector<1x128xf32>
    %444 = vector.broadcast %443 : vector<1x128xf32> to vector<5x128xf32>
    %445 = arith.subf %441, %444 : vector<5x128xf32>
    %446 = math.exp %445 : vector<5x128xf32>
    %cst_131 = arith.constant dense<0.000000e+00> : vector<128xf32>
    %447 = vector.multi_reduction <add>, %446, %cst_131 [0] : vector<5x128xf32> to vector<128xf32>
    %448 = vector.shape_cast %447 : vector<128xf32> to vector<1x128xf32>
    %449 = vector.broadcast %448 : vector<1x128xf32> to vector<5x128xf32>
    %450 = arith.divf %446, %449 : vector<5x128xf32>
    %451 = vector.extract_strided_slice %14 {offsets = [0, 20], sizes = [64, 5], strides = [1, 1]} : vector<64x25xf32> to vector<64x5xf32>
    %cst_132 = arith.constant dense<0.000000e+00> : vector<64x128xf32>
    %452 = tpu.matmul %451, %450, %cst_132 {dimension_numbers = #tpu.dot_dimension_numbers<[1], [0], [0], [1], [0, 0, 1, 1], [], []>} : vector<64x5xf32>, vector<5x128xf32>, vector<64x128xf32> -> vector<64x128xf32>
    %453 = arith.subf %0, %452 : vector<64x128xf32>
    %454 = arith.mulf %453, %453 : vector<64x128xf32>
    %cst_133 = arith.constant dense<0.000000e+00> : vector<128xf32>
    %455 = vector.multi_reduction <add>, %454, %cst_133 [0] : vector<64x128xf32> to vector<128xf32>
    %456 = vector.shape_cast %455 : vector<128xf32> to vector<1x128xf32>
    %457 = math.sqrt %456 : vector<1x128xf32>
    %cst_134 = arith.constant 0.000000e+00 : f32
    %458 = vector.broadcast %cst_134 : f32 to vector<1x128xf32>
    %459 = arith.subf %458, %457 : vector<1x128xf32>
    %460 = tpu.concatenate %103, %192, %281, %370, %459 in 0 : vector<1x128xf32>, vector<1x128xf32>, vector<1x128xf32>, vector<1x128xf32>, vector<1x128xf32> -> vector<5x128xf32>
    %c0_135 = arith.constant 0 : index
    %c0_136 = arith.constant 0 : index
    %461 = vector.load %arg4[%c0_135, %c0_136] : memref<5x128xf32, #tpu.memory_space<vmem>>, vector<5x128xf32>
    tpu.vector_store %arg4[%c0_135, %c0_136], %460 {strides = array<i32>} : memref<5x128xf32, #tpu.memory_space<vmem>>, vector<5x128xf32>,
    return
  }
  func.func @transform_0(%arg0: i32) -> (i32, i32) {
    %c0_i32 = arith.constant 0 : i32
    %c0_i32_0 = arith.constant 0 : i32
    return %c0_i32, %arg0 : i32, i32
  }
  func.func @transform_1(%arg0: i32) -> (i32, i32) {
    %c0_i32 = arith.constant 0 : i32
    %c0_i32_0 = arith.constant 0 : i32
    %c0_i32_1 = arith.constant 0 : i32
    return %c0_i32, %c0_i32_0 : i32, i32
  }
  func.func @transform_2(%arg0: i32) -> (i32, i32) {
    %c0_i32 = arith.constant 0 : i32
    %c0_i32_0 = arith.constant 0 : i32
    %c0_i32_1 = arith.constant 0 : i32
    return %c0_i32, %c0_i32_0 : i32, i32
  }
  func.func @transform_3(%arg0: i32) -> (i32, i32) {
    %c0_i32 = arith.constant 0 : i32
    %c0_i32_0 = arith.constant 0 : i32
    return %c0_i32, %arg0 : i32, i32
  }
}

</mosaic_0001>

<llo_original>
// kernel: prototypical_classifier_forward.1
$region0: #{prototypical_classifier_forward.1}
  #allocation0 [shape = 'u32[]', space=smem, size = 0x4, offset = 0x4, fixed_abs, tag = 'smem constant byte address 0x4 - core index']
  #allocation1 [shape = 'u32[144,128]{1,0:T(1,128)}', space=vmem, size = 0x12000, scoped, tag = 'internal scratch']
  %s0 = inlined_call_operand.vmem [shape: f32[64,512], index: 0, kind: input, shape index: {}]
  %s1 = inlined_call_operand.vmem [shape: f32[25,64], index: 1, kind: input, shape index: {}]
  %s2 = inlined_call_operand.vmem [shape: f32[200,64], index: 2, kind: input, shape index: {}]
  %s3 = inlined_call_operand.hbm [shape: f32[5,512], index: 3, kind: output, shape index: {}]
  %s4 = sld [smem:[#allocation0]]
  $region83: #{prototypical_classifier_forward.1} parent=0
    _
  %s6 = ssub.s32 1, %s4
  %s7 = scalar_select 0, %s6, %s4
  $region1: #{prototypical_classifier_forward.1} parent=0
    #allocation2 [shape = 'u8[65536]{0}', space=vmem, size = 0x10000, scoped, tag = 'input window, operand 0']
    #allocation3 [shape = 'u8[8192]{0}', space=vmem, size = 0x2000, scoped, tag = 'output window, operand 0']
    #allocation4 [shape = 's32[2]{0}', space=sflag, size = 0x8, scoped, tag = 'scoped memory for prototypical_classifier_forward.1']
    %8 = vsyncpa [#allocation4], 0
    %s9 = scalar_lea.sflag [#allocation4], 1
    %10 = vsyncpa %s9, 0
    loop: start=0, step=1, limit=6
    $region2: #{prototypical_classifier_forward.1} parent=1 // loop_pre_header
      _
    $region3: #{prototypical_classifier_forward.1} parent=1 // loop_header
      %s12 = sphi 0, %s16
      %p13 = scmp.ge.s32.totalorder %s12, 6
      %s22 = sphi 0, %s24
      %s25 = sphi 0, %s22
      %s26 = sphi 0, %s25
      %s42 = sphi 0, %s26
      %s46 = sphi 0, %s46
      %s48 = sphi 0, %s46
      %s49 = sphi 0, %s48
      %s63 = sphi 0, %s49
      %s67 = sphi 0, %s67
      %s69 = sphi 0, %s67
      %s70 = sphi 0, %s69
      %s84 = sphi 0, %s70
      %s90 = sphi 0, %s92
      %s93 = sphi 0, %s90
      %s94 = sphi 0, %s93
      %s110 = sphi 0, %s94
    $region4: #{prototypical_classifier_forward.1} parent=1 // loop_header_branch
      %15 = sbr.rel (%p13) target = $region8
    $region5: #{prototypical_classifier_forward.1} parent=1 // loop_body
      %s17 = ssub.s32 %s12, 1
      %s18 = ssub.s32 %s12, 2
      %s19 = sadd.s32 %s12, 1
      %s20 = ssub.s32 %s12, %s19
      %p21 = scmp.eq.s32.totalorder %s20, 0
      %s23 = sadd.s32 %s22, 1
      %s24 = scalar_select %p21, %s22, %s23
      %p27 = pneg %p21
      %p28 = scmp.eq.s32.totalorder %s12, 3
      %p29 = por %p27, %p28
      %p30 = scmp.ne.s32.totalorder %s22, %s25
      %p31 = scmp.eq.s32.totalorder %s12, 0
      %p32 = por %p30, %p31
      %p33 = scmp.ne.s32.totalorder %s22, %s25
      %p34 = scmp.eq.s32.totalorder %s17, 3
      %p35 = por %p33, %p34
      %p36 = scmp.ne.s32.totalorder %s25, %s26
      %p37 = scmp.eq.s32.totalorder %s17, 0
      %p38 = por %p36, %p37
      %p39 = scmp.ne.s32.totalorder %s25, %s26
      %p40 = scmp.eq.s32.totalorder %s18, 3
      %p41 = por %p39, %p40
      %p43 = scmp.ne.s32.totalorder %s26, %s42
      %p44 = scmp.eq.s32.totalorder %s18, 0
      %p45 = por %p43, %p44
      %s47 = sadd.s32 %s46, 1
      %p50 = scmp.eq.s32.totalorder %s12, 3
      %p51 = scmp.ne.s32.totalorder %s46, %s48
      %p52 = scmp.eq.s32.totalorder %s12, 0
      %p53 = por %p51, %p52
      %p54 = scmp.ne.s32.totalorder %s46, %s48
      %p55 = scmp.eq.s32.totalorder %s17, 3
      %p56 = por %p54, %p55
      %p57 = scmp.ne.s32.totalorder %s48, %s49
      %p58 = scmp.eq.s32.totalorder %s17, 0
      %p59 = por %p57, %p58
      %p60 = scmp.ne.s32.totalorder %s48, %s49
      %p61 = scmp.eq.s32.totalorder %s18, 3
      %p62 = por %p60, %p61
      %p64 = scmp.ne.s32.totalorder %s49, %s63
      %p65 = scmp.eq.s32.totalorder %s18, 0
      %p66 = por %p64, %p65
      %s68 = sadd.s32 %s67, 1
      %p71 = scmp.eq.s32.totalorder %s12, 3
      %p72 = scmp.ne.s32.totalorder %s67, %s69
      %p73 = scmp.eq.s32.totalorder %s12, 0
      %p74 = por %p72, %p73
      %p75 = scmp.ne.s32.totalorder %s67, %s69
      %p76 = scmp.eq.s32.totalorder %s17, 3
      %p77 = por %p75, %p76
      %p78 = scmp.ne.s32.totalorder %s69, %s70
      %p79 = scmp.eq.s32.totalorder %s17, 0
      %p80 = por %p78, %p79
      %p81 = scmp.ne.s32.totalorder %s69, %s70
      %p82 = scmp.eq.s32.totalorder %s18, 3
      %p83 = por %p81, %p82
      %p85 = scmp.ne.s32.totalorder %s70, %s84
      %p86 = scmp.eq.s32.totalorder %s18, 0
      %p87 = por %p85, %p86
      %s88 = ssub.s32 %s12, %s19
      %p89 = scmp.eq.s32.totalorder %s88, 0
      %s91 = sadd.s32 %s90, 1
      %s92 = scalar_select %p89, %s90, %s91
      %p95 = pneg %p89
      %p96 = scmp.eq.s32.totalorder %s12, 3
      %p97 = por %p95, %p96
      %p98 = scmp.ne.s32.totalorder %s90, %s93
      %p99 = scmp.eq.s32.totalorder %s12, 0
      %p100 = por %p98, %p99
      %p101 = scmp.ne.s32.totalorder %s90, %s93
      %p102 = scmp.eq.s32.totalorder %s17, 3
      %p103 = por %p101, %p102
      %p104 = scmp.ne.s32.totalorder %s93, %s94
      %p105 = scmp.eq.s32.totalorder %s17, 0
      %p106 = por %p104, %p105
      %p107 = scmp.ne.s32.totalorder %s93, %s94
      %p108 = scmp.eq.s32.totalorder %s18, 3
      %p109 = por %p107, %p108
      %p111 = scmp.ne.s32.totalorder %s94, %s110
      %p112 = scmp.eq.s32.totalorder %s18, 0
      %p113 = por %p111, %p112
      %p114 = scmp.le.s32.totalorder 1, %s12
      %p115 = scmp.lt.s32.totalorder %s12, 5
      %p116 = pnand %p114, %p115
      %p117 = pneg %p116
      // Predicated region
      $region9: #{prototypical_classifier_forward.1} parent=5 // pred_check
        _
      $region10: #{prototypical_classifier_forward.1} parent=5 // pred_check_branch
        %119 = sbr.rel (%p116) target = $region12
      $region11: #{prototypical_classifier_forward.1} parent=5 // pred_region
        %s120 = ssub.s32 %s12, 1
        // Predicated region
        $region13: #{prototypical_classifier_forward.1} parent=11 // pred_check
          %p121 = pneg %p59
        $region14: #{prototypical_classifier_forward.1} parent=11 // pred_check_branch
          %123 = sbr.rel (%p121) target = $region16
        $region15: #{prototypical_classifier_forward.1} parent=11 // pred_region
          _
        $region16: #{prototypical_classifier_forward.1} parent=11 // pred_fallthru
          _
        // Predicated region
        $region17: #{prototypical_classifier_forward.1} parent=11 // pred_check
          %p124 = pneg %p80
        $region18: #{prototypical_classifier_forward.1} parent=11 // pred_check_branch
          %126 = sbr.rel (%p124) target = $region20
        $region19: #{prototypical_classifier_forward.1} parent=11 // pred_region
          _
        $region20: #{prototypical_classifier_forward.1} parent=11 // pred_fallthru
          _
      $region12: #{prototypical_classifier_forward.1} parent=5 // pred_fallthru
        _
      %p127 = scmp.lt.s32.totalorder %s12, 4
      // Predicated region
      $region21: #{prototypical_classifier_forward.1} parent=5 // pred_check
        %p128 = pneg %p127
      $region22: #{prototypical_classifier_forward.1} parent=5 // pred_check_branch
        %130 = sbr.rel (%p128) target = $region24
      $region23: #{prototypical_classifier_forward.1} parent=5 // pred_region
        // Predicated region
        $region25: #{prototypical_classifier_forward.1} parent=23 // pred_check
          %p131 = pneg %p32
        $region26: #{prototypical_classifier_forward.1} parent=23 // pred_check_branch
          %133 = sbr.rel (%p131) target = $region28
        $region27: #{prototypical_classifier_forward.1} parent=23 // pred_region
          %s134 = sand.u32 %s22, 1
          %s135 = sand.u32 %s22, 1
          %s136 = smul.addr %s135, 64
          %s137 = scalar_lea.vmem [#allocation2], %s136
          %s138 = smul.addr %s12, 8
          %s139 = scalar_lea.vmem %s0, %s138
          // Predicated region
          $region29: #{prototypical_classifier_forward.1} parent=27 // pred_check
            _
          $region30: #{prototypical_classifier_forward.1} parent=27 // pred_check_branch
            %141 = sbr.rel (0) target = $region32
          $region31: #{prototypical_classifier_forward.1} parent=27 // pred_region
            // Predicated region
            $region33: #{prototypical_classifier_forward.1} parent=31 // pred_check
              _
            $region34: #{prototypical_classifier_forward.1} parent=31 // pred_check_branch
              %143 = sbr.rel (0) target = $region36
            $region35: #{prototypical_classifier_forward.1} parent=31 // pred_region
              // Predicated region
              $region48: #{prototypical_classifier_forward.1} parent=35 // pred_check
                _
              $region49: #{prototypical_classifier_forward.1} parent=35 // pred_check_branch
                %173 = sbr.rel (0) target = $region51
              $region50: #{prototypical_classifier_forward.1} parent=35 // pred_region
                loop: start=0, step=1, limit=1
                $region52: #{prototypical_classifier_forward.1} parent=50 // loop_pre_header
                  _
                $region53: #{prototypical_classifier_forward.1} parent=50 // loop_header
                  %s175 = sphi 0, %s179
                  %p176 = scmp.ge.s32.totalorder %s175, 1
                  %s180 = sphi %s139, %s139
                  %s181 = sphi %s137, %s137
                $region54: #{prototypical_classifier_forward.1} parent=50 // loop_header_branch
                  %178 = sbr.rel (%p176) target = $region58
                $region55: #{prototypical_classifier_forward.1} parent=50 // loop_body
                  %v182 = vld [vmem:[%s180] sm:$0xff]
                  %183 = vst [vmem:[%s181] sm:$0xff] %v182
                  %v184 = vld [vmem:[%s180 + $0x20] sm:$0xff]
                  %185 = vst [vmem:[%s181 + $0x8] sm:$0xff] %v184
                  %v186 = vld [vmem:[%s180 + $0x40] sm:$0xff]
                  %187 = vst [vmem:[%s181 + $0x10] sm:$0xff] %v186
                  %v188 = vld [vmem:[%s180 + $0x60] sm:$0xff]
                  %189 = vst [vmem:[%s181 + $0x18] sm:$0xff] %v188
                  %v190 = vld [vmem:[%s180 + $0x80] sm:$0xff]
                  %191 = vst [vmem:[%s181 + $0x20] sm:$0xff] %v190
                  %v192 = vld [vmem:[%s180 + $0xa0] sm:$0xff]
                  %193 = vst [vmem:[%s181 + $0x28] sm:$0xff] %v192
                  %v194 = vld [vmem:[%s180 + $0xc0] sm:$0xff]
                  %195 = vst [vmem:[%s181 + $0x30] sm:$0xff] %v194
                  %v196 = vld [vmem:[%s180 + $0xe0] sm:$0xff]
                  %197 = vst [vmem:[%s181 + $0x38] sm:$0xff] %v196
                $region56: #{prototypical_classifier_forward.1} parent=50 // loop_footer
                  %s179 = sadd.s32 1, %s175
                $region57: #{prototypical_classifier_forward.1} parent=50 // loop_footer_branch
                  %174 = sbr.rel target = $region53
                $region58: #{prototypical_classifier_forward.1} parent=50 // loop_exit
                  _
              $region51: #{prototypical_classifier_forward.1} parent=35 // pred_fallthru
                _
              // Predicated region
              $region59: #{prototypical_classifier_forward.1} parent=35 // pred_check
                _
              $region60: #{prototypical_classifier_forward.1} parent=35 // pred_check_branch
                %199 = sbr.rel target = $region62
              $region61: #{prototypical_classifier_forward.1} parent=35 // pred_region
                _
              $region62: #{prototypical_classifier_forward.1} parent=35 // pred_fallthru
                _
            $region36: #{prototypical_classifier_forward.1} parent=31 // pred_fallthru
              _
            // Predicated region
            $region37: #{prototypical_classifier_forward.1} parent=31 // pred_check
              _
            $region38: #{prototypical_classifier_forward.1} parent=31 // pred_check_branch
              %145 = sbr.rel target = $region40
            $region39: #{prototypical_classifier_forward.1} parent=31 // pred_region
              %s147 = ssub.s32 256, 1
              loop: start=0, step=1, limit=1
              $region41: #{prototypical_classifier_forward.1} parent=39 // loop_pre_header
                _
              $region42: #{prototypical_classifier_forward.1} parent=39 // loop_header
                %s149 = sphi 0, %s153
                %p150 = scmp.ge.s32.totalorder %s149, 1
                %s154 = sphi %s139, %s139
                %s155 = sphi %s137, %s137
              $region43: #{prototypical_classifier_forward.1} parent=39 // loop_header_branch
                %152 = sbr.rel (%p150) target = $region47
              $region44: #{prototypical_classifier_forward.1} parent=39 // loop_body
                %v156 = vld [vmem:[%s154] sm:%s147]
                %157 = vst [vmem:[%s155] sm:%s147] %v156
                %v158 = vld [vmem:[%s154 + $0x20] sm:%s147]
                %159 = vst [vmem:[%s155 + $0x8] sm:%s147] %v158
                %v160 = vld [vmem:[%s154 + $0x40] sm:%s147]
                %161 = vst [vmem:[%s155 + $0x10] sm:%s147] %v160
                %v162 = vld [vmem:[%s154 + $0x60] sm:%s147]
                %163 = vst [vmem:[%s155 + $0x18] sm:%s147] %v162
                %v164 = vld [vmem:[%s154 + $0x80] sm:%s147]
                %165 = vst [vmem:[%s155 + $0x20] sm:%s147] %v164
                %v166 = vld [vmem:[%s154 + $0xa0] sm:%s147]
                %167 = vst [vmem:[%s155 + $0x28] sm:%s147] %v166
                %v168 = vld [vmem:[%s154 + $0xc0] sm:%s147]
                %169 = vst [vmem:[%s155 + $0x30] sm:%s147] %v168
                %v170 = vld [vmem:[%s154 + $0xe0] sm:%s147]
                %171 = vst [vmem:[%s155 + $0x38] sm:%s147] %v170
              $region45: #{prototypical_classifier_forward.1} parent=39 // loop_footer
                %s153 = sadd.s32 1, %s149
              $region46: #{prototypical_classifier_forward.1} parent=39 // loop_footer_branch
                %148 = sbr.rel target = $region42
              $region47: #{prototypical_classifier_forward.1} parent=39 // loop_exit
                _
            $region40: #{prototypical_classifier_forward.1} parent=31 // pred_fallthru
              _
          $region32: #{prototypical_classifier_forward.1} parent=27 // pred_fallthru
            _
          %200 = vnop
        $region28: #{prototypical_classifier_forward.1} parent=23 // pred_fallthru
          _
      $region24: #{prototypical_classifier_forward.1} parent=5 // pred_fallthru
        _
      %p201 = scmp.le.s32.totalorder 1, %s12
      %p202 = scmp.lt.s32.totalorder %s12, 5
      %p203 = pnand %p201, %p202
      %p204 = pneg %p203
      // Predicated region
      $region63: #{prototypical_classifier_forward.1} parent=5 // pred_check
        _
      $region64: #{prototypical_classifier_forward.1} parent=5 // pred_check_branch
        %206 = sbr.rel (%p203) target = $region66
      $region65: #{prototypical_classifier_forward.1} parent=5 // pred_region
        %s207 = ssub.s32 %s12, 1
        %s208 = sand.u32 %s25, 1
        %s209 = sand.u32 %s25, 1
        %s210 = smul.addr %s209, 64
        %s211 = scalar_lea.vmem [#allocation2], %s210
        // Predicated region
        $region67: #{prototypical_classifier_forward.1} parent=65 // pred_check
          %p212 = pneg %p38
        $region68: #{prototypical_classifier_forward.1} parent=65 // pred_check_branch
          %214 = sbr.rel (%p212) target = $region70
        $region69: #{prototypical_classifier_forward.1} parent=65 // pred_region
          _
        $region70: #{prototypical_classifier_forward.1} parent=65 // pred_fallthru
          _
        %s215 = sand.u32 %s25, 1
        %s216 = sand.u32 %s25, 1
        %s217 = smul.addr %s216, 64
        %s218 = scalar_lea.vmem [#allocation2], %s217
        %p219 = pneg %p38
        %p220 = pneg %p35
        %p221 = pneg %p59
        %p222 = pneg %p56
        %p223 = pneg %p80
        %p224 = pneg %p77
        %p225 = pneg %p106
        %p226 = pneg %p103
        %s227 = sand.u32 %s93, 1
        %s228 = scalar_lea.sflag [#allocation4], %s227
        %s229 = sand.u32 %s93, 1
        %s230 = smul.addr %s229, 8
        %s231 = scalar_lea.vmem [#allocation3], %s230
        %v232 = vld [vmem:[%s211] sm:$0xff]
        %v233 = vld [vmem:[%s211 + $0x8] sm:$0xff]
        %v234 = vld [vmem:[%s211 + $0x10] sm:$0xff]
        %v235 = vld [vmem:[%s211 + $0x18] sm:$0xff]
        %v236 = vld [vmem:[%s211 + $0x20] sm:$0xff]
        %v237 = vld [vmem:[%s211 + $0x28] sm:$0xff]
        %v238 = vld [vmem:[%s211 + $0x30] sm:$0xff]
        %v239 = vld [vmem:[%s211 + $0x38] sm:$0xff]
        %v240 = vld [vmem:[%s1] sm:$0xff]
        %v241 = vld [vmem:[%s1 + $0x8] sm:$0xff]
        %v242 = vld [vmem:[%s1 + $0x10] sm:$0xff]
        %v243 = vld [vmem:[%s1 + $0x18] sm:$0x1]
        %v244 = vld [vmem:[%s2] sm:$0xff]
        %v245 = vld [vmem:[%s2 + $0x8] sm:$0xff]
        %v246 = vld [vmem:[%s2 + $0x10] sm:$0xff]
        %v247 = vld [vmem:[%s2 + $0x18] sm:$0xff]
        %v248 = vld [vmem:[%s2 + $0x20] sm:$0xff]
        %v249 = vld [vmem:[%s2 + $0x28] sm:$0xff]
        %v250 = vld [vmem:[%s2 + $0x30] sm:$0xff]
        %v251 = vld [vmem:[%s2 + $0x38] sm:$0xff]
        %v252 = vld [vmem:[%s2 + $0x40] sm:$0xff]
        %v253 = vld [vmem:[%s2 + $0x48] sm:$0xff]
        %v254 = vld [vmem:[%s2 + $0x50] sm:$0xff]
        %v255 = vld [vmem:[%s2 + $0x58] sm:$0xff]
        %v256 = vld [vmem:[%s2 + $0x60] sm:$0xff]
        %v257 = vld [vmem:[%s2 + $0x68] sm:$0xff]
        %v258 = vld [vmem:[%s2 + $0x70] sm:$0xff]
        %v259 = vld [vmem:[%s2 + $0x78] sm:$0xff]
        %v260 = vld [vmem:[%s2 + $0x80] sm:$0xff]
        %v261 = vld [vmem:[%s2 + $0x88] sm:$0xff]
        %v262 = vld [vmem:[%s2 + $0x90] sm:$0xff]
        %v263 = vld [vmem:[%s2 + $0x98] sm:$0xff]
        %v264 = vld [vmem:[%s2 + $0xa0] sm:$0x1]
        %v265 = vld [vmem:[%s2 + $0xa8] sm:$0xff]
        %v266 = vld [vmem:[%s2 + $0xb0] sm:$0xff]
        %v267 = vld [vmem:[%s2 + $0xb8] sm:$0xff]
        %v268 = vld [vmem:[%s2 + $0xc0] sm:$0xff]
        %vm269 = vcmask 523264
        %v271 = vsel %vm269, %v244, 0
        %v274 = vsel %vm269, %v245, 0
        %v277 = vsel %vm269, %v246, 0
        %v280 = vsel %vm269, %v247, 0
        %v283 = vsel %vm269, %v248, 0
        %v286 = vsel %vm269, %v249, 0
        %v289 = vsel %vm269, %v250, 0
        %v292 = vsel %vm269, %v251, 0
        %294 = vmatprep.subr.mxu0 0.0
        %295 = vmatpush1.msra.mxu0 0.0
        %296 = vmatprep.subr.mxu0 0.0
        %297 = vmatpush1.msra.mxu0 0.0
        %298 = vmatprep.subr.mxu0 0.0
        %299 = vmatpush1.msra.mxu0 0.0
        %300 = vmatprep.subr.mxu0 0.0
        %301 = vmatpush1.msra.mxu0 0.0
        %302 = vmatprep.subr.mxu0 0.0
        %303 = vmatpush1.msra.mxu0 0.0
        %304 = vmatprep.subr.mxu0 0.0
        %305 = vmatpush1.msra.mxu0 0.0
        %306 = vmatprep.subr.mxu0 0.0
        %307 = vmatpush1.msra.mxu0 0.0
        %308 = vmatprep.subr.mxu0 0.0
        %309 = vmatpush1.msra.mxu0 0.0
        %310 = vmatprep.subr.mxu0 0.0
        %311 = vmatpush1.msra.mxu0 %v239
        %312 = vmatprep.subr.mxu0 0.0
        %313 = vmatpush1.msra.mxu0 %v238
        %314 = vmatprep.subr.mxu0 0.0
        %315 = vmatpush1.msra.mxu0 %v237
        %316 = vmatprep.subr.mxu0 0.0
        %317 = vmatpush1.msra.mxu0 %v236
        %318 = vmatprep.subr.mxu0 0.0
        %319 = vmatpush1.msra.mxu0 %v235
        %320 = vmatprep.subr.mxu0 0.0
        %321 = vmatpush1.msra.mxu0 %v234
        %322 = vmatprep.subr.mxu0 0.0
        %323 = vmatpush1.msra.mxu0 %v233
        %324 = vmatprep.subr.mxu0 0.0
        %325 = vmatpush1.msra.mxu0 %v232
        %326 = vmatprep.subr.mxu0 0.0
        %327 = vmatpush2.msra.mxu0 0.0
        %328 = vmatprep.subr.mxu0 0.0
        %329 = vmatpush2.msra.mxu0 0.0
        %330 = vmatprep.subr.mxu0 0.0
        %331 = vmatpush2.msra.mxu0 0.0
        %332 = vmatprep.subr.mxu0 0.0
        %333 = vmatpush2.msra.mxu0 0.0
        %334 = vmatprep.subr.mxu0 0.0
        %335 = vmatpush2.msra.mxu0 0.0
        %336 = vmatprep.subr.mxu0 0.0
        %337 = vmatpush2.msra.mxu0 0.0
        %338 = vmatprep.subr.mxu0 0.0
        %339 = vmatpush2.msra.mxu0 0.0
        %340 = vmatprep.subr.mxu0 0.0
        %341 = vmatpush2.msra.mxu0 0.0
        %342 = vmatprep.subr.mxu0 0.0
        %343 = vmatpush2.msra.mxu0 0.0
        %344 = vmatprep.subr.mxu0 0.0
        %345 = vmatpush2.msra.mxu0 0.0
        %346 = vmatprep.subr.mxu0 0.0
        %347 = vmatpush2.msra.mxu0 0.0
        %348 = vmatprep.subr.mxu0 0.0
        %349 = vmatpush2.msra.mxu0 0.0
        %350 = vmatprep.subr.mxu0 0.0
        %351 = vmatpush2.msra.mxu0 0.0
        %352 = vmatprep.subr.mxu0 0.0
        %353 = vmatpush2.msra.mxu0 0.0
        %354 = vmatprep.subr.mxu0 0.0
        %355 = vmatpush2.msra.mxu0 0.0
        %356 = vmatprep.subr.mxu0 0.0
        %357 = vmatpush2.msra.mxu0 0.0
        %358 = vmatprep.mubr.f32.mxu0 0.0
        %359 = vmatmul.mubr.f32.gmra.mxu0 %v271
        %v360 = vpop.f32.mrf.mxu0
        %v361 = vadd.f32 0.0, %v360
        %v362 = vpop.f32.mrf.mxu0
        %363 = vmatprep.mubr.f32.mxu0 0.0
        %364 = vmatmul.mubr.f32.gmra.mxu0 %v274
        %v365 = vpop.f32.mrf.mxu0
        %v366 = vadd.f32 0.0, %v365
        %v367 = vpop.f32.mrf.mxu0
        %368 = vmatprep.mubr.f32.mxu0 0.0
        %369 = vmatmul.mubr.f32.gmra.mxu0 %v277
        %v370 = vpop.f32.mrf.mxu0
        %v371 = vadd.f32 0.0, %v370
        %v372 = vpop.f32.mrf.mxu0
        %373 = vmatprep.mubr.f32.mxu0 0.0
        %374 = vmatmul.mubr.f32.gmra.mxu0 %v280
        %v375 = vpop.f32.mrf.mxu0
        %v376 = vadd.f32 0.0, %v375
        %v377 = vpop.f32.mrf.mxu0
        %378 = vmatprep.mubr.f32.mxu0 0.0
        %379 = vmatmul.mubr.f32.gmra.mxu0 %v283
        %v380 = vpop.f32.mrf.mxu0
        %v381 = vadd.f32 0.0, %v380
        %v382 = vpop.f32.mrf.mxu0
        %383 = vmatprep.mubr.f32.mxu0 0.0
        %384 = vmatmul.mubr.f32.gmra.mxu0 %v286
        %v385 = vpop.f32.mrf.mxu0
        %v386 = vadd.f32 0.0, %v385
        %v387 = vpop.f32.mrf.mxu0
        %388 = vmatprep.mubr.f32.mxu0 0.0
        %389 = vmatmul.mubr.f32.gmra.mxu0 %v289
        %v390 = vpop.f32.mrf.mxu0
        %v391 = vadd.f32 0.0, %v390
        %v392 = vpop.f32.mrf.mxu0
        %393 = vmatprep.mubr.f32.mxu0 0.0
        %394 = vmatmul.mubr.f32.gmra.mxu0 %v292
        %v395 = vpop.f32.mrf.mxu0
        %v396 = vadd.f32 0.0, %v395
        %v397 = vpop.f32.mrf.mxu0
        %398 = vdwg.mxu0
        %v399 = vlaneseq
        %v400 = vshrl.u32 %v399, 7
        %v401 = vsub.s32 0, %v400
        %v402 = vrot.slane %v264, %v401
        %v404 = vsel %vm269, %v240, 0
        %v407 = vsel %vm269, %v241, 0
        %v410 = vsel %vm269, %v242, 0
        %v413 = vsel %vm269, %v243, 0
        %415 = vmatprep.subr.mxu0 0.0
        %416 = vmatpush1.msra.mxu0 0.0
        %417 = vmatprep.subr.mxu0 0.0
        %418 = vmatpush1.msra.mxu0 0.0
        %419 = vmatprep.subr.mxu0 0.0
        %420 = vmatpush1.msra.mxu0 0.0
        %421 = vmatprep.subr.mxu0 0.0
        %422 = vmatpush1.msra.mxu0 0.0
        %423 = vmatprep.subr.mxu0 0.0
        %424 = vmatpush1.msra.mxu0 0.0
        %425 = vmatprep.subr.mxu0 0.0
        %426 = vmatpush1.msra.mxu0 0.0
        %427 = vmatprep.subr.mxu0 0.0
        %428 = vmatpush1.msra.mxu0 0.0
        %429 = vmatprep.subr.mxu0 0.0
        %430 = vmatpush1.msra.mxu0 0.0
        %431 = vmatprep.subr.mxu0 0.0
        %432 = vmatpush1.msra.mxu0 %v259
        %433 = vmatprep.subr.mxu0 0.0
        %434 = vmatpush1.msra.mxu0 %v258
        %435 = vmatprep.subr.mxu0 0.0
        %436 = vmatpush1.msra.mxu0 %v257
        %437 = vmatprep.subr.mxu0 0.0
        %438 = vmatpush1.msra.mxu0 %v256
        %439 = vmatprep.subr.mxu0 0.0
        %440 = vmatpush1.msra.mxu0 %v255
        %441 = vmatprep.subr.mxu0 0.0
        %442 = vmatpush1.msra.mxu0 %v254
        %443 = vmatprep.subr.mxu0 0.0
        %444 = vmatpush1.msra.mxu0 %v253
        %445 = vmatprep.subr.mxu0 0.0
        %446 = vmatpush1.msra.mxu0 %v252
        %447 = vmatprep.subr.mxu0 0.0
        %448 = vmatpush2.msra.mxu0 0.0
        %449 = vmatprep.subr.mxu0 0.0
        %450 = vmatpush2.msra.mxu0 0.0
        %451 = vmatprep.subr.mxu0 0.0
        %452 = vmatpush2.msra.mxu0 0.0
        %453 = vmatprep.subr.mxu0 0.0
        %454 = vmatpush2.msra.mxu0 0.0
        %455 = vmatprep.subr.mxu0 0.0
        %456 = vmatpush2.msra.mxu0 0.0
        %457 = vmatprep.subr.mxu0 0.0
        %458 = vmatpush2.msra.mxu0 0.0
        %459 = vmatprep.subr.mxu0 0.0
        %460 = vmatpush2.msra.mxu0 0.0
        %461 = vmatprep.subr.mxu0 0.0
        %462 = vmatpush2.msra.mxu0 0.0
        %463 = vmatprep.subr.mxu0 0.0
        %464 = vmatpush2.msra.mxu0 0.0
        %465 = vmatprep.subr.mxu0 0.0
        %466 = vmatpush2.msra.mxu0 0.0
        %467 = vmatprep.subr.mxu0 0.0
        %468 = vmatpush2.msra.mxu0 0.0
        %469 = vmatprep.subr.mxu0 0.0
        %470 = vmatpush2.msra.mxu0 0.0
        %471 = vmatprep.subr.mxu0 0.0
        %472 = vmatpush2.msra.mxu0 0.0
        %473 = vmatprep.subr.mxu0 0.0
        %474 = vmatpush2.msra.mxu0 0.0
        %475 = vmatprep.subr.mxu0 0.0
        %476 = vmatpush2.msra.mxu0 0.0
        %477 = vmatprep.subr.mxu0 0.0
        %478 = vmatpush2.msra.mxu0 0.0
        %479 = vmatprep.mubr.f32.mxu0 0.0
        %480 = vmatmul.mubr.f32.gmra.mxu0 %v404
        %v481 = vpop.f32.mrf.mxu0
        %v482 = vadd.f32 %v402, %v481
        %v483 = vpop.f32.mrf.mxu0
        %484 = vmatprep.mubr.f32.mxu0 0.0
        %485 = vmatmul.mubr.f32.gmra.mxu0 %v407
        %v486 = vpop.f32.mrf.mxu0
        %v487 = vadd.f32 %v402, %v486
        %v488 = vpop.f32.mrf.mxu0
        %489 = vmatprep.mubr.f32.mxu0 0.0
        %490 = vmatmul.mubr.f32.gmra.mxu0 %v410
        %v491 = vpop.f32.mrf.mxu0
        %v492 = vadd.f32 %v402, %v491
        %v493 = vpop.f32.mrf.mxu0
        %494 = vmatprep.mubr.f32.mxu0 0.0
        %495 = vmatmul.mubr.f32.gmra.mxu0 %v413
        %v496 = vpop.f32.mrf.mxu0
        %v497 = vadd.f32 %v402, %v496
        %v498 = vpop.f32.mrf.mxu0
        %499 = vdwg.mxu0
        %500 = vxpose.xlu0.b32.start [1/16] %v482, 128
        %501 = vxpose.xlu0.b32.cont [2/16] %v487, 128
        %502 = vxpose.xlu0.b32.cont [3/16] %v492, 128
        %503 = vxpose.xlu0.b32.cont [4/16] %v497, 128
        %504 = vxpose.xlu0.b32.cont [5/16] 0.0, 128
        %505 = vxpose.xlu0.b32.cont [6/16] 0.0, 128
        %506 = vxpose.xlu0.b32.cont [7/16] 0.0, 128
        %507 = vxpose.xlu0.b32.cont [8/16] 0.0, 128
        %508 = vxpose.xlu0.b32.cont [9/16] 0.0, 128
        %509 = vxpose.xlu0.b32.cont [10/16] 0.0, 128
        %510 = vxpose.xlu0.b32.cont [11/16] 0.0, 128
        %511 = vxpose.xlu0.b32.cont [12/16] 0.0, 128
        %512 = vxpose.xlu0.b32.cont [13/16] 0.0, 128
        %513 = vxpose.xlu0.b32.cont [14/16] 0.0, 128
        %514 = vxpose.xlu0.b32.cont [15/16] 0.0, 128
        %515 = vxpose.xlu0.b32.end [16/16] 0.0, 128
        %v516 = vpop.trf.xlu0
        %v517 = vpop.trf.xlu0
        %v518 = vpop.trf.xlu0
        %v519 = vpop.trf.xlu0
        %v520 = vpop.trf.xlu0
        %v521 = vpop.trf.xlu0
        %v522 = vpop.trf.xlu0
        %v523 = vpop.trf.xlu0
        %v524 = vpop.trf.xlu0
        %v525 = vpop.trf.xlu0
        %v526 = vpop.trf.xlu0
        %v527 = vpop.trf.xlu0
        %v528 = vpop.trf.xlu0
        %v529 = vpop.trf.xlu0
        %v530 = vpop.trf.xlu0
        %v531 = vpop.trf.xlu0
        %532 = vxpose.xlu0.b32.start [1/16] %v240, 128
        %533 = vxpose.xlu0.b32.cont [2/16] %v241, 128
        %534 = vxpose.xlu0.b32.cont [3/16] %v242, 128
        %535 = vxpose.xlu0.b32.cont [4/16] %v243, 128
        %536 = vxpose.xlu0.b32.cont [5/16] 0.0, 128
        %537 = vxpose.xlu0.b32.cont [6/16] 0.0, 128
        %538 = vxpose.xlu0.b32.cont [7/16] 0.0, 128
        %539 = vxpose.xlu0.b32.cont [8/16] 0.0, 128
        %540 = vxpose.xlu0.b32.cont [9/16] 0.0, 128
        %541 = vxpose.xlu0.b32.cont [10/16] 0.0, 128
        %542 = vxpose.xlu0.b32.cont [11/16] 0.0, 128
        %543 = vxpose.xlu0.b32.cont [12/16] 0.0, 128
        %544 = vxpose.xlu0.b32.cont [13/16] 0.0, 128
        %545 = vxpose.xlu0.b32.cont [14/16] 0.0, 128
        %546 = vxpose.xlu0.b32.cont [15/16] 0.0, 128
        %547 = vxpose.xlu0.b32.end [16/16] 0.0, 128
        %v548 = vpop.trf.xlu0
        %v549 = vpop.trf.xlu0
        %v550 = vpop.trf.xlu0
        %v551 = vpop.trf.xlu0
        %v552 = vpop.trf.xlu0
        %v553 = vpop.trf.xlu0
        %v554 = vpop.trf.xlu0
        %v555 = vpop.trf.xlu0
        %v556 = vpop.trf.xlu0
        %v557 = vpop.trf.xlu0
        %v558 = vpop.trf.xlu0
        %v559 = vpop.trf.xlu0
        %v560 = vpop.trf.xlu0
        %v561 = vpop.trf.xlu0
        %v562 = vpop.trf.xlu0
        %v563 = vpop.trf.xlu0
        %565 = vset.pattern.permute.xlu0 0
        %566 = vperm.xlu0 %565, %v516
        %v567 = vpop.permute.xlu0 %566
        %570 = vset.pattern.permute.xlu0 0
        %571 = vperm.xlu0 %570, %v517
        %v572 = vpop.permute.xlu0 %571
        %575 = vset.pattern.permute.xlu0 0
        %576 = vperm.xlu0 %575, %v518
        %v577 = vpop.permute.xlu0 %576
        %580 = vset.pattern.permute.xlu0 0
        %581 = vperm.xlu0 %580, %v519
        %v582 = vpop.permute.xlu0 %581
        %585 = vset.pattern.permute.xlu0 0
        %586 = vperm.xlu0 %585, %v520
        %v587 = vpop.permute.xlu0 %586
        %590 = vset.pattern.permute.xlu0 0
        %591 = vperm.xlu0 %590, %v521
        %v592 = vpop.permute.xlu0 %591
        %595 = vset.pattern.permute.xlu0 0
        %596 = vperm.xlu0 %595, %v522
        %v597 = vpop.permute.xlu0 %596
        %600 = vset.pattern.permute.xlu0 0
        %601 = vperm.xlu0 %600, %v523
        %v602 = vpop.permute.xlu0 %601
        %v604 = vadd.f32 %v361, %v567
        %v605 = vadd.f32 %v366, %v572
        %v606 = vadd.f32 %v371, %v577
        %v607 = vadd.f32 %v376, %v582
        %v608 = vadd.f32 %v381, %v587
        %v609 = vadd.f32 %v386, %v592
        %v610 = vadd.f32 %v391, %v597
        %v611 = vadd.f32 %v396, %v602
        %v612 = vmax.f32 %v604, 0.0
        %v613 = vmax.f32 %v605, 0.0
        %v614 = vmax.f32 %v606, 0.0
        %v615 = vmax.f32 %v607, 0.0
        %v616 = vmax.f32 %v608, 0.0
        %v617 = vmax.f32 %v609, 0.0
        %v618 = vmax.f32 %v610, 0.0
        %v619 = vmax.f32 %v611, 0.0
        %621 = vset.pattern.permute.xlu0 0
        %622 = vperm.xlu0 %621, %v265
        %v623 = vpop.permute.xlu0 %622
        %626 = vset.pattern.permute.xlu0 0
        %627 = vperm.xlu0 %626, %v266
        %v628 = vpop.permute.xlu0 %627
        %631 = vset.pattern.permute.xlu0 0
        %632 = vperm.xlu0 %631, %v267
        %v633 = vpop.permute.xlu0 %632
        %636 = vset.pattern.permute.xlu0 0
        %637 = vperm.xlu0 %636, %v268
        %v638 = vpop.permute.xlu0 %637
        %v641 = vsel %vm269, %v260, 0
        %v644 = vsel %vm269, %v261, 0
        %v647 = vsel %vm269, %v262, 0
        %v650 = vsel %vm269, %v263, 0
        %652 = vmatprep.subr.mxu0 0.0
        %653 = vmatpush1.msra.mxu0 0.0
        %654 = vmatprep.subr.mxu0 0.0
        %655 = vmatpush1.msra.mxu0 0.0
        %656 = vmatprep.subr.mxu0 0.0
        %657 = vmatpush1.msra.mxu0 0.0
        %658 = vmatprep.subr.mxu0 0.0
        %659 = vmatpush1.msra.mxu0 0.0
        %660 = vmatprep.subr.mxu0 0.0
        %661 = vmatpush1.msra.mxu0 0.0
        %662 = vmatprep.subr.mxu0 0.0
        %663 = vmatpush1.msra.mxu0 0.0
        %664 = vmatprep.subr.mxu0 0.0
        %665 = vmatpush1.msra.mxu0 0.0
        %666 = vmatprep.subr.mxu0 0.0
        %667 = vmatpush1.msra.mxu0 0.0
        %668 = vmatprep.subr.mxu0 0.0
        %669 = vmatpush1.msra.mxu0 %v619
        %670 = vmatprep.subr.mxu0 0.0
        %671 = vmatpush1.msra.mxu0 %v618
        %672 = vmatprep.subr.mxu0 0.0
        %673 = vmatpush1.msra.mxu0 %v617
        %674 = vmatprep.subr.mxu0 0.0
        %675 = vmatpush1.msra.mxu0 %v616
        %676 = vmatprep.subr.mxu0 0.0
        %677 = vmatpush1.msra.mxu0 %v615
        %678 = vmatprep.subr.mxu0 0.0
        %679 = vmatpush1.msra.mxu0 %v614
        %680 = vmatprep.subr.mxu0 0.0
        %681 = vmatpush1.msra.mxu0 %v613
        %682 = vmatprep.subr.mxu0 0.0
        %683 = vmatpush1.msra.mxu0 %v612
        %684 = vmatprep.subr.mxu0 0.0
        %685 = vmatpush2.msra.mxu0 0.0
        %686 = vmatprep.subr.mxu0 0.0
        %687 = vmatpush2.msra.mxu0 0.0
        %688 = vmatprep.subr.mxu0 0.0
        %689 = vmatpush2.msra.mxu0 0.0
        %690 = vmatprep.subr.mxu0 0.0
        %691 = vmatpush2.msra.mxu0 0.0
        %692 = vmatprep.subr.mxu0 0.0
        %693 = vmatpush2.msra.mxu0 0.0
        %694 = vmatprep.subr.mxu0 0.0
        %695 = vmatpush2.msra.mxu0 0.0
        %696 = vmatprep.subr.mxu0 0.0
        %697 = vmatpush2.msra.mxu0 0.0
        %698 = vmatprep.subr.mxu0 0.0
        %699 = vmatpush2.msra.mxu0 0.0
        %700 = vmatprep.subr.mxu0 0.0
        %701 = vmatpush2.msra.mxu0 0.0
        %702 = vmatprep.subr.mxu0 0.0
        %703 = vmatpush2.msra.mxu0 0.0
        %704 = vmatprep.subr.mxu0 0.0
        %705 = vmatpush2.msra.mxu0 0.0
        %706 = vmatprep.subr.mxu0 0.0
        %707 = vmatpush2.msra.mxu0 0.0
        %708 = vmatprep.subr.mxu0 0.0
        %709 = vmatpush2.msra.mxu0 0.0
        %710 = vmatprep.subr.mxu0 0.0
        %711 = vmatpush2.msra.mxu0 0.0
        %712 = vmatprep.subr.mxu0 0.0
        %713 = vmatpush2.msra.mxu0 0.0
        %714 = vmatprep.subr.mxu0 0.0
        %715 = vmatpush2.msra.mxu0 0.0
        %716 = vmatprep.mubr.f32.mxu0 0.0
        %717 = vmatmul.mubr.f32.gmra.mxu0 %v641
        %v718 = vpop.f32.mrf.mxu0
        %v719 = vadd.f32 %v623, %v718
        %v720 = vpop.f32.mrf.mxu0
        %721 = vmatprep.mubr.f32.mxu0 0.0
        %722 = vmatmul.mubr.f32.gmra.mxu0 %v644
        %v723 = vpop.f32.mrf.mxu0
        %v724 = vadd.f32 %v628, %v723
        %v725 = vpop.f32.mrf.mxu0
        %726 = vmatprep.mubr.f32.mxu0 0.0
        %727 = vmatmul.mubr.f32.gmra.mxu0 %v647
        %v728 = vpop.f32.mrf.mxu0
        %v729 = vadd.f32 %v633, %v728
        %v730 = vpop.f32.mrf.mxu0
        %731 = vmatprep.mubr.f32.mxu0 0.0
        %732 = vmatmul.mubr.f32.gmra.mxu0 %v650
        %v733 = vpop.f32.mrf.mxu0
        %v734 = vadd.f32 %v638, %v733
        %v735 = vpop.f32.mrf.mxu0
        %736 = vdwg.mxu0
        %v737 = vmax.f32 %v719, 0.0
        %v738 = vmax.f32 %v724, 0.0
        %v739 = vmax.f32 %v729, 0.0
        %v740 = vmax.f32 %v734, 0.0
        %741 = vset.pattern.permute.xlu0 1
        %742 = vperm.xlu0 %741, %v265
        %v743 = vpop.permute.xlu0 %742
        %745 = vset.pattern.permute.xlu0 1
        %746 = vperm.xlu0 %745, %v266
        %v747 = vpop.permute.xlu0 %746
        %749 = vset.pattern.permute.xlu0 1
        %750 = vperm.xlu0 %749, %v267
        %v751 = vpop.permute.xlu0 %750
        %753 = vset.pattern.permute.xlu0 1
        %754 = vperm.xlu0 %753, %v268
        %v755 = vpop.permute.xlu0 %754
        %v757 = vmul.f32 %v737, %v743
        %v758 = vmul.f32 %v738, %v747
        %v759 = vmul.f32 %v739, %v751
        %v760 = vmul.f32 %v740, %v755
        %v761 = vadd.f32 %v757, %v758
        %v762 = vadd.f32 %v761, %v759
        %v763 = vadd.f32 %v762, %v760
        %v764 = vrot.slane %v763, 4
        %v765 = vadd.f32 %v763, %v764
        %v766 = vrot.slane %v765, 2
        %v767 = vadd.f32 %v765, %v766
        %v768 = vrot.slane %v767, 1
        %v769 = vadd.f32 %v767, %v768
        %770 = vset.pattern.permute.xlu0 1
        %771 = vperm.xlu0 %770, %v516
        %v772 = vpop.permute.xlu0 %771
        %774 = vset.pattern.permute.xlu0 1
        %775 = vperm.xlu0 %774, %v517
        %v776 = vpop.permute.xlu0 %775
        %778 = vset.pattern.permute.xlu0 1
        %779 = vperm.xlu0 %778, %v518
        %v780 = vpop.permute.xlu0 %779
        %782 = vset.pattern.permute.xlu0 1
        %783 = vperm.xlu0 %782, %v519
        %v784 = vpop.permute.xlu0 %783
        %786 = vset.pattern.permute.xlu0 1
        %787 = vperm.xlu0 %786, %v520
        %v788 = vpop.permute.xlu0 %787
        %790 = vset.pattern.permute.xlu0 1
        %791 = vperm.xlu0 %790, %v521
        %v792 = vpop.permute.xlu0 %791
        %794 = vset.pattern.permute.xlu0 1
        %795 = vperm.xlu0 %794, %v522
        %v796 = vpop.permute.xlu0 %795
        %798 = vset.pattern.permute.xlu0 1
        %799 = vperm.xlu0 %798, %v523
        %v800 = vpop.permute.xlu0 %799
        %v802 = vadd.f32 %v361, %v772
        %v803 = vadd.f32 %v366, %v776
        %v804 = vadd.f32 %v371, %v780
        %v805 = vadd.f32 %v376, %v784
        %v806 = vadd.f32 %v381, %v788
        %v807 = vadd.f32 %v386, %v792
        %v808 = vadd.f32 %v391, %v796
        %v809 = vadd.f32 %v396, %v800
        %v810 = vmax.f32 %v802, 0.0
        %v811 = vmax.f32 %v803, 0.0
        %v812 = vmax.f32 %v804, 0.0
        %v813 = vmax.f32 %v805, 0.0
        %v814 = vmax.f32 %v806, 0.0
        %v815 = vmax.f32 %v807, 0.0
        %v816 = vmax.f32 %v808, 0.0
        %v817 = vmax.f32 %v809, 0.0
        %818 = vmatprep.subr.mxu0 0.0
        %819 = vmatpush1.msra.mxu0 0.0
        %820 = vmatprep.subr.mxu0 0.0
        %821 = vmatpush1.msra.mxu0 0.0
        %822 = vmatprep.subr.mxu0 0.0
        %823 = vmatpush1.msra.mxu0 0.0
        %824 = vmatprep.subr.mxu0 0.0
        %825 = vmatpush1.msra.mxu0 0.0
        %826 = vmatprep.subr.mxu0 0.0
        %827 = vmatpush1.msra.mxu0 0.0
        %828 = vmatprep.subr.mxu0 0.0
        %829 = vmatpush1.msra.mxu0 0.0
        %830 = vmatprep.subr.mxu0 0.0
        %831 = vmatpush1.msra.mxu0 0.0
        %832 = vmatprep.subr.mxu0 0.0
        %833 = vmatpush1.msra.mxu0 0.0
        %834 = vmatprep.subr.mxu0 0.0
        %835 = vmatpush1.msra.mxu0 %v817
        %836 = vmatprep.subr.mxu0 0.0
        %837 = vmatpush1.msra.mxu0 %v816
        %838 = vmatprep.subr.mxu0 0.0
        %839 = vmatpush1.msra.mxu0 %v815
        %840 = vmatprep.subr.mxu0 0.0
        %841 = vmatpush1.msra.mxu0 %v814
        %842 = vmatprep.subr.mxu0 0.0
        %843 = vmatpush1.msra.mxu0 %v813
        %844 = vmatprep.subr.mxu0 0.0
        %845 = vmatpush1.msra.mxu0 %v812
        %846 = vmatprep.subr.mxu0 0.0
        %847 = vmatpush1.msra.mxu0 %v811
        %848 = vmatprep.subr.mxu0 0.0
        %849 = vmatpush1.msra.mxu0 %v810
        %850 = vmatprep.subr.mxu0 0.0
        %851 = vmatpush2.msra.mxu0 0.0
        %852 = vmatprep.subr.mxu0 0.0
        %853 = vmatpush2.msra.mxu0 0.0
        %854 = vmatprep.subr.mxu0 0.0
        %855 = vmatpush2.msra.mxu0 0.0
        %856 = vmatprep.subr.mxu0 0.0
        %857 = vmatpush2.msra.mxu0 0.0
        %858 = vmatprep.subr.mxu0 0.0
        %859 = vmatpush2.msra.mxu0 0.0
        %860 = vmatprep.subr.mxu0 0.0
        %861 = vmatpush2.msra.mxu0 0.0
        %862 = vmatprep.subr.mxu0 0.0
        %863 = vmatpush2.msra.mxu0 0.0
        %864 = vmatprep.subr.mxu0 0.0
        %865 = vmatpush2.msra.mxu0 0.0
        %866 = vmatprep.subr.mxu0 0.0
        %867 = vmatpush2.msra.mxu0 0.0
        %868 = vmatprep.subr.mxu0 0.0
        %869 = vmatpush2.msra.mxu0 0.0
        %870 = vmatprep.subr.mxu0 0.0
        %871 = vmatpush2.msra.mxu0 0.0
        %872 = vmatprep.subr.mxu0 0.0
        %873 = vmatpush2.msra.mxu0 0.0
        %874 = vmatprep.subr.mxu0 0.0
        %875 = vmatpush2.msra.mxu0 0.0
        %876 = vmatprep.subr.mxu0 0.0
        %877 = vmatpush2.msra.mxu0 0.0
        %878 = vmatprep.subr.mxu0 0.0
        %879 = vmatpush2.msra.mxu0 0.0
        %880 = vmatprep.subr.mxu0 0.0
        %881 = vmatpush2.msra.mxu0 0.0
        %882 = vmatprep.mubr.f32.mxu0 0.0
        %883 = vmatmul.mubr.f32.gmra.mxu0 %v641
        %v884 = vpop.f32.mrf.mxu0
        %v885 = vadd.f32 %v623, %v884
        %v886 = vpop.f32.mrf.mxu0
        %887 = vmatprep.mubr.f32.mxu0 0.0
        %888 = vmatmul.mubr.f32.gmra.mxu0 %v644
        %v889 = vpop.f32.mrf.mxu0
        %v890 = vadd.f32 %v628, %v889
        %v891 = vpop.f32.mrf.mxu0
        %892 = vmatprep.mubr.f32.mxu0 0.0
        %893 = vmatmul.mubr.f32.gmra.mxu0 %v647
        %v894 = vpop.f32.mrf.mxu0
        %v895 = vadd.f32 %v633, %v894
        %v896 = vpop.f32.mrf.mxu0
        %897 = vmatprep.mubr.f32.mxu0 0.0
        %898 = vmatmul.mubr.f32.gmra.mxu0 %v650
        %v899 = vpop.f32.mrf.mxu0
        %v900 = vadd.f32 %v638, %v899
        %v901 = vpop.f32.mrf.mxu0
        %902 = vdwg.mxu0
        %v903 = vmax.f32 %v885, 0.0
        %v904 = vmax.f32 %v890, 0.0
        %v905 = vmax.f32 %v895, 0.0
        %v906 = vmax.f32 %v900, 0.0
        %v907 = vmul.f32 %v903, %v743
        %v908 = vmul.f32 %v904, %v747
        %v909 = vmul.f32 %v905, %v751
        %v910 = vmul.f32 %v906, %v755
        %v911 = vadd.f32 %v907, %v908
        %v912 = vadd.f32 %v911, %v909
        %v913 = vadd.f32 %v912, %v910
        %v914 = vrot.slane %v913, 4
        %v915 = vadd.f32 %v913, %v914
        %v916 = vrot.slane %v915, 2
        %v917 = vadd.f32 %v915, %v916
        %v918 = vrot.slane %v917, 1
        %v919 = vadd.f32 %v917, %v918
        %920 = vset.pattern.permute.xlu0 2
        %921 = vperm.xlu0 %920, %v516
        %v922 = vpop.permute.xlu0 %921
        %924 = vset.pattern.permute.xlu0 2
        %925 = vperm.xlu0 %924, %v517
        %v926 = vpop.permute.xlu0 %925
        %928 = vset.pattern.permute.xlu0 2
        %929 = vperm.xlu0 %928, %v518
        %v930 = vpop.permute.xlu0 %929
        %932 = vset.pattern.permute.xlu0 2
        %933 = vperm.xlu0 %932, %v519
        %v934 = vpop.permute.xlu0 %933
        %936 = vset.pattern.permute.xlu0 2
        %937 = vperm.xlu0 %936, %v520
        %v938 = vpop.permute.xlu0 %937
        %940 = vset.pattern.permute.xlu0 2
        %941 = vperm.xlu0 %940, %v521
        %v942 = vpop.permute.xlu0 %941
        %944 = vset.pattern.permute.xlu0 2
        %945 = vperm.xlu0 %944, %v522
        %v946 = vpop.permute.xlu0 %945
        %948 = vset.pattern.permute.xlu0 2
        %949 = vperm.xlu0 %948, %v523
        %v950 = vpop.permute.xlu0 %949
        %v952 = vadd.f32 %v361, %v922
        %v953 = vadd.f32 %v366, %v926
        %v954 = vadd.f32 %v371, %v930
        %v955 = vadd.f32 %v376, %v934
        %v956 = vadd.f32 %v381, %v938
        %v957 = vadd.f32 %v386, %v942
        %v958 = vadd.f32 %v391, %v946
        %v959 = vadd.f32 %v396, %v950
        %v960 = vmax.f32 %v952, 0.0
        %v961 = vmax.f32 %v953, 0.0
        %v962 = vmax.f32 %v954, 0.0
        %v963 = vmax.f32 %v955, 0.0
        %v964 = vmax.f32 %v956, 0.0
        %v965 = vmax.f32 %v957, 0.0
        %v966 = vmax.f32 %v958, 0.0
        %v967 = vmax.f32 %v959, 0.0
        %968 = vmatprep.subr.mxu0 0.0
        %969 = vmatpush1.msra.mxu0 0.0
        %970 = vmatprep.subr.mxu0 0.0
        %971 = vmatpush1.msra.mxu0 0.0
        %972 = vmatprep.subr.mxu0 0.0
        %973 = vmatpush1.msra.mxu0 0.0
        %974 = vmatprep.subr.mxu0 0.0
        %975 = vmatpush1.msra.mxu0 0.0
        %976 = vmatprep.subr.mxu0 0.0
        %977 = vmatpush1.msra.mxu0 0.0
        %978 = vmatprep.subr.mxu0 0.0
        %979 = vmatpush1.msra.mxu0 0.0
        %980 = vmatprep.subr.mxu0 0.0
        %981 = vmatpush1.msra.mxu0 0.0
        %982 = vmatprep.subr.mxu0 0.0
        %983 = vmatpush1.msra.mxu0 0.0
        %984 = vmatprep.subr.mxu0 0.0
        %985 = vmatpush1.msra.mxu0 %v967
        %986 = vmatprep.subr.mxu0 0.0
        %987 = vmatpush1.msra.mxu0 %v966
        %988 = vmatprep.subr.mxu0 0.0
        %989 = vmatpush1.msra.mxu0 %v965
        %990 = vmatprep.subr.mxu0 0.0
        %991 = vmatpush1.msra.mxu0 %v964
        %992 = vmatprep.subr.mxu0 0.0
        %993 = vmatpush1.msra.mxu0 %v963
        %994 = vmatprep.subr.mxu0 0.0
        %995 = vmatpush1.msra.mxu0 %v962
        %996 = vmatprep.subr.mxu0 0.0
        %997 = vmatpush1.msra.mxu0 %v961
        %998 = vmatprep.subr.mxu0 0.0
        %999 = vmatpush1.msra.mxu0 %v960
        %1000 = vmatprep.subr.mxu0 0.0
        %1001 = vmatpush2.msra.mxu0 0.0
        %1002 = vmatprep.subr.mxu0 0.0
        %1003 = vmatpush2.msra.mxu0 0.0
        %1004 = vmatprep.subr.mxu0 0.0
        %1005 = vmatpush2.msra.mxu0 0.0
        %1006 = vmatprep.subr.mxu0 0.0
        %1007 = vmatpush2.msra.mxu0 0.0
        %1008 = vmatprep.subr.mxu0 0.0
        %1009 = vmatpush2.msra.mxu0 0.0
        %1010 = vmatprep.subr.mxu0 0.0
        %1011 = vmatpush2.msra.mxu0 0.0
        %1012 = vmatprep.subr.mxu0 0.0
        %1013 = vmatpush2.msra.mxu0 0.0
        %1014 = vmatprep.subr.mxu0 0.0
        %1015 = vmatpush2.msra.mxu0 0.0
        %1016 = vmatprep.subr.mxu0 0.0
        %1017 = vmatpush2.msra.mxu0 0.0
        %1018 = vmatprep.subr.mxu0 0.0
        %1019 = vmatpush2.msra.mxu0 0.0
        %1020 = vmatprep.subr.mxu0 0.0
        %1021 = vmatpush2.msra.mxu0 0.0
        %1022 = vmatprep.subr.mxu0 0.0
        %1023 = vmatpush2.msra.mxu0 0.0
        %1024 = vmatprep.subr.mxu0 0.0
        %1025 = vmatpush2.msra.mxu0 0.0
        %1026 = vmatprep.subr.mxu0 0.0
        %1027 = vmatpush2.msra.mxu0 0.0
        %1028 = vmatprep.subr.mxu0 0.0
        %1029 = vmatpush2.msra.mxu0 0.0
        %1030 = vmatprep.subr.mxu0 0.0
        %1031 = vmatpush2.msra.mxu0 0.0
        %1032 = vmatprep.mubr.f32.mxu0 0.0
        %1033 = vmatmul.mubr.f32.gmra.mxu0 %v641
        %v1034 = vpop.f32.mrf.mxu0
        %v1035 = vadd.f32 %v623, %v1034
        %v1036 = vpop.f32.mrf.mxu0
        %1037 = vmatprep.mubr.f32.mxu0 0.0
        %1038 = vmatmul.mubr.f32.gmra.mxu0 %v644
        %v1039 = vpop.f32.mrf.mxu0
        %v1040 = vadd.f32 %v628, %v1039
        %v1041 = vpop.f32.mrf.mxu0
        %1042 = vmatprep.mubr.f32.mxu0 0.0
        %1043 = vmatmul.mubr.f32.gmra.mxu0 %v647
        %v1044 = vpop.f32.mrf.mxu0
        %v1045 = vadd.f32 %v633, %v1044
        %v1046 = vpop.f32.mrf.mxu0
        %1047 = vmatprep.mubr.f32.mxu0 0.0
        %1048 = vmatmul.mubr.f32.gmra.mxu0 %v650
        %v1049 = vpop.f32.mrf.mxu0
        %v1050 = vadd.f32 %v638, %v1049
        %v1051 = vpop.f32.mrf.mxu0
        %1052 = vdwg.mxu0
        %v1053 = vmax.f32 %v1035, 0.0
        %v1054 = vmax.f32 %v1040, 0.0
        %v1055 = vmax.f32 %v1045, 0.0
        %v1056 = vmax.f32 %v1050, 0.0
        %v1057 = vmul.f32 %v1053, %v743
        %v1058 = vmul.f32 %v1054, %v747
        %v1059 = vmul.f32 %v1055, %v751
        %v1060 = vmul.f32 %v1056, %v755
        %v1061 = vadd.f32 %v1057, %v1058
        %v1062 = vadd.f32 %v1061, %v1059
        %v1063 = vadd.f32 %v1062, %v1060
        %v1064 = vrot.slane %v1063, 4
        %v1065 = vadd.f32 %v1063, %v1064
        %v1066 = vrot.slane %v1065, 2
        %v1067 = vadd.f32 %v1065, %v1066
        %v1068 = vrot.slane %v1067, 1
        %v1069 = vadd.f32 %v1067, %v1068
        %1070 = vset.pattern.permute.xlu0 3
        %1071 = vperm.xlu0 %1070, %v516
        %v1072 = vpop.permute.xlu0 %1071
        %1074 = vset.pattern.permute.xlu0 3
        %1075 = vperm.xlu0 %1074, %v517
        %v1076 = vpop.permute.xlu0 %1075
        %1078 = vset.pattern.permute.xlu0 3
        %1079 = vperm.xlu0 %1078, %v518
        %v1080 = vpop.permute.xlu0 %1079
        %1082 = vset.pattern.permute.xlu0 3
        %1083 = vperm.xlu0 %1082, %v519
        %v1084 = vpop.permute.xlu0 %1083
        %1086 = vset.pattern.permute.xlu0 3
        %1087 = vperm.xlu0 %1086, %v520
        %v1088 = vpop.permute.xlu0 %1087
        %1090 = vset.pattern.permute.xlu0 3
        %1091 = vperm.xlu0 %1090, %v521
        %v1092 = vpop.permute.xlu0 %1091
        %1094 = vset.pattern.permute.xlu0 3
        %1095 = vperm.xlu0 %1094, %v522
        %v1096 = vpop.permute.xlu0 %1095
        %1098 = vset.pattern.permute.xlu0 3
        %1099 = vperm.xlu0 %1098, %v523
        %v1100 = vpop.permute.xlu0 %1099
        %v1102 = vadd.f32 %v361, %v1072
        %v1103 = vadd.f32 %v366, %v1076
        %v1104 = vadd.f32 %v371, %v1080
        %v1105 = vadd.f32 %v376, %v1084
        %v1106 = vadd.f32 %v381, %v1088
        %v1107 = vadd.f32 %v386, %v1092
        %v1108 = vadd.f32 %v391, %v1096
        %v1109 = vadd.f32 %v396, %v1100
        %v1110 = vmax.f32 %v1102, 0.0
        %v1111 = vmax.f32 %v1103, 0.0
        %v1112 = vmax.f32 %v1104, 0.0
        %v1113 = vmax.f32 %v1105, 0.0
        %v1114 = vmax.f32 %v1106, 0.0
        %v1115 = vmax.f32 %v1107, 0.0
        %v1116 = vmax.f32 %v1108, 0.0
        %v1117 = vmax.f32 %v1109, 0.0
        %1118 = vmatprep.subr.mxu0 0.0
        %1119 = vmatpush1.msra.mxu0 0.0
        %1120 = vmatprep.subr.mxu0 0.0
        %1121 = vmatpush1.msra.mxu0 0.0
        %1122 = vmatprep.subr.mxu0 0.0
        %1123 = vmatpush1.msra.mxu0 0.0
        %1124 = vmatprep.subr.mxu0 0.0
        %1125 = vmatpush1.msra.mxu0 0.0
        %1126 = vmatprep.subr.mxu0 0.0
        %1127 = vmatpush1.msra.mxu0 0.0
        %1128 = vmatprep.subr.mxu0 0.0
        %1129 = vmatpush1.msra.mxu0 0.0
        %1130 = vmatprep.subr.mxu0 0.0
        %1131 = vmatpush1.msra.mxu0 0.0
        %1132 = vmatprep.subr.mxu0 0.0
        %1133 = vmatpush1.msra.mxu0 0.0
        %1134 = vmatprep.subr.mxu0 0.0
        %1135 = vmatpush1.msra.mxu0 %v1117
        %1136 = vmatprep.subr.mxu0 0.0
        %1137 = vmatpush1.msra.mxu0 %v1116
        %1138 = vmatprep.subr.mxu0 0.0
        %1139 = vmatpush1.msra.mxu0 %v1115
        %1140 = vmatprep.subr.mxu0 0.0
        %1141 = vmatpush1.msra.mxu0 %v1114
        %1142 = vmatprep.subr.mxu0 0.0
        %1143 = vmatpush1.msra.mxu0 %v1113
        %1144 = vmatprep.subr.mxu0 0.0
        %1145 = vmatpush1.msra.mxu0 %v1112
        %1146 = vmatprep.subr.mxu0 0.0
        %1147 = vmatpush1.msra.mxu0 %v1111
        %1148 = vmatprep.subr.mxu0 0.0
        %1149 = vmatpush1.msra.mxu0 %v1110
        %1150 = vmatprep.subr.mxu0 0.0
        %1151 = vmatpush2.msra.mxu0 0.0
        %1152 = vmatprep.subr.mxu0 0.0
        %1153 = vmatpush2.msra.mxu0 0.0
        %1154 = vmatprep.subr.mxu0 0.0
        %1155 = vmatpush2.msra.mxu0 0.0
        %1156 = vmatprep.subr.mxu0 0.0
        %1157 = vmatpush2.msra.mxu0 0.0
        %1158 = vmatprep.subr.mxu0 0.0
        %1159 = vmatpush2.msra.mxu0 0.0
        %1160 = vmatprep.subr.mxu0 0.0
        %1161 = vmatpush2.msra.mxu0 0.0
        %1162 = vmatprep.subr.mxu0 0.0
        %1163 = vmatpush2.msra.mxu0 0.0
        %1164 = vmatprep.subr.mxu0 0.0
        %1165 = vmatpush2.msra.mxu0 0.0
        %1166 = vmatprep.subr.mxu0 0.0
        %1167 = vmatpush2.msra.mxu0 0.0
        %1168 = vmatprep.subr.mxu0 0.0
        %1169 = vmatpush2.msra.mxu0 0.0
        %1170 = vmatprep.subr.mxu0 0.0
        %1171 = vmatpush2.msra.mxu0 0.0
        %1172 = vmatprep.subr.mxu0 0.0
        %1173 = vmatpush2.msra.mxu0 0.0
        %1174 = vmatprep.subr.mxu0 0.0
        %1175 = vmatpush2.msra.mxu0 0.0
        %1176 = vmatprep.subr.mxu0 0.0
        %1177 = vmatpush2.msra.mxu0 0.0
        %1178 = vmatprep.subr.mxu0 0.0
        %1179 = vmatpush2.msra.mxu0 0.0
        %1180 = vmatprep.subr.mxu0 0.0
        %1181 = vmatpush2.msra.mxu0 0.0
        %1182 = vmatprep.mubr.f32.mxu0 0.0
        %1183 = vmatmul.mubr.f32.gmra.mxu0 %v641
        %v1184 = vpop.f32.mrf.mxu0
        %v1185 = vadd.f32 %v623, %v1184
        %v1186 = vpop.f32.mrf.mxu0
        %1187 = vmatprep.mubr.f32.mxu0 0.0
        %1188 = vmatmul.mubr.f32.gmra.mxu0 %v644
        %v1189 = vpop.f32.mrf.mxu0
        %v1190 = vadd.f32 %v628, %v1189
        %v1191 = vpop.f32.mrf.mxu0
        %1192 = vmatprep.mubr.f32.mxu0 0.0
        %1193 = vmatmul.mubr.f32.gmra.mxu0 %v647
        %v1194 = vpop.f32.mrf.mxu0
        %v1195 = vadd.f32 %v633, %v1194
        %v1196 = vpop.f32.mrf.mxu0
        %1197 = vmatprep.mubr.f32.mxu0 0.0
        %1198 = vmatmul.mubr.f32.gmra.mxu0 %v650
        %v1199 = vpop.f32.mrf.mxu0
        %v1200 = vadd.f32 %v638, %v1199
        %v1201 = vpop.f32.mrf.mxu0
        %1202 = vdwg.mxu0
        %v1203 = vmax.f32 %v1185, 0.0
        %v1204 = vmax.f32 %v1190, 0.0
        %v1205 = vmax.f32 %v1195, 0.0
        %v1206 = vmax.f32 %v1200, 0.0
        %v1207 = vmul.f32 %v1203, %v743
        %v1208 = vmul.f32 %v1204, %v747
        %v1209 = vmul.f32 %v1205, %v751
        %v1210 = vmul.f32 %v1206, %v755
        %v1211 = vadd.f32 %v1207, %v1208
        %v1212 = vadd.f32 %v1211, %v1209
        %v1213 = vadd.f32 %v1212, %v1210
        %v1214 = vrot.slane %v1213, 4
        %v1215 = vadd.f32 %v1213, %v1214
        %v1216 = vrot.slane %v1215, 2
        %v1217 = vadd.f32 %v1215, %v1216
        %v1218 = vrot.slane %v1217, 1
        %v1219 = vadd.f32 %v1217, %v1218
        %1220 = vset.pattern.permute.xlu0 4
        %1221 = vperm.xlu0 %1220, %v516
        %v1222 = vpop.permute.xlu0 %1221
        %1224 = vset.pattern.permute.xlu0 4
        %1225 = vperm.xlu0 %1224, %v517
        %v1226 = vpop.permute.xlu0 %1225
        %1228 = vset.pattern.permute.xlu0 4
        %1229 = vperm.xlu0 %1228, %v518
        %v1230 = vpop.permute.xlu0 %1229
        %1232 = vset.pattern.permute.xlu0 4
        %1233 = vperm.xlu0 %1232, %v519
        %v1234 = vpop.permute.xlu0 %1233
        %1236 = vset.pattern.permute.xlu0 4
        %1237 = vperm.xlu0 %1236, %v520
        %v1238 = vpop.permute.xlu0 %1237
        %1240 = vset.pattern.permute.xlu0 4
        %1241 = vperm.xlu0 %1240, %v521
        %v1242 = vpop.permute.xlu0 %1241
        %1244 = vset.pattern.permute.xlu0 4
        %1245 = vperm.xlu0 %1244, %v522
        %v1246 = vpop.permute.xlu0 %1245
        %1248 = vset.pattern.permute.xlu0 4
        %1249 = vperm.xlu0 %1248, %v523
        %v1250 = vpop.permute.xlu0 %1249
        %v1252 = vadd.f32 %v361, %v1222
        %v1253 = vadd.f32 %v366, %v1226
        %v1254 = vadd.f32 %v371, %v1230
        %v1255 = vadd.f32 %v376, %v1234
        %v1256 = vadd.f32 %v381, %v1238
        %v1257 = vadd.f32 %v386, %v1242
        %v1258 = vadd.f32 %v391, %v1246
        %v1259 = vadd.f32 %v396, %v1250
        %v1260 = vmax.f32 %v1252, 0.0
        %v1261 = vmax.f32 %v1253, 0.0
        %v1262 = vmax.f32 %v1254, 0.0
        %v1263 = vmax.f32 %v1255, 0.0
        %v1264 = vmax.f32 %v1256, 0.0
        %v1265 = vmax.f32 %v1257, 0.0
        %v1266 = vmax.f32 %v1258, 0.0
        %v1267 = vmax.f32 %v1259, 0.0
        %1268 = vmatprep.subr.mxu0 0.0
        %1269 = vmatpush1.msra.mxu0 0.0
        %1270 = vmatprep.subr.mxu0 0.0
        %1271 = vmatpush1.msra.mxu0 0.0
        %1272 = vmatprep.subr.mxu0 0.0
        %1273 = vmatpush1.msra.mxu0 0.0
        %1274 = vmatprep.subr.mxu0 0.0
        %1275 = vmatpush1.msra.mxu0 0.0
        %1276 = vmatprep.subr.mxu0 0.0
        %1277 = vmatpush1.msra.mxu0 0.0
        %1278 = vmatprep.subr.mxu0 0.0
        %1279 = vmatpush1.msra.mxu0 0.0
        %1280 = vmatprep.subr.mxu0 0.0
        %1281 = vmatpush1.msra.mxu0 0.0
        %1282 = vmatprep.subr.mxu0 0.0
        %1283 = vmatpush1.msra.mxu0 0.0
        %1284 = vmatprep.subr.mxu0 0.0
        %1285 = vmatpush1.msra.mxu0 %v1267
        %1286 = vmatprep.subr.mxu0 0.0
        %1287 = vmatpush1.msra.mxu0 %v1266
        %1288 = vmatprep.subr.mxu0 0.0
        %1289 = vmatpush1.msra.mxu0 %v1265
        %1290 = vmatprep.subr.mxu0 0.0
        %1291 = vmatpush1.msra.mxu0 %v1264
        %1292 = vmatprep.subr.mxu0 0.0
        %1293 = vmatpush1.msra.mxu0 %v1263
        %1294 = vmatprep.subr.mxu0 0.0
        %1295 = vmatpush1.msra.mxu0 %v1262
        %1296 = vmatprep.subr.mxu0 0.0
        %1297 = vmatpush1.msra.mxu0 %v1261
        %1298 = vmatprep.subr.mxu0 0.0
        %1299 = vmatpush1.msra.mxu0 %v1260
        %1300 = vmatprep.subr.mxu0 0.0
        %1301 = vmatpush2.msra.mxu0 0.0
        %1302 = vmatprep.subr.mxu0 0.0
        %1303 = vmatpush2.msra.mxu0 0.0
        %1304 = vmatprep.subr.mxu0 0.0
        %1305 = vmatpush2.msra.mxu0 0.0
        %1306 = vmatprep.subr.mxu0 0.0
        %1307 = vmatpush2.msra.mxu0 0.0
        %1308 = vmatprep.subr.mxu0 0.0
        %1309 = vmatpush2.msra.mxu0 0.0
        %1310 = vmatprep.subr.mxu0 0.0
        %1311 = vmatpush2.msra.mxu0 0.0
        %1312 = vmatprep.subr.mxu0 0.0
        %1313 = vmatpush2.msra.mxu0 0.0
        %1314 = vmatprep.subr.mxu0 0.0
        %1315 = vmatpush2.msra.mxu0 0.0
        %1316 = vmatprep.subr.mxu0 0.0
        %1317 = vmatpush2.msra.mxu0 0.0
        %1318 = vmatprep.subr.mxu0 0.0
        %1319 = vmatpush2.msra.mxu0 0.0
        %1320 = vmatprep.subr.mxu0 0.0
        %1321 = vmatpush2.msra.mxu0 0.0
        %1322 = vmatprep.subr.mxu0 0.0
        %1323 = vmatpush2.msra.mxu0 0.0
        %1324 = vmatprep.subr.mxu0 0.0
        %1325 = vmatpush2.msra.mxu0 0.0
        %1326 = vmatprep.subr.mxu0 0.0
        %1327 = vmatpush2.msra.mxu0 0.0
        %1328 = vmatprep.subr.mxu0 0.0
        %1329 = vmatpush2.msra.mxu0 0.0
        %1330 = vmatprep.subr.mxu0 0.0
        %1331 = vmatpush2.msra.mxu0 0.0
        %1332 = vmatprep.mubr.f32.mxu0 0.0
        %1333 = vmatmul.mubr.f32.gmra.mxu0 %v641
        %v1334 = vpop.f32.mrf.mxu0
        %v1335 = vadd.f32 %v623, %v1334
        %v1336 = vpop.f32.mrf.mxu0
        %1337 = vmatprep.mubr.f32.mxu0 0.0
        %1338 = vmatmul.mubr.f32.gmra.mxu0 %v644
        %v1339 = vpop.f32.mrf.mxu0
        %v1340 = vadd.f32 %v628, %v1339
        %v1341 = vpop.f32.mrf.mxu0
        %1342 = vmatprep.mubr.f32.mxu0 0.0
        %1343 = vmatmul.mubr.f32.gmra.mxu0 %v647
        %v1344 = vpop.f32.mrf.mxu0
        %v1345 = vadd.f32 %v633, %v1344
        %v1346 = vpop.f32.mrf.mxu0
        %1347 = vmatprep.mubr.f32.mxu0 0.0
        %1348 = vmatmul.mubr.f32.gmra.mxu0 %v650
        %v1349 = vpop.f32.mrf.mxu0
        %v1350 = vadd.f32 %v638, %v1349
        %v1351 = vpop.f32.mrf.mxu0
        %1352 = vdwg.mxu0
        %v1353 = vmax.f32 %v1335, 0.0
        %v1354 = vmax.f32 %v1340, 0.0
        %v1355 = vmax.f32 %v1345, 0.0
        %v1356 = vmax.f32 %v1350, 0.0
        %v1357 = vmul.f32 %v1353, %v743
        %v1358 = vmul.f32 %v1354, %v747
        %v1359 = vmul.f32 %v1355, %v751
        %v1360 = vmul.f32 %v1356, %v755
        %v1361 = vadd.f32 %v1357, %v1358
        %v1362 = vadd.f32 %v1361, %v1359
        %v1363 = vadd.f32 %v1362, %v1360
        %v1364 = vrot.slane %v1363, 4
        %v1365 = vadd.f32 %v1363, %v1364
        %v1366 = vrot.slane %v1365, 2
        %v1367 = vadd.f32 %v1365, %v1366
        %v1368 = vrot.slane %v1367, 1
        %v1369 = vadd.f32 %v1367, %v1368
        %vm1370 = vcmask 1040384
        %v1371 = vsel %vm1370, %v769, %v919
        %vm1372 = vcmask 1041408
        %v1373 = vsel %vm1372, %v1371, %v1069
        %vm1374 = vcmask 1042432
        %v1375 = vsel %vm1374, %v1373, %v1219
        %vm1376 = vcmask 1043456
        %v1377 = vsel %vm1376, %v1375, %v1369
        %vm1378 = vcmask 1044480
        %v1379 = vsel %vm1378, %v1377, -inf
        %v1380 = vrot.slane %v1379, 4
        %v1381 = vmax.f32 %v1379, %v1380
        %v1382 = vrot.slane %v1381, 2
        %v1383 = vmax.f32 %v1381, %v1382
        %v1384 = vrot.slane %v1383, 1
        %v1385 = vmax.f32 %v1383, %v1384
        %v1386 = vsub.f32 %v1377, %v1385
        %v1387 = vmul.f32 %v1386, 1.442695
        %v1388 = vpow.pop %v1387
        %v1389 = vsel %vm1378, %v1388, 0.0
        %v1390 = vrot.slane %v1389, 4
        %v1391 = vadd.f32 %v1389, %v1390
        %v1392 = vrot.slane %v1391, 2
        %v1393 = vadd.f32 %v1391, %v1392
        %v1394 = vrot.slane %v1393, 1
        %v1395 = vadd.f32 %v1393, %v1394
        %v1396 = vrcp.pop %v1395
        %v1397 = vmul.f32 %v1388, %v1396
        %vm1398 = vcmask 39936
        %v1400 = vsel %vm1398, %v548, 0
        %v1403 = vsel %vm1398, %v549, 0
        %v1406 = vsel %vm1398, %v550, 0
        %v1409 = vsel %vm1398, %v551, 0
        %v1412 = vsel %vm1398, %v552, 0
        %v1415 = vsel %vm1398, %v553, 0
        %v1418 = vsel %vm1398, %v554, 0
        %v1421 = vsel %vm1398, %v555, 0
        %v1424 = vsel %vm1378, %v1397, 0
        %1426 = vmatprep.subr.mxu0 0.0
        %1427 = vmatpush1.msra.mxu0 0.0
        %1428 = vmatprep.subr.mxu0 0.0
        %1429 = vmatpush1.msra.mxu0 0.0
        %1430 = vmatprep.subr.mxu0 0.0
        %1431 = vmatpush1.msra.mxu0 0.0
        %1432 = vmatprep.subr.mxu0 0.0
        %1433 = vmatpush1.msra.mxu0 0.0
        %1434 = vmatprep.subr.mxu0 0.0
        %1435 = vmatpush1.msra.mxu0 0.0
        %1436 = vmatprep.subr.mxu0 0.0
        %1437 = vmatpush1.msra.mxu0 0.0
        %1438 = vmatprep.subr.mxu0 0.0
        %1439 = vmatpush1.msra.mxu0 0.0
        %1440 = vmatprep.subr.mxu0 0.0
        %1441 = vmatpush1.msra.mxu0 0.0
        %1442 = vmatprep.subr.mxu0 0.0
        %1443 = vmatpush1.msra.mxu0 0.0
        %1444 = vmatprep.subr.mxu0 0.0
        %1445 = vmatpush1.msra.mxu0 0.0
        %1446 = vmatprep.subr.mxu0 0.0
        %1447 = vmatpush1.msra.mxu0 0.0
        %1448 = vmatprep.subr.mxu0 0.0
        %1449 = vmatpush1.msra.mxu0 0.0
        %1450 = vmatprep.subr.mxu0 0.0
        %1451 = vmatpush1.msra.mxu0 0.0
        %1452 = vmatprep.subr.mxu0 0.0
        %1453 = vmatpush1.msra.mxu0 0.0
        %1454 = vmatprep.subr.mxu0 0.0
        %1455 = vmatpush1.msra.mxu0 0.0
        %1456 = vmatprep.subr.mxu0 0.0
        %1457 = vmatpush1.msra.mxu0 %v1424
        %1458 = vmatprep.subr.mxu0 0.0
        %1459 = vmatpush2.msra.mxu0 0.0
        %1460 = vmatprep.subr.mxu0 0.0
        %1461 = vmatpush2.msra.mxu0 0.0
        %1462 = vmatprep.subr.mxu0 0.0
        %1463 = vmatpush2.msra.mxu0 0.0
        %1464 = vmatprep.subr.mxu0 0.0
        %1465 = vmatpush2.msra.mxu0 0.0
        %1466 = vmatprep.subr.mxu0 0.0
        %1467 = vmatpush2.msra.mxu0 0.0
        %1468 = vmatprep.subr.mxu0 0.0
        %1469 = vmatpush2.msra.mxu0 0.0
        %1470 = vmatprep.subr.mxu0 0.0
        %1471 = vmatpush2.msra.mxu0 0.0
        %1472 = vmatprep.subr.mxu0 0.0
        %1473 = vmatpush2.msra.mxu0 0.0
        %1474 = vmatprep.subr.mxu0 0.0
        %1475 = vmatpush2.msra.mxu0 0.0
        %1476 = vmatprep.subr.mxu0 0.0
        %1477 = vmatpush2.msra.mxu0 0.0
        %1478 = vmatprep.subr.mxu0 0.0
        %1479 = vmatpush2.msra.mxu0 0.0
        %1480 = vmatprep.subr.mxu0 0.0
        %1481 = vmatpush2.msra.mxu0 0.0
        %1482 = vmatprep.subr.mxu0 0.0
        %1483 = vmatpush2.msra.mxu0 0.0
        %1484 = vmatprep.subr.mxu0 0.0
        %1485 = vmatpush2.msra.mxu0 0.0
        %1486 = vmatprep.subr.mxu0 0.0
        %1487 = vmatpush2.msra.mxu0 0.0
        %1488 = vmatprep.subr.mxu0 0.0
        %1489 = vmatpush2.msra.mxu0 0.0
        %1490 = vmatprep.mubr.f32.mxu0 0.0
        %1491 = vmatmul.mubr.f32.gmra.mxu0 %v1400
        %v1492 = vpop.f32.mrf.mxu0
        %v1493 = vadd.f32 0.0, %v1492
        %v1494 = vpop.f32.mrf.mxu0
        %1495 = vmatprep.mubr.f32.mxu0 0.0
        %1496 = vmatmul.mubr.f32.gmra.mxu0 %v1403
        %v1497 = vpop.f32.mrf.mxu0
        %v1498 = vadd.f32 0.0, %v1497
        %v1499 = vpop.f32.mrf.mxu0
        %1500 = vmatprep.mubr.f32.mxu0 0.0
        %1501 = vmatmul.mubr.f32.gmra.mxu0 %v1406
        %v1502 = vpop.f32.mrf.mxu0
        %v1503 = vadd.f32 0.0, %v1502
        %v1504 = vpop.f32.mrf.mxu0
        %1505 = vmatprep.mubr.f32.mxu0 0.0
        %1506 = vmatmul.mubr.f32.gmra.mxu0 %v1409
        %v1507 = vpop.f32.mrf.mxu0
        %v1508 = vadd.f32 0.0, %v1507
        %v1509 = vpop.f32.mrf.mxu0
        %1510 = vmatprep.mubr.f32.mxu0 0.0
        %1511 = vmatmul.mubr.f32.gmra.mxu0 %v1412
        %v1512 = vpop.f32.mrf.mxu0
        %v1513 = vadd.f32 0.0, %v1512
        %v1514 = vpop.f32.mrf.mxu0
        %1515 = vmatprep.mubr.f32.mxu0 0.0
        %1516 = vmatmul.mubr.f32.gmra.mxu0 %v1415
        %v1517 = vpop.f32.mrf.mxu0
        %v1518 = vadd.f32 0.0, %v1517
        %v1519 = vpop.f32.mrf.mxu0
        %1520 = vmatprep.mubr.f32.mxu0 0.0
        %1521 = vmatmul.mubr.f32.gmra.mxu0 %v1418
        %v1522 = vpop.f32.mrf.mxu0
        %v1523 = vadd.f32 0.0, %v1522
        %v1524 = vpop.f32.mrf.mxu0
        %1525 = vmatprep.mubr.f32.mxu0 0.0
        %1526 = vmatmul.mubr.f32.gmra.mxu0 %v1421
        %v1527 = vpop.f32.mrf.mxu0
        %v1528 = vadd.f32 0.0, %v1527
        %v1529 = vpop.f32.mrf.mxu0
        %1530 = vdwg.mxu0
        %v1531 = vsub.f32 %v232, %v1493
        %v1532 = vsub.f32 %v233, %v1498
        %v1533 = vsub.f32 %v234, %v1503
        %v1534 = vsub.f32 %v235, %v1508
        %v1535 = vsub.f32 %v236, %v1513
        %v1536 = vsub.f32 %v237, %v1518
        %v1537 = vsub.f32 %v238, %v1523
        %v1538 = vsub.f32 %v239, %v1528
        %v1539 = vmul.f32 %v1531, %v1531
        %v1540 = vmul.f32 %v1532, %v1532
        %v1541 = vmul.f32 %v1533, %v1533
        %v1542 = vmul.f32 %v1534, %v1534
        %v1543 = vmul.f32 %v1535, %v1535
        %v1544 = vmul.f32 %v1536, %v1536
        %v1545 = vmul.f32 %v1537, %v1537
        %v1546 = vmul.f32 %v1538, %v1538
        %v1547 = vadd.f32 %v1539, %v1540
        %v1548 = vadd.f32 %v1547, %v1541
        %v1549 = vadd.f32 %v1548, %v1542
        %v1550 = vadd.f32 %v1549, %v1543
        %v1551 = vadd.f32 %v1550, %v1544
        %v1552 = vadd.f32 %v1551, %v1545
        %v1553 = vadd.f32 %v1552, %v1546
        %v1554 = vrot.slane %v1553, 4
        %v1555 = vadd.f32 %v1553, %v1554
        %v1556 = vrot.slane %v1555, 2
        %v1557 = vadd.f32 %v1555, %v1556
        %v1558 = vrot.slane %v1557, 1
        %v1559 = vadd.f32 %v1557, %v1558
        %v1560 = vrsqrt.pop %v1559
        %v1561 = vmul.f32 %v1559, %v1560
        %vm1562 = vcmp.eq.f32.partialorder %v1559, inf
        %v1563 = vsel %vm1562, %v1559, %v1561
        %vm1564 = vcmp.eq.f32.partialorder %v1559, 0.0
        %v1565 = vand.u32 %v1559, 2147483648
        %v1566 = vsel %vm1564, %v1565, %v1563
        %v1567 = vsub.f32 0.0, %v1566
        %1568 = vset.pattern.permute.xlu0 5
        %1569 = vperm.xlu0 %1568, %v516
        %v1570 = vpop.permute.xlu0 %1569
        %1572 = vset.pattern.permute.xlu0 5
        %1573 = vperm.xlu0 %1572, %v517
        %v1574 = vpop.permute.xlu0 %1573
        %1576 = vset.pattern.permute.xlu0 5
        %1577 = vperm.xlu0 %1576, %v518
        %v1578 = vpop.permute.xlu0 %1577
        %1580 = vset.pattern.permute.xlu0 5
        %1581 = vperm.xlu0 %1580, %v519
        %v1582 = vpop.permute.xlu0 %1581
        %1584 = vset.pattern.permute.xlu0 5
        %1585 = vperm.xlu0 %1584, %v520
        %v1586 = vpop.permute.xlu0 %1585
        %1588 = vset.pattern.permute.xlu0 5
        %1589 = vperm.xlu0 %1588, %v521
        %v1590 = vpop.permute.xlu0 %1589
        %1592 = vset.pattern.permute.xlu0 5
        %1593 = vperm.xlu0 %1592, %v522
        %v1594 = vpop.permute.xlu0 %1593
        %1596 = vset.pattern.permute.xlu0 5
        %1597 = vperm.xlu0 %1596, %v523
        %v1598 = vpop.permute.xlu0 %1597
        %v1600 = vadd.f32 %v361, %v1570
        %v1601 = vadd.f32 %v366, %v1574
        %v1602 = vadd.f32 %v371, %v1578
        %v1603 = vadd.f32 %v376, %v1582
        %v1604 = vadd.f32 %v381, %v1586
        %v1605 = vadd.f32 %v386, %v1590
        %v1606 = vadd.f32 %v391, %v1594
        %v1607 = vadd.f32 %v396, %v1598
        %v1608 = vmax.f32 %v1600, 0.0
        %v1609 = vmax.f32 %v1601, 0.0
        %v1610 = vmax.f32 %v1602, 0.0
        %v1611 = vmax.f32 %v1603, 0.0
        %v1612 = vmax.f32 %v1604, 0.0
        %v1613 = vmax.f32 %v1605, 0.0
        %v1614 = vmax.f32 %v1606, 0.0
        %v1615 = vmax.f32 %v1607, 0.0
        %1616 = vmatprep.subr.mxu0 0.0
        %1617 = vmatpush1.msra.mxu0 0.0
        %1618 = vmatprep.subr.mxu0 0.0
        %1619 = vmatpush1.msra.mxu0 0.0
        %1620 = vmatprep.subr.mxu0 0.0
        %1621 = vmatpush1.msra.mxu0 0.0
        %1622 = vmatprep.subr.mxu0 0.0
        %1623 = vmatpush1.msra.mxu0 0.0
        %1624 = vmatprep.subr.mxu0 0.0
        %1625 = vmatpush1.msra.mxu0 0.0
        %1626 = vmatprep.subr.mxu0 0.0
        %1627 = vmatpush1.msra.mxu0 0.0
        %1628 = vmatprep.subr.mxu0 0.0
        %1629 = vmatpush1.msra.mxu0 0.0
        %1630 = vmatprep.subr.mxu0 0.0
        %1631 = vmatpush1.msra.mxu0 0.0
        %1632 = vmatprep.subr.mxu0 0.0
        %1633 = vmatpush1.msra.mxu0 %v1615
        %1634 = vmatprep.subr.mxu0 0.0
        %1635 = vmatpush1.msra.mxu0 %v1614
        %1636 = vmatprep.subr.mxu0 0.0
        %1637 = vmatpush1.msra.mxu0 %v1613
        %1638 = vmatprep.subr.mxu0 0.0
        %1639 = vmatpush1.msra.mxu0 %v1612
        %1640 = vmatprep.subr.mxu0 0.0
        %1641 = vmatpush1.msra.mxu0 %v1611
        %1642 = vmatprep.subr.mxu0 0.0
        %1643 = vmatpush1.msra.mxu0 %v1610
        %1644 = vmatprep.subr.mxu0 0.0
        %1645 = vmatpush1.msra.mxu0 %v1609
        %1646 = vmatprep.subr.mxu0 0.0
        %1647 = vmatpush1.msra.mxu0 %v1608
        %1648 = vmatprep.subr.mxu0 0.0
        %1649 = vmatpush2.msra.mxu0 0.0
        %1650 = vmatprep.subr.mxu0 0.0
        %1651 = vmatpush2.msra.mxu0 0.0
        %1652 = vmatprep.subr.mxu0 0.0
        %1653 = vmatpush2.msra.mxu0 0.0
        %1654 = vmatprep.subr.mxu0 0.0
        %1655 = vmatpush2.msra.mxu0 0.0
        %1656 = vmatprep.subr.mxu0 0.0
        %1657 = vmatpush2.msra.mxu0 0.0
        %1658 = vmatprep.subr.mxu0 0.0
        %1659 = vmatpush2.msra.mxu0 0.0
        %1660 = vmatprep.subr.mxu0 0.0
        %1661 = vmatpush2.msra.mxu0 0.0
        %1662 = vmatprep.subr.mxu0 0.0
        %1663 = vmatpush2.msra.mxu0 0.0
        %1664 = vmatprep.subr.mxu0 0.0
        %1665 = vmatpush2.msra.mxu0 0.0
        %1666 = vmatprep.subr.mxu0 0.0
        %1667 = vmatpush2.msra.mxu0 0.0
        %1668 = vmatprep.subr.mxu0 0.0
        %1669 = vmatpush2.msra.mxu0 0.0
        %1670 = vmatprep.subr.mxu0 0.0
        %1671 = vmatpush2.msra.mxu0 0.0
        %1672 = vmatprep.subr.mxu0 0.0
        %1673 = vmatpush2.msra.mxu0 0.0
        %1674 = vmatprep.subr.mxu0 0.0
        %1675 = vmatpush2.msra.mxu0 0.0
        %1676 = vmatprep.subr.mxu0 0.0
        %1677 = vmatpush2.msra.mxu0 0.0
        %1678 = vmatprep.subr.mxu0 0.0
        %1679 = vmatpush2.msra.mxu0 0.0
        %1680 = vmatprep.mubr.f32.mxu0 0.0
        %1681 = vmatmul.mubr.f32.gmra.mxu0 %v641
        %v1682 = vpop.f32.mrf.mxu0
        %v1683 = vadd.f32 %v623, %v1682
        %v1684 = vpop.f32.mrf.mxu0
        %1685 = vmatprep.mubr.f32.mxu0 0.0
        %1686 = vmatmul.mubr.f32.gmra.mxu0 %v644
        %v1687 = vpop.f32.mrf.mxu0
        %v1688 = vadd.f32 %v628, %v1687
        %v1689 = vpop.f32.mrf.mxu0
        %1690 = vmatprep.mubr.f32.mxu0 0.0
        %1691 = vmatmul.mubr.f32.gmra.mxu0 %v647
        %v1692 = vpop.f32.mrf.mxu0
        %v1693 = vadd.f32 %v633, %v1692
        %v1694 = vpop.f32.mrf.mxu0
        %1695 = vmatprep.mubr.f32.mxu0 0.0
        %1696 = vmatmul.mubr.f32.gmra.mxu0 %v650
        %v1697 = vpop.f32.mrf.mxu0
        %v1698 = vadd.f32 %v638, %v1697
        %v1699 = vpop.f32.mrf.mxu0
        %1700 = vdwg.mxu0
        %v1701 = vmax.f32 %v1683, 0.0
        %v1702 = vmax.f32 %v1688, 0.0
        %v1703 = vmax.f32 %v1693, 0.0
        %v1704 = vmax.f32 %v1698, 0.0
        %v1705 = vmul.f32 %v1701, %v743
        %v1706 = vmul.f32 %v1702, %v747
        %v1707 = vmul.f32 %v1703, %v751
        %v1708 = vmul.f32 %v1704, %v755
        %v1709 = vadd.f32 %v1705, %v1706
        %v1710 = vadd.f32 %v1709, %v1707
        %v1711 = vadd.f32 %v1710, %v1708
        %v1712 = vrot.slane %v1711, 4
        %v1713 = vadd.f32 %v1711, %v1712
        %v1714 = vrot.slane %v1713, 2
        %v1715 = vadd.f32 %v1713, %v1714
        %v1716 = vrot.slane %v1715, 1
        %v1717 = vadd.f32 %v1715, %v1716
        %1718 = vset.pattern.permute.xlu0 6
        %1719 = vperm.xlu0 %1718, %v516
        %v1720 = vpop.permute.xlu0 %1719
        %1722 = vset.pattern.permute.xlu0 6
        %1723 = vperm.xlu0 %1722, %v517
        %v1724 = vpop.permute.xlu0 %1723
        %1726 = vset.pattern.permute.xlu0 6
        %1727 = vperm.xlu0 %1726, %v518
        %v1728 = vpop.permute.xlu0 %1727
        %1730 = vset.pattern.permute.xlu0 6
        %1731 = vperm.xlu0 %1730, %v519
        %v1732 = vpop.permute.xlu0 %1731
        %1734 = vset.pattern.permute.xlu0 6
        %1735 = vperm.xlu0 %1734, %v520
        %v1736 = vpop.permute.xlu0 %1735
        %1738 = vset.pattern.permute.xlu0 6
        %1739 = vperm.xlu0 %1738, %v521
        %v1740 = vpop.permute.xlu0 %1739
        %1742 = vset.pattern.permute.xlu0 6
        %1743 = vperm.xlu0 %1742, %v522
        %v1744 = vpop.permute.xlu0 %1743
        %1746 = vset.pattern.permute.xlu0 6
        %1747 = vperm.xlu0 %1746, %v523
        %v1748 = vpop.permute.xlu0 %1747
        %v1750 = vadd.f32 %v361, %v1720
        %v1751 = vadd.f32 %v366, %v1724
        %v1752 = vadd.f32 %v371, %v1728
        %v1753 = vadd.f32 %v376, %v1732
        %v1754 = vadd.f32 %v381, %v1736
        %v1755 = vadd.f32 %v386, %v1740
        %v1756 = vadd.f32 %v391, %v1744
        %v1757 = vadd.f32 %v396, %v1748
        %v1758 = vmax.f32 %v1750, 0.0
        %v1759 = vmax.f32 %v1751, 0.0
        %v1760 = vmax.f32 %v1752, 0.0
        %v1761 = vmax.f32 %v1753, 0.0
        %v1762 = vmax.f32 %v1754, 0.0
        %v1763 = vmax.f32 %v1755, 0.0
        %v1764 = vmax.f32 %v1756, 0.0
        %v1765 = vmax.f32 %v1757, 0.0
        %1766 = vmatprep.subr.mxu0 0.0
        %1767 = vmatpush1.msra.mxu0 0.0
        %1768 = vmatprep.subr.mxu0 0.0
        %1769 = vmatpush1.msra.mxu0 0.0
        %1770 = vmatprep.subr.mxu0 0.0
        %1771 = vmatpush1.msra.mxu0 0.0
        %1772 = vmatprep.subr.mxu0 0.0
        %1773 = vmatpush1.msra.mxu0 0.0
        %1774 = vmatprep.subr.mxu0 0.0
        %1775 = vmatpush1.msra.mxu0 0.0
        %1776 = vmatprep.subr.mxu0 0.0
        %1777 = vmatpush1.msra.mxu0 0.0
        %1778 = vmatprep.subr.mxu0 0.0
        %1779 = vmatpush1.msra.mxu0 0.0
        %1780 = vmatprep.subr.mxu0 0.0
        %1781 = vmatpush1.msra.mxu0 0.0
        %1782 = vmatprep.subr.mxu0 0.0
        %1783 = vmatpush1.msra.mxu0 %v1765
        %1784 = vmatprep.subr.mxu0 0.0
        %1785 = vmatpush1.msra.mxu0 %v1764
        %1786 = vmatprep.subr.mxu0 0.0
        %1787 = vmatpush1.msra.mxu0 %v1763
        %1788 = vmatprep.subr.mxu0 0.0
        %1789 = vmatpush1.msra.mxu0 %v1762
        %1790 = vmatprep.subr.mxu0 0.0
        %1791 = vmatpush1.msra.mxu0 %v1761
        %1792 = vmatprep.subr.mxu0 0.0
        %1793 = vmatpush1.msra.mxu0 %v1760
        %1794 = vmatprep.subr.mxu0 0.0
        %1795 = vmatpush1.msra.mxu0 %v1759
        %1796 = vmatprep.subr.mxu0 0.0
        %1797 = vmatpush1.msra.mxu0 %v1758
        %1798 = vmatprep.subr.mxu0 0.0
        %1799 = vmatpush2.msra.mxu0 0.0
        %1800 = vmatprep.subr.mxu0 0.0
        %1801 = vmatpush2.msra.mxu0 0.0
        %1802 = vmatprep.subr.mxu0 0.0
        %1803 = vmatpush2.msra.mxu0 0.0
        %1804 = vmatprep.subr.mxu0 0.0
        %1805 = vmatpush2.msra.mxu0 0.0
        %1806 = vmatprep.subr.mxu0 0.0
        %1807 = vmatpush2.msra.mxu0 0.0
        %1808 = vmatprep.subr.mxu0 0.0
        %1809 = vmatpush2.msra.mxu0 0.0
        %1810 = vmatprep.subr.mxu0 0.0
        %1811 = vmatpush2.msra.mxu0 0.0
        %1812 = vmatprep.subr.mxu0 0.0
        %1813 = vmatpush2.msra.mxu0 0.0
        %1814 = vmatprep.subr.mxu0 0.0
        %1815 = vmatpush2.msra.mxu0 0.0
        %1816 = vmatprep.subr.mxu0 0.0
        %1817 = vmatpush2.msra.mxu0 0.0
        %1818 = vmatprep.subr.mxu0 0.0
        %1819 = vmatpush2.msra.mxu0 0.0
        %1820 = vmatprep.subr.mxu0 0.0
        %1821 = vmatpush2.msra.mxu0 0.0
        %1822 = vmatprep.subr.mxu0 0.0
        %1823 = vmatpush2.msra.mxu0 0.0
        %1824 = vmatprep.subr.mxu0 0.0
        %1825 = vmatpush2.msra.mxu0 0.0
        %1826 = vmatprep.subr.mxu0 0.0
        %1827 = vmatpush2.msra.mxu0 0.0
        %1828 = vmatprep.subr.mxu0 0.0
        %1829 = vmatpush2.msra.mxu0 0.0
        %1830 = vmatprep.mubr.f32.mxu0 0.0
        %1831 = vmatmul.mubr.f32.gmra.mxu0 %v641
        %v1832 = vpop.f32.mrf.mxu0
        %v1833 = vadd.f32 %v623, %v1832
        %v1834 = vpop.f32.mrf.mxu0
        %1835 = vmatprep.mubr.f32.mxu0 0.0
        %1836 = vmatmul.mubr.f32.gmra.mxu0 %v644
        %v1837 = vpop.f32.mrf.mxu0
        %v1838 = vadd.f32 %v628, %v1837
        %v1839 = vpop.f32.mrf.mxu0
        %1840 = vmatprep.mubr.f32.mxu0 0.0
        %1841 = vmatmul.mubr.f32.gmra.mxu0 %v647
        %v1842 = vpop.f32.mrf.mxu0
        %v1843 = vadd.f32 %v633, %v1842
        %v1844 = vpop.f32.mrf.mxu0
        %1845 = vmatprep.mubr.f32.mxu0 0.0
        %1846 = vmatmul.mubr.f32.gmra.mxu0 %v650
        %v1847 = vpop.f32.mrf.mxu0
        %v1848 = vadd.f32 %v638, %v1847
        %v1849 = vpop.f32.mrf.mxu0
        %1850 = vdwg.mxu0
        %v1851 = vmax.f32 %v1833, 0.0
        %v1852 = vmax.f32 %v1838, 0.0
        %v1853 = vmax.f32 %v1843, 0.0
        %v1854 = vmax.f32 %v1848, 0.0
        %v1855 = vmul.f32 %v1851, %v743
        %v1856 = vmul.f32 %v1852, %v747
        %v1857 = vmul.f32 %v1853, %v751
        %v1858 = vmul.f32 %v1854, %v755
        %v1859 = vadd.f32 %v1855, %v1856
        %v1860 = vadd.f32 %v1859, %v1857
        %v1861 = vadd.f32 %v1860, %v1858
        %v1862 = vrot.slane %v1861, 4
        %v1863 = vadd.f32 %v1861, %v1862
        %v1864 = vrot.slane %v1863, 2
        %v1865 = vadd.f32 %v1863, %v1864
        %v1866 = vrot.slane %v1865, 1
        %v1867 = vadd.f32 %v1865, %v1866
        %1868 = vset.pattern.permute.xlu0 7
        %1869 = vperm.xlu0 %1868, %v516
        %v1870 = vpop.permute.xlu0 %1869
        %1872 = vset.pattern.permute.xlu0 7
        %1873 = vperm.xlu0 %1872, %v517
        %v1874 = vpop.permute.xlu0 %1873
        %1876 = vset.pattern.permute.xlu0 7
        %1877 = vperm.xlu0 %1876, %v518
        %v1878 = vpop.permute.xlu0 %1877
        %1880 = vset.pattern.permute.xlu0 7
        %1881 = vperm.xlu0 %1880, %v519
        %v1882 = vpop.permute.xlu0 %1881
        %1884 = vset.pattern.permute.xlu0 7
        %1885 = vperm.xlu0 %1884, %v520
        %v1886 = vpop.permute.xlu0 %1885
        %1888 = vset.pattern.permute.xlu0 7
        %1889 = vperm.xlu0 %1888, %v521
        %v1890 = vpop.permute.xlu0 %1889
        %1892 = vset.pattern.permute.xlu0 7
        %1893 = vperm.xlu0 %1892, %v522
        %v1894 = vpop.permute.xlu0 %1893
        %1896 = vset.pattern.permute.xlu0 7
        %1897 = vperm.xlu0 %1896, %v523
        %v1898 = vpop.permute.xlu0 %1897
        %v1900 = vadd.f32 %v361, %v1870
        %v1901 = vadd.f32 %v366, %v1874
        %v1902 = vadd.f32 %v371, %v1878
        %v1903 = vadd.f32 %v376, %v1882
        %v1904 = vadd.f32 %v381, %v1886
        %v1905 = vadd.f32 %v386, %v1890
        %v1906 = vadd.f32 %v391, %v1894
        %v1907 = vadd.f32 %v396, %v1898
        %v1908 = vmax.f32 %v1900, 0.0
        %v1909 = vmax.f32 %v1901, 0.0
        %v1910 = vmax.f32 %v1902, 0.0
        %v1911 = vmax.f32 %v1903, 0.0
        %v1912 = vmax.f32 %v1904, 0.0
        %v1913 = vmax.f32 %v1905, 0.0
        %v1914 = vmax.f32 %v1906, 0.0
        %v1915 = vmax.f32 %v1907, 0.0
        %1916 = vmatprep.subr.mxu0 0.0
        %1917 = vmatpush1.msra.mxu0 0.0
        %1918 = vmatprep.subr.mxu0 0.0
        %1919 = vmatpush1.msra.mxu0 0.0
        %1920 = vmatprep.subr.mxu0 0.0
        %1921 = vmatpush1.msra.mxu0 0.0
        %1922 = vmatprep.subr.mxu0 0.0
        %1923 = vmatpush1.msra.mxu0 0.0
        %1924 = vmatprep.subr.mxu0 0.0
        %1925 = vmatpush1.msra.mxu0 0.0
        %1926 = vmatprep.subr.mxu0 0.0
        %1927 = vmatpush1.msra.mxu0 0.0
        %1928 = vmatprep.subr.mxu0 0.0
        %1929 = vmatpush1.msra.mxu0 0.0
        %1930 = vmatprep.subr.mxu0 0.0
        %1931 = vmatpush1.msra.mxu0 0.0
        %1932 = vmatprep.subr.mxu0 0.0
        %1933 = vmatpush1.msra.mxu0 %v1915
        %1934 = vmatprep.subr.mxu0 0.0
        %1935 = vmatpush1.msra.mxu0 %v1914
        %1936 = vmatprep.subr.mxu0 0.0
        %1937 = vmatpush1.msra.mxu0 %v1913
        %1938 = vmatprep.subr.mxu0 0.0
        %1939 = vmatpush1.msra.mxu0 %v1912
        %1940 = vmatprep.subr.mxu0 0.0
        %1941 = vmatpush1.msra.mxu0 %v1911
        %1942 = vmatprep.subr.mxu0 0.0
        %1943 = vmatpush1.msra.mxu0 %v1910
        %1944 = vmatprep.subr.mxu0 0.0
        %1945 = vmatpush1.msra.mxu0 %v1909
        %1946 = vmatprep.subr.mxu0 0.0
        %1947 = vmatpush1.msra.mxu0 %v1908
        %1948 = vmatprep.subr.mxu0 0.0
        %1949 = vmatpush2.msra.mxu0 0.0
        %1950 = vmatprep.subr.mxu0 0.0
        %1951 = vmatpush2.msra.mxu0 0.0
        %1952 = vmatprep.subr.mxu0 0.0
        %1953 = vmatpush2.msra.mxu0 0.0
        %1954 = vmatprep.subr.mxu0 0.0
        %1955 = vmatpush2.msra.mxu0 0.0
        %1956 = vmatprep.subr.mxu0 0.0
        %1957 = vmatpush2.msra.mxu0 0.0
        %1958 = vmatprep.subr.mxu0 0.0
        %1959 = vmatpush2.msra.mxu0 0.0
        %1960 = vmatprep.subr.mxu0 0.0
        %1961 = vmatpush2.msra.mxu0 0.0
        %1962 = vmatprep.subr.mxu0 0.0
        %1963 = vmatpush2.msra.mxu0 0.0
        %1964 = vmatprep.subr.mxu0 0.0
        %1965 = vmatpush2.msra.mxu0 0.0
        %1966 = vmatprep.subr.mxu0 0.0
        %1967 = vmatpush2.msra.mxu0 0.0
        %1968 = vmatprep.subr.mxu0 0.0
        %1969 = vmatpush2.msra.mxu0 0.0
        %1970 = vmatprep.subr.mxu0 0.0
        %1971 = vmatpush2.msra.mxu0 0.0
        %1972 = vmatprep.subr.mxu0 0.0
        %1973 = vmatpush2.msra.mxu0 0.0
        %1974 = vmatprep.subr.mxu0 0.0
        %1975 = vmatpush2.msra.mxu0 0.0
        %1976 = vmatprep.subr.mxu0 0.0
        %1977 = vmatpush2.msra.mxu0 0.0
        %1978 = vmatprep.subr.mxu0 0.0
        %1979 = vmatpush2.msra.mxu0 0.0
        %1980 = vmatprep.mubr.f32.mxu0 0.0
        %1981 = vmatmul.mubr.f32.gmra.mxu0 %v641
        %v1982 = vpop.f32.mrf.mxu0
        %v1983 = vadd.f32 %v623, %v1982
        %v1984 = vpop.f32.mrf.mxu0
        %1985 = vmatprep.mubr.f32.mxu0 0.0
        %1986 = vmatmul.mubr.f32.gmra.mxu0 %v644
        %v1987 = vpop.f32.mrf.mxu0
        %v1988 = vadd.f32 %v628, %v1987
        %v1989 = vpop.f32.mrf.mxu0
        %1990 = vmatprep.mubr.f32.mxu0 0.0
        %1991 = vmatmul.mubr.f32.gmra.mxu0 %v647
        %v1992 = vpop.f32.mrf.mxu0
        %v1993 = vadd.f32 %v633, %v1992
        %v1994 = vpop.f32.mrf.mxu0
        %1995 = vmatprep.mubr.f32.mxu0 0.0
        %1996 = vmatmul.mubr.f32.gmra.mxu0 %v650
        %v1997 = vpop.f32.mrf.mxu0
        %v1998 = vadd.f32 %v638, %v1997
        %v1999 = vpop.f32.mrf.mxu0
        %2000 = vdwg.mxu0
        %v2001 = vmax.f32 %v1983, 0.0
        %v2002 = vmax.f32 %v1988, 0.0
        %v2003 = vmax.f32 %v1993, 0.0
        %v2004 = vmax.f32 %v1998, 0.0
        %v2005 = vmul.f32 %v2001, %v743
        %v2006 = vmul.f32 %v2002, %v747
        %v2007 = vmul.f32 %v2003, %v751
        %v2008 = vmul.f32 %v2004, %v755
        %v2009 = vadd.f32 %v2005, %v2006
        %v2010 = vadd.f32 %v2009, %v2007
        %v2011 = vadd.f32 %v2010, %v2008
        %v2012 = vrot.slane %v2011, 4
        %v2013 = vadd.f32 %v2011, %v2012
        %v2014 = vrot.slane %v2013, 2
        %v2015 = vadd.f32 %v2013, %v2014
        %v2016 = vrot.slane %v2015, 1
        %v2017 = vadd.f32 %v2015, %v2016
        %2018 = vset.pattern.permute.xlu0 8
        %2019 = vperm.xlu0 %2018, %v516
        %v2020 = vpop.permute.xlu0 %2019
        %2022 = vset.pattern.permute.xlu0 8
        %2023 = vperm.xlu0 %2022, %v517
        %v2024 = vpop.permute.xlu0 %2023
        %2026 = vset.pattern.permute.xlu0 8
        %2027 = vperm.xlu0 %2026, %v518
        %v2028 = vpop.permute.xlu0 %2027
        %2030 = vset.pattern.permute.xlu0 8
        %2031 = vperm.xlu0 %2030, %v519
        %v2032 = vpop.permute.xlu0 %2031
        %2034 = vset.pattern.permute.xlu0 8
        %2035 = vperm.xlu0 %2034, %v520
        %v2036 = vpop.permute.xlu0 %2035
        %2038 = vset.pattern.permute.xlu0 8
        %2039 = vperm.xlu0 %2038, %v521
        %v2040 = vpop.permute.xlu0 %2039
        %2042 = vset.pattern.permute.xlu0 8
        %2043 = vperm.xlu0 %2042, %v522
        %v2044 = vpop.permute.xlu0 %2043
        %2046 = vset.pattern.permute.xlu0 8
        %2047 = vperm.xlu0 %2046, %v523
        %v2048 = vpop.permute.xlu0 %2047
        %v2050 = vadd.f32 %v361, %v2020
        %v2051 = vadd.f32 %v366, %v2024
        %v2052 = vadd.f32 %v371, %v2028
        %v2053 = vadd.f32 %v376, %v2032
        %v2054 = vadd.f32 %v381, %v2036
        %v2055 = vadd.f32 %v386, %v2040
        %v2056 = vadd.f32 %v391, %v2044
        %v2057 = vadd.f32 %v396, %v2048
        %v2058 = vmax.f32 %v2050, 0.0
        %v2059 = vmax.f32 %v2051, 0.0
        %v2060 = vmax.f32 %v2052, 0.0
        %v2061 = vmax.f32 %v2053, 0.0
        %v2062 = vmax.f32 %v2054, 0.0
        %v2063 = vmax.f32 %v2055, 0.0
        %v2064 = vmax.f32 %v2056, 0.0
        %v2065 = vmax.f32 %v2057, 0.0
        %2066 = vmatprep.subr.mxu0 0.0
        %2067 = vmatpush1.msra.mxu0 0.0
        %2068 = vmatprep.subr.mxu0 0.0
        %2069 = vmatpush1.msra.mxu0 0.0
        %2070 = vmatprep.subr.mxu0 0.0
        %2071 = vmatpush1.msra.mxu0 0.0
        %2072 = vmatprep.subr.mxu0 0.0
        %2073 = vmatpush1.msra.mxu0 0.0
        %2074 = vmatprep.subr.mxu0 0.0
        %2075 = vmatpush1.msra.mxu0 0.0
        %2076 = vmatprep.subr.mxu0 0.0
        %2077 = vmatpush1.msra.mxu0 0.0
        %2078 = vmatprep.subr.mxu0 0.0
        %2079 = vmatpush1.msra.mxu0 0.0
        %2080 = vmatprep.subr.mxu0 0.0
        %2081 = vmatpush1.msra.mxu0 0.0
        %2082 = vmatprep.subr.mxu0 0.0
        %2083 = vmatpush1.msra.mxu0 %v2065
        %2084 = vmatprep.subr.mxu0 0.0
        %2085 = vmatpush1.msra.mxu0 %v2064
        %2086 = vmatprep.subr.mxu0 0.0
        %2087 = vmatpush1.msra.mxu0 %v2063
        %2088 = vmatprep.subr.mxu0 0.0
        %2089 = vmatpush1.msra.mxu0 %v2062
        %2090 = vmatprep.subr.mxu0 0.0
        %2091 = vmatpush1.msra.mxu0 %v2061
        %2092 = vmatprep.subr.mxu0 0.0
        %2093 = vmatpush1.msra.mxu0 %v2060
        %2094 = vmatprep.subr.mxu0 0.0
        %2095 = vmatpush1.msra.mxu0 %v2059
        %2096 = vmatprep.subr.mxu0 0.0
        %2097 = vmatpush1.msra.mxu0 %v2058
        %2098 = vmatprep.subr.mxu0 0.0
        %2099 = vmatpush2.msra.mxu0 0.0
        %2100 = vmatprep.subr.mxu0 0.0
        %2101 = vmatpush2.msra.mxu0 0.0
        %2102 = vmatprep.subr.mxu0 0.0
        %2103 = vmatpush2.msra.mxu0 0.0
        %2104 = vmatprep.subr.mxu0 0.0
        %2105 = vmatpush2.msra.mxu0 0.0
        %2106 = vmatprep.subr.mxu0 0.0
        %2107 = vmatpush2.msra.mxu0 0.0
        %2108 = vmatprep.subr.mxu0 0.0
        %2109 = vmatpush2.msra.mxu0 0.0
        %2110 = vmatprep.subr.mxu0 0.0
        %2111 = vmatpush2.msra.mxu0 0.0
        %2112 = vmatprep.subr.mxu0 0.0
        %2113 = vmatpush2.msra.mxu0 0.0
        %2114 = vmatprep.subr.mxu0 0.0
        %2115 = vmatpush2.msra.mxu0 0.0
        %2116 = vmatprep.subr.mxu0 0.0
        %2117 = vmatpush2.msra.mxu0 0.0
        %2118 = vmatprep.subr.mxu0 0.0
        %2119 = vmatpush2.msra.mxu0 0.0
        %2120 = vmatprep.subr.mxu0 0.0
        %2121 = vmatpush2.msra.mxu0 0.0
        %2122 = vmatprep.subr.mxu0 0.0
        %2123 = vmatpush2.msra.mxu0 0.0
        %2124 = vmatprep.subr.mxu0 0.0
        %2125 = vmatpush2.msra.mxu0 0.0
        %2126 = vmatprep.subr.mxu0 0.0
        %2127 = vmatpush2.msra.mxu0 0.0
        %2128 = vmatprep.subr.mxu0 0.0
        %2129 = vmatpush2.msra.mxu0 0.0
        %2130 = vmatprep.mubr.f32.mxu0 0.0
        %2131 = vmatmul.mubr.f32.gmra.mxu0 %v641
        %v2132 = vpop.f32.mrf.mxu0
        %v2133 = vadd.f32 %v623, %v2132
        %v2134 = vpop.f32.mrf.mxu0
        %2135 = vmatprep.mubr.f32.mxu0 0.0
        %2136 = vmatmul.mubr.f32.gmra.mxu0 %v644
        %v2137 = vpop.f32.mrf.mxu0
        %v2138 = vadd.f32 %v628, %v2137
        %v2139 = vpop.f32.mrf.mxu0
        %2140 = vmatprep.mubr.f32.mxu0 0.0
        %2141 = vmatmul.mubr.f32.gmra.mxu0 %v647
        %v2142 = vpop.f32.mrf.mxu0
        %v2143 = vadd.f32 %v633, %v2142
        %v2144 = vpop.f32.mrf.mxu0
        %2145 = vmatprep.mubr.f32.mxu0 0.0
        %2146 = vmatmul.mubr.f32.gmra.mxu0 %v650
        %v2147 = vpop.f32.mrf.mxu0
        %v2148 = vadd.f32 %v638, %v2147
        %v2149 = vpop.f32.mrf.mxu0
        %2150 = vdwg.mxu0
        %v2151 = vmax.f32 %v2133, 0.0
        %v2152 = vmax.f32 %v2138, 0.0
        %v2153 = vmax.f32 %v2143, 0.0
        %v2154 = vmax.f32 %v2148, 0.0
        %v2155 = vmul.f32 %v2151, %v743
        %v2156 = vmul.f32 %v2152, %v747
        %v2157 = vmul.f32 %v2153, %v751
        %v2158 = vmul.f32 %v2154, %v755
        %v2159 = vadd.f32 %v2155, %v2156
        %v2160 = vadd.f32 %v2159, %v2157
        %v2161 = vadd.f32 %v2160, %v2158
        %v2162 = vrot.slane %v2161, 4
        %v2163 = vadd.f32 %v2161, %v2162
        %v2164 = vrot.slane %v2163, 2
        %v2165 = vadd.f32 %v2163, %v2164
        %v2166 = vrot.slane %v2165, 1
        %v2167 = vadd.f32 %v2165, %v2166
        %2168 = vset.pattern.permute.xlu0 9
        %2169 = vperm.xlu0 %2168, %v516
        %v2170 = vpop.permute.xlu0 %2169
        %2172 = vset.pattern.permute.xlu0 9
        %2173 = vperm.xlu0 %2172, %v517
        %v2174 = vpop.permute.xlu0 %2173
        %2176 = vset.pattern.permute.xlu0 9
        %2177 = vperm.xlu0 %2176, %v518
        %v2178 = vpop.permute.xlu0 %2177
        %2180 = vset.pattern.permute.xlu0 9
        %2181 = vperm.xlu0 %2180, %v519
        %v2182 = vpop.permute.xlu0 %2181
        %2184 = vset.pattern.permute.xlu0 9
        %2185 = vperm.xlu0 %2184, %v520
        %v2186 = vpop.permute.xlu0 %2185
        %2188 = vset.pattern.permute.xlu0 9
        %2189 = vperm.xlu0 %2188, %v521
        %v2190 = vpop.permute.xlu0 %2189
        %2192 = vset.pattern.permute.xlu0 9
        %2193 = vperm.xlu0 %2192, %v522
        %v2194 = vpop.permute.xlu0 %2193
        %2196 = vset.pattern.permute.xlu0 9
        %2197 = vperm.xlu0 %2196, %v523
        %v2198 = vpop.permute.xlu0 %2197
        %v2200 = vadd.f32 %v361, %v2170
        %v2201 = vadd.f32 %v366, %v2174
        %v2202 = vadd.f32 %v371, %v2178
        %v2203 = vadd.f32 %v376, %v2182
        %v2204 = vadd.f32 %v381, %v2186
        %v2205 = vadd.f32 %v386, %v2190
        %v2206 = vadd.f32 %v391, %v2194
        %v2207 = vadd.f32 %v396, %v2198
        %v2208 = vmax.f32 %v2200, 0.0
        %v2209 = vmax.f32 %v2201, 0.0
        %v2210 = vmax.f32 %v2202, 0.0
        %v2211 = vmax.f32 %v2203, 0.0
        %v2212 = vmax.f32 %v2204, 0.0
        %v2213 = vmax.f32 %v2205, 0.0
        %v2214 = vmax.f32 %v2206, 0.0
        %v2215 = vmax.f32 %v2207, 0.0
        %2216 = vmatprep.subr.mxu0 0.0
        %2217 = vmatpush1.msra.mxu0 0.0
        %2218 = vmatprep.subr.mxu0 0.0
        %2219 = vmatpush1.msra.mxu0 0.0
        %2220 = vmatprep.subr.mxu0 0.0
        %2221 = vmatpush1.msra.mxu0 0.0
        %2222 = vmatprep.subr.mxu0 0.0
        %2223 = vmatpush1.msra.mxu0 0.0
        %2224 = vmatprep.subr.mxu0 0.0
        %2225 = vmatpush1.msra.mxu0 0.0
        %2226 = vmatprep.subr.mxu0 0.0
        %2227 = vmatpush1.msra.mxu0 0.0
        %2228 = vmatprep.subr.mxu0 0.0
        %2229 = vmatpush1.msra.mxu0 0.0
        %2230 = vmatprep.subr.mxu0 0.0
        %2231 = vmatpush1.msra.mxu0 0.0
        %2232 = vmatprep.subr.mxu0 0.0
        %2233 = vmatpush1.msra.mxu0 %v2215
        %2234 = vmatprep.subr.mxu0 0.0
        %2235 = vmatpush1.msra.mxu0 %v2214
        %2236 = vmatprep.subr.mxu0 0.0
        %2237 = vmatpush1.msra.mxu0 %v2213
        %2238 = vmatprep.subr.mxu0 0.0
        %2239 = vmatpush1.msra.mxu0 %v2212
        %2240 = vmatprep.subr.mxu0 0.0
        %2241 = vmatpush1.msra.mxu0 %v2211
        %2242 = vmatprep.subr.mxu0 0.0
        %2243 = vmatpush1.msra.mxu0 %v2210
        %2244 = vmatprep.subr.mxu0 0.0
        %2245 = vmatpush1.msra.mxu0 %v2209
        %2246 = vmatprep.subr.mxu0 0.0
        %2247 = vmatpush1.msra.mxu0 %v2208
        %2248 = vmatprep.subr.mxu0 0.0
        %2249 = vmatpush2.msra.mxu0 0.0
        %2250 = vmatprep.subr.mxu0 0.0
        %2251 = vmatpush2.msra.mxu0 0.0
        %2252 = vmatprep.subr.mxu0 0.0
        %2253 = vmatpush2.msra.mxu0 0.0
        %2254 = vmatprep.subr.mxu0 0.0
        %2255 = vmatpush2.msra.mxu0 0.0
        %2256 = vmatprep.subr.mxu0 0.0
        %2257 = vmatpush2.msra.mxu0 0.0
        %2258 = vmatprep.subr.mxu0 0.0
        %2259 = vmatpush2.msra.mxu0 0.0
        %2260 = vmatprep.subr.mxu0 0.0
        %2261 = vmatpush2.msra.mxu0 0.0
        %2262 = vmatprep.subr.mxu0 0.0
        %2263 = vmatpush2.msra.mxu0 0.0
        %2264 = vmatprep.subr.mxu0 0.0
        %2265 = vmatpush2.msra.mxu0 0.0
        %2266 = vmatprep.subr.mxu0 0.0
        %2267 = vmatpush2.msra.mxu0 0.0
        %2268 = vmatprep.subr.mxu0 0.0
        %2269 = vmatpush2.msra.mxu0 0.0
        %2270 = vmatprep.subr.mxu0 0.0
        %2271 = vmatpush2.msra.mxu0 0.0
        %2272 = vmatprep.subr.mxu0 0.0
        %2273 = vmatpush2.msra.mxu0 0.0
        %2274 = vmatprep.subr.mxu0 0.0
        %2275 = vmatpush2.msra.mxu0 0.0
        %2276 = vmatprep.subr.mxu0 0.0
        %2277 = vmatpush2.msra.mxu0 0.0
        %2278 = vmatprep.subr.mxu0 0.0
        %2279 = vmatpush2.msra.mxu0 0.0
        %2280 = vmatprep.mubr.f32.mxu0 0.0
        %2281 = vmatmul.mubr.f32.gmra.mxu0 %v641
        %v2282 = vpop.f32.mrf.mxu0
        %v2283 = vadd.f32 %v623, %v2282
        %v2284 = vpop.f32.mrf.mxu0
        %2285 = vmatprep.mubr.f32.mxu0 0.0
        %2286 = vmatmul.mubr.f32.gmra.mxu0 %v644
        %v2287 = vpop.f32.mrf.mxu0
        %v2288 = vadd.f32 %v628, %v2287
        %v2289 = vpop.f32.mrf.mxu0
        %2290 = vmatprep.mubr.f32.mxu0 0.0
        %2291 = vmatmul.mubr.f32.gmra.mxu0 %v647
        %v2292 = vpop.f32.mrf.mxu0
        %v2293 = vadd.f32 %v633, %v2292
        %v2294 = vpop.f32.mrf.mxu0
        %2295 = vmatprep.mubr.f32.mxu0 0.0
        %2296 = vmatmul.mubr.f32.gmra.mxu0 %v650
        %v2297 = vpop.f32.mrf.mxu0
        %v2298 = vadd.f32 %v638, %v2297
        %v2299 = vpop.f32.mrf.mxu0
        %2300 = vdwg.mxu0
        %v2301 = vmax.f32 %v2283, 0.0
        %v2302 = vmax.f32 %v2288, 0.0
        %v2303 = vmax.f32 %v2293, 0.0
        %v2304 = vmax.f32 %v2298, 0.0
        %v2305 = vmul.f32 %v2301, %v743
        %v2306 = vmul.f32 %v2302, %v747
        %v2307 = vmul.f32 %v2303, %v751
        %v2308 = vmul.f32 %v2304, %v755
        %v2309 = vadd.f32 %v2305, %v2306
        %v2310 = vadd.f32 %v2309, %v2307
        %v2311 = vadd.f32 %v2310, %v2308
        %v2312 = vrot.slane %v2311, 4
        %v2313 = vadd.f32 %v2311, %v2312
        %v2314 = vrot.slane %v2313, 2
        %v2315 = vadd.f32 %v2313, %v2314
        %v2316 = vrot.slane %v2315, 1
        %v2317 = vadd.f32 %v2315, %v2316
        %v2318 = vsel %vm1370, %v1717, %v1867
        %v2319 = vsel %vm1372, %v2318, %v2017
        %v2320 = vsel %vm1374, %v2319, %v2167
        %v2321 = vsel %vm1376, %v2320, %v2317
        %v2322 = vsel %vm1378, %v2321, -inf
        %v2323 = vrot.slane %v2322, 4
        %v2324 = vmax.f32 %v2322, %v2323
        %v2325 = vrot.slane %v2324, 2
        %v2326 = vmax.f32 %v2324, %v2325
        %v2327 = vrot.slane %v2326, 1
        %v2328 = vmax.f32 %v2326, %v2327
        %v2329 = vsub.f32 %v2321, %v2328
        %v2330 = vmul.f32 %v2329, 1.442695
        %v2331 = vpow.pop %v2330
        %v2332 = vsel %vm1378, %v2331, 0.0
        %v2333 = vrot.slane %v2332, 4
        %v2334 = vadd.f32 %v2332, %v2333
        %v2335 = vrot.slane %v2334, 2
        %v2336 = vadd.f32 %v2334, %v2335
        %v2337 = vrot.slane %v2336, 1
        %v2338 = vadd.f32 %v2336, %v2337
        %v2339 = vrcp.pop %v2338
        %v2340 = vmul.f32 %v2331, %v2339
        %2341 = vrot.lane.b32.xlu0 %v548, 123
        %v2342 = vpop.permute.xlu0 %2341
        %2343 = vrot.lane.b32.xlu0 %v549, 123
        %v2344 = vpop.permute.xlu0 %2343
        %2345 = vrot.lane.b32.xlu0 %v550, 123
        %v2346 = vpop.permute.xlu0 %2345
        %2347 = vrot.lane.b32.xlu0 %v551, 123
        %v2348 = vpop.permute.xlu0 %2347
        %2349 = vrot.lane.b32.xlu0 %v552, 123
        %v2350 = vpop.permute.xlu0 %2349
        %2351 = vrot.lane.b32.xlu0 %v553, 123
        %v2352 = vpop.permute.xlu0 %2351
        %2353 = vrot.lane.b32.xlu0 %v554, 123
        %v2354 = vpop.permute.xlu0 %2353
        %2355 = vrot.lane.b32.xlu0 %v555, 123
        %v2356 = vpop.permute.xlu0 %2355
        %v2357 = vsel %vm1398, %v2342, 0
        %v2359 = vsel %vm1398, %v2344, 0
        %v2361 = vsel %vm1398, %v2346, 0
        %v2363 = vsel %vm1398, %v2348, 0
        %v2365 = vsel %vm1398, %v2350, 0
        %v2367 = vsel %vm1398, %v2352, 0
        %v2369 = vsel %vm1398, %v2354, 0
        %v2371 = vsel %vm1398, %v2356, 0
        %v2374 = vsel %vm1378, %v2340, 0
        %2376 = vmatprep.subr.mxu0 0.0
        %2377 = vmatpush1.msra.mxu0 0.0
        %2378 = vmatprep.subr.mxu0 0.0
        %2379 = vmatpush1.msra.mxu0 0.0
        %2380 = vmatprep.subr.mxu0 0.0
        %2381 = vmatpush1.msra.mxu0 0.0
        %2382 = vmatprep.subr.mxu0 0.0
        %2383 = vmatpush1.msra.mxu0 0.0
        %2384 = vmatprep.subr.mxu0 0.0
        %2385 = vmatpush1.msra.mxu0 0.0
        %2386 = vmatprep.subr.mxu0 0.0
        %2387 = vmatpush1.msra.mxu0 0.0
        %2388 = vmatprep.subr.mxu0 0.0
        %2389 = vmatpush1.msra.mxu0 0.0
        %2390 = vmatprep.subr.mxu0 0.0
        %2391 = vmatpush1.msra.mxu0 0.0
        %2392 = vmatprep.subr.mxu0 0.0
        %2393 = vmatpush1.msra.mxu0 0.0
        %2394 = vmatprep.subr.mxu0 0.0
        %2395 = vmatpush1.msra.mxu0 0.0
        %2396 = vmatprep.subr.mxu0 0.0
        %2397 = vmatpush1.msra.mxu0 0.0
        %2398 = vmatprep.subr.mxu0 0.0
        %2399 = vmatpush1.msra.mxu0 0.0
        %2400 = vmatprep.subr.mxu0 0.0
        %2401 = vmatpush1.msra.mxu0 0.0
        %2402 = vmatprep.subr.mxu0 0.0
        %2403 = vmatpush1.msra.mxu0 0.0
        %2404 = vmatprep.subr.mxu0 0.0
        %2405 = vmatpush1.msra.mxu0 0.0
        %2406 = vmatprep.subr.mxu0 0.0
        %2407 = vmatpush1.msra.mxu0 %v2374
        %2408 = vmatprep.subr.mxu0 0.0
        %2409 = vmatpush2.msra.mxu0 0.0
        %2410 = vmatprep.subr.mxu0 0.0
        %2411 = vmatpush2.msra.mxu0 0.0
        %2412 = vmatprep.subr.mxu0 0.0
        %2413 = vmatpush2.msra.mxu0 0.0
        %2414 = vmatprep.subr.mxu0 0.0
        %2415 = vmatpush2.msra.mxu0 0.0
        %2416 = vmatprep.subr.mxu0 0.0
        %2417 = vmatpush2.msra.mxu0 0.0
        %2418 = vmatprep.subr.mxu0 0.0
        %2419 = vmatpush2.msra.mxu0 0.0
        %2420 = vmatprep.subr.mxu0 0.0
        %2421 = vmatpush2.msra.mxu0 0.0
        %2422 = vmatprep.subr.mxu0 0.0
        %2423 = vmatpush2.msra.mxu0 0.0
        %2424 = vmatprep.subr.mxu0 0.0
        %2425 = vmatpush2.msra.mxu0 0.0
        %2426 = vmatprep.subr.mxu0 0.0
        %2427 = vmatpush2.msra.mxu0 0.0
        %2428 = vmatprep.subr.mxu0 0.0
        %2429 = vmatpush2.msra.mxu0 0.0
        %2430 = vmatprep.subr.mxu0 0.0
        %2431 = vmatpush2.msra.mxu0 0.0
        %2432 = vmatprep.subr.mxu0 0.0
        %2433 = vmatpush2.msra.mxu0 0.0
        %2434 = vmatprep.subr.mxu0 0.0
        %2435 = vmatpush2.msra.mxu0 0.0
        %2436 = vmatprep.subr.mxu0 0.0
        %2437 = vmatpush2.msra.mxu0 0.0
        %2438 = vmatprep.subr.mxu0 0.0
        %2439 = vmatpush2.msra.mxu0 0.0
        %2440 = vmatprep.mubr.f32.mxu0 0.0
        %2441 = vmatmul.mubr.f32.gmra.mxu0 %v2357
        %v2442 = vpop.f32.mrf.mxu0
        %v2443 = vadd.f32 0.0, %v2442
        %v2444 = vpop.f32.mrf.mxu0
        %2445 = vmatprep.mubr.f32.mxu0 0.0
        %2446 = vmatmul.mubr.f32.gmra.mxu0 %v2359
        %v2447 = vpop.f32.mrf.mxu0
        %v2448 = vadd.f32 0.0, %v2447
        %v2449 = vpop.f32.mrf.mxu0
        %2450 = vmatprep.mubr.f32.mxu0 0.0
        %2451 = vmatmul.mubr.f32.gmra.mxu0 %v2361
        %v2452 = vpop.f32.mrf.mxu0
        %v2453 = vadd.f32 0.0, %v2452
        %v2454 = vpop.f32.mrf.mxu0
        %2455 = vmatprep.mubr.f32.mxu0 0.0
        %2456 = vmatmul.mubr.f32.gmra.mxu0 %v2363
        %v2457 = vpop.f32.mrf.mxu0
        %v2458 = vadd.f32 0.0, %v2457
        %v2459 = vpop.f32.mrf.mxu0
        %2460 = vmatprep.mubr.f32.mxu0 0.0
        %2461 = vmatmul.mubr.f32.gmra.mxu0 %v2365
        %v2462 = vpop.f32.mrf.mxu0
        %v2463 = vadd.f32 0.0, %v2462
        %v2464 = vpop.f32.mrf.mxu0
        %2465 = vmatprep.mubr.f32.mxu0 0.0
        %2466 = vmatmul.mubr.f32.gmra.mxu0 %v2367
        %v2467 = vpop.f32.mrf.mxu0
        %v2468 = vadd.f32 0.0, %v2467
        %v2469 = vpop.f32.mrf.mxu0
        %2470 = vmatprep.mubr.f32.mxu0 0.0
        %2471 = vmatmul.mubr.f32.gmra.mxu0 %v2369
        %v2472 = vpop.f32.mrf.mxu0
        %v2473 = vadd.f32 0.0, %v2472
        %v2474 = vpop.f32.mrf.mxu0
        %2475 = vmatprep.mubr.f32.mxu0 0.0
        %2476 = vmatmul.mubr.f32.gmra.mxu0 %v2371
        %v2477 = vpop.f32.mrf.mxu0
        %v2478 = vadd.f32 0.0, %v2477
        %v2479 = vpop.f32.mrf.mxu0
        %2480 = vdwg.mxu0
        %v2481 = vsub.f32 %v232, %v2443
        %v2482 = vsub.f32 %v233, %v2448
        %v2483 = vsub.f32 %v234, %v2453
        %v2484 = vsub.f32 %v235, %v2458
        %v2485 = vsub.f32 %v236, %v2463
        %v2486 = vsub.f32 %v237, %v2468
        %v2487 = vsub.f32 %v238, %v2473
        %v2488 = vsub.f32 %v239, %v2478
        %v2489 = vmul.f32 %v2481, %v2481
        %v2490 = vmul.f32 %v2482, %v2482
        %v2491 = vmul.f32 %v2483, %v2483
        %v2492 = vmul.f32 %v2484, %v2484
        %v2493 = vmul.f32 %v2485, %v2485
        %v2494 = vmul.f32 %v2486, %v2486
        %v2495 = vmul.f32 %v2487, %v2487
        %v2496 = vmul.f32 %v2488, %v2488
        %v2497 = vadd.f32 %v2489, %v2490
        %v2498 = vadd.f32 %v2497, %v2491
        %v2499 = vadd.f32 %v2498, %v2492
        %v2500 = vadd.f32 %v2499, %v2493
        %v2501 = vadd.f32 %v2500, %v2494
        %v2502 = vadd.f32 %v2501, %v2495
        %v2503 = vadd.f32 %v2502, %v2496
        %v2504 = vrot.slane %v2503, 4
        %v2505 = vadd.f32 %v2503, %v2504
        %v2506 = vrot.slane %v2505, 2
        %v2507 = vadd.f32 %v2505, %v2506
        %v2508 = vrot.slane %v2507, 1
        %v2509 = vadd.f32 %v2507, %v2508
        %v2510 = vrsqrt.pop %v2509
        %v2511 = vmul.f32 %v2509, %v2510
        %vm2512 = vcmp.eq.f32.partialorder %v2509, inf
        %v2513 = vsel %vm2512, %v2509, %v2511
        %vm2514 = vcmp.eq.f32.partialorder %v2509, 0.0
        %v2515 = vand.u32 %v2509, 2147483648
        %v2516 = vsel %vm2514, %v2515, %v2513
        %v2517 = vsub.f32 0.0, %v2516
        %2518 = vset.pattern.permute.xlu0 10
        %2519 = vperm.xlu0 %2518, %v516
        %v2520 = vpop.permute.xlu0 %2519
        %2522 = vset.pattern.permute.xlu0 10
        %2523 = vperm.xlu0 %2522, %v517
        %v2524 = vpop.permute.xlu0 %2523
        %2526 = vset.pattern.permute.xlu0 10
        %2527 = vperm.xlu0 %2526, %v518
        %v2528 = vpop.permute.xlu0 %2527
        %2530 = vset.pattern.permute.xlu0 10
        %2531 = vperm.xlu0 %2530, %v519
        %v2532 = vpop.permute.xlu0 %2531
        %2534 = vset.pattern.permute.xlu0 10
        %2535 = vperm.xlu0 %2534, %v520
        %v2536 = vpop.permute.xlu0 %2535
        %2538 = vset.pattern.permute.xlu0 10
        %2539 = vperm.xlu0 %2538, %v521
        %v2540 = vpop.permute.xlu0 %2539
        %2542 = vset.pattern.permute.xlu0 10
        %2543 = vperm.xlu0 %2542, %v522
        %v2544 = vpop.permute.xlu0 %2543
        %2546 = vset.pattern.permute.xlu0 10
        %2547 = vperm.xlu0 %2546, %v523
        %v2548 = vpop.permute.xlu0 %2547
        %v2550 = vadd.f32 %v361, %v2520
        %v2551 = vadd.f32 %v366, %v2524
        %v2552 = vadd.f32 %v371, %v2528
        %v2553 = vadd.f32 %v376, %v2532
        %v2554 = vadd.f32 %v381, %v2536
        %v2555 = vadd.f32 %v386, %v2540
        %v2556 = vadd.f32 %v391, %v2544
        %v2557 = vadd.f32 %v396, %v2548
        %v2558 = vmax.f32 %v2550, 0.0
        %v2559 = vmax.f32 %v2551, 0.0
        %v2560 = vmax.f32 %v2552, 0.0
        %v2561 = vmax.f32 %v2553, 0.0
        %v2562 = vmax.f32 %v2554, 0.0
        %v2563 = vmax.f32 %v2555, 0.0
        %v2564 = vmax.f32 %v2556, 0.0
        %v2565 = vmax.f32 %v2557, 0.0
        %2566 = vmatprep.subr.mxu0 0.0
        %2567 = vmatpush1.msra.mxu0 0.0
        %2568 = vmatprep.subr.mxu0 0.0
        %2569 = vmatpush1.msra.mxu0 0.0
        %2570 = vmatprep.subr.mxu0 0.0
        %2571 = vmatpush1.msra.mxu0 0.0
        %2572 = vmatprep.subr.mxu0 0.0
        %2573 = vmatpush1.msra.mxu0 0.0
        %2574 = vmatprep.subr.mxu0 0.0
        %2575 = vmatpush1.msra.mxu0 0.0
        %2576 = vmatprep.subr.mxu0 0.0
        %2577 = vmatpush1.msra.mxu0 0.0
        %2578 = vmatprep.subr.mxu0 0.0
        %2579 = vmatpush1.msra.mxu0 0.0
        %2580 = vmatprep.subr.mxu0 0.0
        %2581 = vmatpush1.msra.mxu0 0.0
        %2582 = vmatprep.subr.mxu0 0.0
        %2583 = vmatpush1.msra.mxu0 %v2565
        %2584 = vmatprep.subr.mxu0 0.0
        %2585 = vmatpush1.msra.mxu0 %v2564
        %2586 = vmatprep.subr.mxu0 0.0
        %2587 = vmatpush1.msra.mxu0 %v2563
        %2588 = vmatprep.subr.mxu0 0.0
        %2589 = vmatpush1.msra.mxu0 %v2562
        %2590 = vmatprep.subr.mxu0 0.0
        %2591 = vmatpush1.msra.mxu0 %v2561
        %2592 = vmatprep.subr.mxu0 0.0
        %2593 = vmatpush1.msra.mxu0 %v2560
        %2594 = vmatprep.subr.mxu0 0.0
        %2595 = vmatpush1.msra.mxu0 %v2559
        %2596 = vmatprep.subr.mxu0 0.0
        %2597 = vmatpush1.msra.mxu0 %v2558
        %2598 = vmatprep.subr.mxu0 0.0
        %2599 = vmatpush2.msra.mxu0 0.0
        %2600 = vmatprep.subr.mxu0 0.0
        %2601 = vmatpush2.msra.mxu0 0.0
        %2602 = vmatprep.subr.mxu0 0.0
        %2603 = vmatpush2.msra.mxu0 0.0
        %2604 = vmatprep.subr.mxu0 0.0
        %2605 = vmatpush2.msra.mxu0 0.0
        %2606 = vmatprep.subr.mxu0 0.0
        %2607 = vmatpush2.msra.mxu0 0.0
        %2608 = vmatprep.subr.mxu0 0.0
        %2609 = vmatpush2.msra.mxu0 0.0
        %2610 = vmatprep.subr.mxu0 0.0
        %2611 = vmatpush2.msra.mxu0 0.0
        %2612 = vmatprep.subr.mxu0 0.0
        %2613 = vmatpush2.msra.mxu0 0.0
        %2614 = vmatprep.subr.mxu0 0.0
        %2615 = vmatpush2.msra.mxu0 0.0
        %2616 = vmatprep.subr.mxu0 0.0
        %2617 = vmatpush2.msra.mxu0 0.0
        %2618 = vmatprep.subr.mxu0 0.0
        %2619 = vmatpush2.msra.mxu0 0.0
        %2620 = vmatprep.subr.mxu0 0.0
        %2621 = vmatpush2.msra.mxu0 0.0
        %2622 = vmatprep.subr.mxu0 0.0
        %2623 = vmatpush2.msra.mxu0 0.0
        %2624 = vmatprep.subr.mxu0 0.0
        %2625 = vmatpush2.msra.mxu0 0.0
        %2626 = vmatprep.subr.mxu0 0.0
        %2627 = vmatpush2.msra.mxu0 0.0
        %2628 = vmatprep.subr.mxu0 0.0
        %2629 = vmatpush2.msra.mxu0 0.0
        %2630 = vmatprep.mubr.f32.mxu0 0.0
        %2631 = vmatmul.mubr.f32.gmra.mxu0 %v641
        %v2632 = vpop.f32.mrf.mxu0
        %v2633 = vadd.f32 %v623, %v2632
        %v2634 = vpop.f32.mrf.mxu0
        %2635 = vmatprep.mubr.f32.mxu0 0.0
        %2636 = vmatmul.mubr.f32.gmra.mxu0 %v644
        %v2637 = vpop.f32.mrf.mxu0
        %v2638 = vadd.f32 %v628, %v2637
        %v2639 = vpop.f32.mrf.mxu0
        %2640 = vmatprep.mubr.f32.mxu0 0.0
        %2641 = vmatmul.mubr.f32.gmra.mxu0 %v647
        %v2642 = vpop.f32.mrf.mxu0
        %v2643 = vadd.f32 %v633, %v2642
        %v2644 = vpop.f32.mrf.mxu0
        %2645 = vmatprep.mubr.f32.mxu0 0.0
        %2646 = vmatmul.mubr.f32.gmra.mxu0 %v650
        %v2647 = vpop.f32.mrf.mxu0
        %v2648 = vadd.f32 %v638, %v2647
        %v2649 = vpop.f32.mrf.mxu0
        %2650 = vdwg.mxu0
        %v2651 = vmax.f32 %v2633, 0.0
        %v2652 = vmax.f32 %v2638, 0.0
        %v2653 = vmax.f32 %v2643, 0.0
        %v2654 = vmax.f32 %v2648, 0.0
        %v2655 = vmul.f32 %v2651, %v743
        %v2656 = vmul.f32 %v2652, %v747
        %v2657 = vmul.f32 %v2653, %v751
        %v2658 = vmul.f32 %v2654, %v755
        %v2659 = vadd.f32 %v2655, %v2656
        %v2660 = vadd.f32 %v2659, %v2657
        %v2661 = vadd.f32 %v2660, %v2658
        %v2662 = vrot.slane %v2661, 4
        %v2663 = vadd.f32 %v2661, %v2662
        %v2664 = vrot.slane %v2663, 2
        %v2665 = vadd.f32 %v2663, %v2664
        %v2666 = vrot.slane %v2665, 1
        %v2667 = vadd.f32 %v2665, %v2666
        %2668 = vset.pattern.permute.xlu0 11
        %2669 = vperm.xlu0 %2668, %v516
        %v2670 = vpop.permute.xlu0 %2669
        %2672 = vset.pattern.permute.xlu0 11
        %2673 = vperm.xlu0 %2672, %v517
        %v2674 = vpop.permute.xlu0 %2673
        %2676 = vset.pattern.permute.xlu0 11
        %2677 = vperm.xlu0 %2676, %v518
        %v2678 = vpop.permute.xlu0 %2677
        %2680 = vset.pattern.permute.xlu0 11
        %2681 = vperm.xlu0 %2680, %v519
        %v2682 = vpop.permute.xlu0 %2681
        %2684 = vset.pattern.permute.xlu0 11
        %2685 = vperm.xlu0 %2684, %v520
        %v2686 = vpop.permute.xlu0 %2685
        %2688 = vset.pattern.permute.xlu0 11
        %2689 = vperm.xlu0 %2688, %v521
        %v2690 = vpop.permute.xlu0 %2689
        %2692 = vset.pattern.permute.xlu0 11
        %2693 = vperm.xlu0 %2692, %v522
        %v2694 = vpop.permute.xlu0 %2693
        %2696 = vset.pattern.permute.xlu0 11
        %2697 = vperm.xlu0 %2696, %v523
        %v2698 = vpop.permute.xlu0 %2697
        %v2700 = vadd.f32 %v361, %v2670
        %v2701 = vadd.f32 %v366, %v2674
        %v2702 = vadd.f32 %v371, %v2678
        %v2703 = vadd.f32 %v376, %v2682
        %v2704 = vadd.f32 %v381, %v2686
        %v2705 = vadd.f32 %v386, %v2690
        %v2706 = vadd.f32 %v391, %v2694
        %v2707 = vadd.f32 %v396, %v2698
        %v2708 = vmax.f32 %v2700, 0.0
        %v2709 = vmax.f32 %v2701, 0.0
        %v2710 = vmax.f32 %v2702, 0.0
        %v2711 = vmax.f32 %v2703, 0.0
        %v2712 = vmax.f32 %v2704, 0.0
        %v2713 = vmax.f32 %v2705, 0.0
        %v2714 = vmax.f32 %v2706, 0.0
        %v2715 = vmax.f32 %v2707, 0.0
        %2716 = vmatprep.subr.mxu0 0.0
        %2717 = vmatpush1.msra.mxu0 0.0
        %2718 = vmatprep.subr.mxu0 0.0
        %2719 = vmatpush1.msra.mxu0 0.0
        %2720 = vmatprep.subr.mxu0 0.0
        %2721 = vmatpush1.msra.mxu0 0.0
        %2722 = vmatprep.subr.mxu0 0.0
        %2723 = vmatpush1.msra.mxu0 0.0
        %2724 = vmatprep.subr.mxu0 0.0
        %2725 = vmatpush1.msra.mxu0 0.0
        %2726 = vmatprep.subr.mxu0 0.0
        %2727 = vmatpush1.msra.mxu0 0.0
        %2728 = vmatprep.subr.mxu0 0.0
        %2729 = vmatpush1.msra.mxu0 0.0
        %2730 = vmatprep.subr.mxu0 0.0
        %2731 = vmatpush1.msra.mxu0 0.0
        %2732 = vmatprep.subr.mxu0 0.0
        %2733 = vmatpush1.msra.mxu0 %v2715
        %2734 = vmatprep.subr.mxu0 0.0
        %2735 = vmatpush1.msra.mxu0 %v2714
        %2736 = vmatprep.subr.mxu0 0.0
        %2737 = vmatpush1.msra.mxu0 %v2713
        %2738 = vmatprep.subr.mxu0 0.0
        %2739 = vmatpush1.msra.mxu0 %v2712
        %2740 = vmatprep.subr.mxu0 0.0
        %2741 = vmatpush1.msra.mxu0 %v2711
        %2742 = vmatprep.subr.mxu0 0.0
        %2743 = vmatpush1.msra.mxu0 %v2710
        %2744 = vmatprep.subr.mxu0 0.0
        %2745 = vmatpush1.msra.mxu0 %v2709
        %2746 = vmatprep.subr.mxu0 0.0
        %2747 = vmatpush1.msra.mxu0 %v2708
        %2748 = vmatprep.subr.mxu0 0.0
        %2749 = vmatpush2.msra.mxu0 0.0
        %2750 = vmatprep.subr.mxu0 0.0
        %2751 = vmatpush2.msra.mxu0 0.0
        %2752 = vmatprep.subr.mxu0 0.0
        %2753 = vmatpush2.msra.mxu0 0.0
        %2754 = vmatprep.subr.mxu0 0.0
        %2755 = vmatpush2.msra.mxu0 0.0
        %2756 = vmatprep.subr.mxu0 0.0
        %2757 = vmatpush2.msra.mxu0 0.0
        %2758 = vmatprep.subr.mxu0 0.0
        %2759 = vmatpush2.msra.mxu0 0.0
        %2760 = vmatprep.subr.mxu0 0.0
        %2761 = vmatpush2.msra.mxu0 0.0
        %2762 = vmatprep.subr.mxu0 0.0
        %2763 = vmatpush2.msra.mxu0 0.0
        %2764 = vmatprep.subr.mxu0 0.0
        %2765 = vmatpush2.msra.mxu0 0.0
        %2766 = vmatprep.subr.mxu0 0.0
        %2767 = vmatpush2.msra.mxu0 0.0
        %2768 = vmatprep.subr.mxu0 0.0
        %2769 = vmatpush2.msra.mxu0 0.0
        %2770 = vmatprep.subr.mxu0 0.0
        %2771 = vmatpush2.msra.mxu0 0.0
        %2772 = vmatprep.subr.mxu0 0.0
        %2773 = vmatpush2.msra.mxu0 0.0
        %2774 = vmatprep.subr.mxu0 0.0
        %2775 = vmatpush2.msra.mxu0 0.0
        %2776 = vmatprep.subr.mxu0 0.0
        %2777 = vmatpush2.msra.mxu0 0.0
        %2778 = vmatprep.subr.mxu0 0.0
        %2779 = vmatpush2.msra.mxu0 0.0
        %2780 = vmatprep.mubr.f32.mxu0 0.0
        %2781 = vmatmul.mubr.f32.gmra.mxu0 %v641
        %v2782 = vpop.f32.mrf.mxu0
        %v2783 = vadd.f32 %v623, %v2782
        %v2784 = vpop.f32.mrf.mxu0
        %2785 = vmatprep.mubr.f32.mxu0 0.0
        %2786 = vmatmul.mubr.f32.gmra.mxu0 %v644
        %v2787 = vpop.f32.mrf.mxu0
        %v2788 = vadd.f32 %v628, %v2787
        %v2789 = vpop.f32.mrf.mxu0
        %2790 = vmatprep.mubr.f32.mxu0 0.0
        %2791 = vmatmul.mubr.f32.gmra.mxu0 %v647
        %v2792 = vpop.f32.mrf.mxu0
        %v2793 = vadd.f32 %v633, %v2792
        %v2794 = vpop.f32.mrf.mxu0
        %2795 = vmatprep.mubr.f32.mxu0 0.0
        %2796 = vmatmul.mubr.f32.gmra.mxu0 %v650
        %v2797 = vpop.f32.mrf.mxu0
        %v2798 = vadd.f32 %v638, %v2797
        %v2799 = vpop.f32.mrf.mxu0
        %2800 = vdwg.mxu0
        %v2801 = vmax.f32 %v2783, 0.0
        %v2802 = vmax.f32 %v2788, 0.0
        %v2803 = vmax.f32 %v2793, 0.0
        %v2804 = vmax.f32 %v2798, 0.0
        %v2805 = vmul.f32 %v2801, %v743
        %v2806 = vmul.f32 %v2802, %v747
        %v2807 = vmul.f32 %v2803, %v751
        %v2808 = vmul.f32 %v2804, %v755
        %v2809 = vadd.f32 %v2805, %v2806
        %v2810 = vadd.f32 %v2809, %v2807
        %v2811 = vadd.f32 %v2810, %v2808
        %v2812 = vrot.slane %v2811, 4
        %v2813 = vadd.f32 %v2811, %v2812
        %v2814 = vrot.slane %v2813, 2
        %v2815 = vadd.f32 %v2813, %v2814
        %v2816 = vrot.slane %v2815, 1
        %v2817 = vadd.f32 %v2815, %v2816
        %2818 = vset.pattern.permute.xlu0 12
        %2819 = vperm.xlu0 %2818, %v516
        %v2820 = vpop.permute.xlu0 %2819
        %2822 = vset.pattern.permute.xlu0 12
        %2823 = vperm.xlu0 %2822, %v517
        %v2824 = vpop.permute.xlu0 %2823
        %2826 = vset.pattern.permute.xlu0 12
        %2827 = vperm.xlu0 %2826, %v518
        %v2828 = vpop.permute.xlu0 %2827
        %2830 = vset.pattern.permute.xlu0 12
        %2831 = vperm.xlu0 %2830, %v519
        %v2832 = vpop.permute.xlu0 %2831
        %2834 = vset.pattern.permute.xlu0 12
        %2835 = vperm.xlu0 %2834, %v520
        %v2836 = vpop.permute.xlu0 %2835
        %2838 = vset.pattern.permute.xlu0 12
        %2839 = vperm.xlu0 %2838, %v521
        %v2840 = vpop.permute.xlu0 %2839
        %2842 = vset.pattern.permute.xlu0 12
        %2843 = vperm.xlu0 %2842, %v522
        %v2844 = vpop.permute.xlu0 %2843
        %2846 = vset.pattern.permute.xlu0 12
        %2847 = vperm.xlu0 %2846, %v523
        %v2848 = vpop.permute.xlu0 %2847
        %v2850 = vadd.f32 %v361, %v2820
        %v2851 = vadd.f32 %v366, %v2824
        %v2852 = vadd.f32 %v371, %v2828
        %v2853 = vadd.f32 %v376, %v2832
        %v2854 = vadd.f32 %v381, %v2836
        %v2855 = vadd.f32 %v386, %v2840
        %v2856 = vadd.f32 %v391, %v2844
        %v2857 = vadd.f32 %v396, %v2848
        %v2858 = vmax.f32 %v2850, 0.0
        %v2859 = vmax.f32 %v2851, 0.0
        %v2860 = vmax.f32 %v2852, 0.0
        %v2861 = vmax.f32 %v2853, 0.0
        %v2862 = vmax.f32 %v2854, 0.0
        %v2863 = vmax.f32 %v2855, 0.0
        %v2864 = vmax.f32 %v2856, 0.0
        %v2865 = vmax.f32 %v2857, 0.0
        %2866 = vmatprep.subr.mxu0 0.0
        %2867 = vmatpush1.msra.mxu0 0.0
        %2868 = vmatprep.subr.mxu0 0.0
        %2869 = vmatpush1.msra.mxu0 0.0
        %2870 = vmatprep.subr.mxu0 0.0
        %2871 = vmatpush1.msra.mxu0 0.0
        %2872 = vmatprep.subr.mxu0 0.0
        %2873 = vmatpush1.msra.mxu0 0.0
        %2874 = vmatprep.subr.mxu0 0.0
        %2875 = vmatpush1.msra.mxu0 0.0
        %2876 = vmatprep.subr.mxu0 0.0
        %2877 = vmatpush1.msra.mxu0 0.0
        %2878 = vmatprep.subr.mxu0 0.0
        %2879 = vmatpush1.msra.mxu0 0.0
        %2880 = vmatprep.subr.mxu0 0.0
        %2881 = vmatpush1.msra.mxu0 0.0
        %2882 = vmatprep.subr.mxu0 0.0
        %2883 = vmatpush1.msra.mxu0 %v2865
        %2884 = vmatprep.subr.mxu0 0.0
        %2885 = vmatpush1.msra.mxu0 %v2864
        %2886 = vmatprep.subr.mxu0 0.0
        %2887 = vmatpush1.msra.mxu0 %v2863
        %2888 = vmatprep.subr.mxu0 0.0
        %2889 = vmatpush1.msra.mxu0 %v2862
        %2890 = vmatprep.subr.mxu0 0.0
        %2891 = vmatpush1.msra.mxu0 %v2861
        %2892 = vmatprep.subr.mxu0 0.0
        %2893 = vmatpush1.msra.mxu0 %v2860
        %2894 = vmatprep.subr.mxu0 0.0
        %2895 = vmatpush1.msra.mxu0 %v2859
        %2896 = vmatprep.subr.mxu0 0.0
        %2897 = vmatpush1.msra.mxu0 %v2858
        %2898 = vmatprep.subr.mxu0 0.0
        %2899 = vmatpush2.msra.mxu0 0.0
        %2900 = vmatprep.subr.mxu0 0.0
        %2901 = vmatpush2.msra.mxu0 0.0
        %2902 = vmatprep.subr.mxu0 0.0
        %2903 = vmatpush2.msra.mxu0 0.0
        %2904 = vmatprep.subr.mxu0 0.0
        %2905 = vmatpush2.msra.mxu0 0.0
        %2906 = vmatprep.subr.mxu0 0.0
        %2907 = vmatpush2.msra.mxu0 0.0
        %2908 = vmatprep.subr.mxu0 0.0
        %2909 = vmatpush2.msra.mxu0 0.0
        %2910 = vmatprep.subr.mxu0 0.0
        %2911 = vmatpush2.msra.mxu0 0.0
        %2912 = vmatprep.subr.mxu0 0.0
        %2913 = vmatpush2.msra.mxu0 0.0
        %2914 = vmatprep.subr.mxu0 0.0
        %2915 = vmatpush2.msra.mxu0 0.0
        %2916 = vmatprep.subr.mxu0 0.0
        %2917 = vmatpush2.msra.mxu0 0.0
        %2918 = vmatprep.subr.mxu0 0.0
        %2919 = vmatpush2.msra.mxu0 0.0
        %2920 = vmatprep.subr.mxu0 0.0
        %2921 = vmatpush2.msra.mxu0 0.0
        %2922 = vmatprep.subr.mxu0 0.0
        %2923 = vmatpush2.msra.mxu0 0.0
        %2924 = vmatprep.subr.mxu0 0.0
        %2925 = vmatpush2.msra.mxu0 0.0
        %2926 = vmatprep.subr.mxu0 0.0
        %2927 = vmatpush2.msra.mxu0 0.0
        %2928 = vmatprep.subr.mxu0 0.0
        %2929 = vmatpush2.msra.mxu0 0.0
        %2930 = vmatprep.mubr.f32.mxu0 0.0
        %2931 = vmatmul.mubr.f32.gmra.mxu0 %v641
        %v2932 = vpop.f32.mrf.mxu0
        %v2933 = vadd.f32 %v623, %v2932
        %v2934 = vpop.f32.mrf.mxu0
        %2935 = vmatprep.mubr.f32.mxu0 0.0
        %2936 = vmatmul.mubr.f32.gmra.mxu0 %v644
        %v2937 = vpop.f32.mrf.mxu0
        %v2938 = vadd.f32 %v628, %v2937
        %v2939 = vpop.f32.mrf.mxu0
        %2940 = vmatprep.mubr.f32.mxu0 0.0
        %2941 = vmatmul.mubr.f32.gmra.mxu0 %v647
        %v2942 = vpop.f32.mrf.mxu0
        %v2943 = vadd.f32 %v633, %v2942
        %v2944 = vpop.f32.mrf.mxu0
        %2945 = vmatprep.mubr.f32.mxu0 0.0
        %2946 = vmatmul.mubr.f32.gmra.mxu0 %v650
        %v2947 = vpop.f32.mrf.mxu0
        %v2948 = vadd.f32 %v638, %v2947
        %v2949 = vpop.f32.mrf.mxu0
        %2950 = vdwg.mxu0
        %v2951 = vmax.f32 %v2933, 0.0
        %v2952 = vmax.f32 %v2938, 0.0
        %v2953 = vmax.f32 %v2943, 0.0
        %v2954 = vmax.f32 %v2948, 0.0
        %v2955 = vmul.f32 %v2951, %v743
        %v2956 = vmul.f32 %v2952, %v747
        %v2957 = vmul.f32 %v2953, %v751
        %v2958 = vmul.f32 %v2954, %v755
        %v2959 = vadd.f32 %v2955, %v2956
        %v2960 = vadd.f32 %v2959, %v2957
        %v2961 = vadd.f32 %v2960, %v2958
        %v2962 = vrot.slane %v2961, 4
        %v2963 = vadd.f32 %v2961, %v2962
        %v2964 = vrot.slane %v2963, 2
        %v2965 = vadd.f32 %v2963, %v2964
        %v2966 = vrot.slane %v2965, 1
        %v2967 = vadd.f32 %v2965, %v2966
        %2968 = vset.pattern.permute.xlu0 13
        %2969 = vperm.xlu0 %2968, %v516
        %v2970 = vpop.permute.xlu0 %2969
        %2972 = vset.pattern.permute.xlu0 13
        %2973 = vperm.xlu0 %2972, %v517
        %v2974 = vpop.permute.xlu0 %2973
        %2976 = vset.pattern.permute.xlu0 13
        %2977 = vperm.xlu0 %2976, %v518
        %v2978 = vpop.permute.xlu0 %2977
        %2980 = vset.pattern.permute.xlu0 13
        %2981 = vperm.xlu0 %2980, %v519
        %v2982 = vpop.permute.xlu0 %2981
        %2984 = vset.pattern.permute.xlu0 13
        %2985 = vperm.xlu0 %2984, %v520
        %v2986 = vpop.permute.xlu0 %2985
        %2988 = vset.pattern.permute.xlu0 13
        %2989 = vperm.xlu0 %2988, %v521
        %v2990 = vpop.permute.xlu0 %2989
        %2992 = vset.pattern.permute.xlu0 13
        %2993 = vperm.xlu0 %2992, %v522
        %v2994 = vpop.permute.xlu0 %2993
        %2996 = vset.pattern.permute.xlu0 13
        %2997 = vperm.xlu0 %2996, %v523
        %v2998 = vpop.permute.xlu0 %2997
        %v3000 = vadd.f32 %v361, %v2970
        %v3001 = vadd.f32 %v366, %v2974
        %v3002 = vadd.f32 %v371, %v2978
        %v3003 = vadd.f32 %v376, %v2982
        %v3004 = vadd.f32 %v381, %v2986
        %v3005 = vadd.f32 %v386, %v2990
        %v3006 = vadd.f32 %v391, %v2994
        %v3007 = vadd.f32 %v396, %v2998
        %v3008 = vmax.f32 %v3000, 0.0
        %v3009 = vmax.f32 %v3001, 0.0
        %v3010 = vmax.f32 %v3002, 0.0
        %v3011 = vmax.f32 %v3003, 0.0
        %v3012 = vmax.f32 %v3004, 0.0
        %v3013 = vmax.f32 %v3005, 0.0
        %v3014 = vmax.f32 %v3006, 0.0
        %v3015 = vmax.f32 %v3007, 0.0
        %3016 = vmatprep.subr.mxu0 0.0
        %3017 = vmatpush1.msra.mxu0 0.0
        %3018 = vmatprep.subr.mxu0 0.0
        %3019 = vmatpush1.msra.mxu0 0.0
        %3020 = vmatprep.subr.mxu0 0.0
        %3021 = vmatpush1.msra.mxu0 0.0
        %3022 = vmatprep.subr.mxu0 0.0
        %3023 = vmatpush1.msra.mxu0 0.0
        %3024 = vmatprep.subr.mxu0 0.0
        %3025 = vmatpush1.msra.mxu0 0.0
        %3026 = vmatprep.subr.mxu0 0.0
        %3027 = vmatpush1.msra.mxu0 0.0
        %3028 = vmatprep.subr.mxu0 0.0
        %3029 = vmatpush1.msra.mxu0 0.0
        %3030 = vmatprep.subr.mxu0 0.0
        %3031 = vmatpush1.msra.mxu0 0.0
        %3032 = vmatprep.subr.mxu0 0.0
        %3033 = vmatpush1.msra.mxu0 %v3015
        %3034 = vmatprep.subr.mxu0 0.0
        %3035 = vmatpush1.msra.mxu0 %v3014
        %3036 = vmatprep.subr.mxu0 0.0
        %3037 = vmatpush1.msra.mxu0 %v3013
        %3038 = vmatprep.subr.mxu0 0.0
        %3039 = vmatpush1.msra.mxu0 %v3012
        %3040 = vmatprep.subr.mxu0 0.0
        %3041 = vmatpush1.msra.mxu0 %v3011
        %3042 = vmatprep.subr.mxu0 0.0
        %3043 = vmatpush1.msra.mxu0 %v3010
        %3044 = vmatprep.subr.mxu0 0.0
        %3045 = vmatpush1.msra.mxu0 %v3009
        %3046 = vmatprep.subr.mxu0 0.0
        %3047 = vmatpush1.msra.mxu0 %v3008
        %3048 = vmatprep.subr.mxu0 0.0
        %3049 = vmatpush2.msra.mxu0 0.0
        %3050 = vmatprep.subr.mxu0 0.0
        %3051 = vmatpush2.msra.mxu0 0.0
        %3052 = vmatprep.subr.mxu0 0.0
        %3053 = vmatpush2.msra.mxu0 0.0
        %3054 = vmatprep.subr.mxu0 0.0
        %3055 = vmatpush2.msra.mxu0 0.0
        %3056 = vmatprep.subr.mxu0 0.0
        %3057 = vmatpush2.msra.mxu0 0.0
        %3058 = vmatprep.subr.mxu0 0.0
        %3059 = vmatpush2.msra.mxu0 0.0
        %3060 = vmatprep.subr.mxu0 0.0
        %3061 = vmatpush2.msra.mxu0 0.0
        %3062 = vmatprep.subr.mxu0 0.0
        %3063 = vmatpush2.msra.mxu0 0.0
        %3064 = vmatprep.subr.mxu0 0.0
        %3065 = vmatpush2.msra.mxu0 0.0
        %3066 = vmatprep.subr.mxu0 0.0
        %3067 = vmatpush2.msra.mxu0 0.0
        %3068 = vmatprep.subr.mxu0 0.0
        %3069 = vmatpush2.msra.mxu0 0.0
        %3070 = vmatprep.subr.mxu0 0.0
        %3071 = vmatpush2.msra.mxu0 0.0
        %3072 = vmatprep.subr.mxu0 0.0
        %3073 = vmatpush2.msra.mxu0 0.0
        %3074 = vmatprep.subr.mxu0 0.0
        %3075 = vmatpush2.msra.mxu0 0.0
        %3076 = vmatprep.subr.mxu0 0.0
        %3077 = vmatpush2.msra.mxu0 0.0
        %3078 = vmatprep.subr.mxu0 0.0
        %3079 = vmatpush2.msra.mxu0 0.0
        %3080 = vmatprep.mubr.f32.mxu0 0.0
        %3081 = vmatmul.mubr.f32.gmra.mxu0 %v641
        %v3082 = vpop.f32.mrf.mxu0
        %v3083 = vadd.f32 %v623, %v3082
        %v3084 = vpop.f32.mrf.mxu0
        %3085 = vmatprep.mubr.f32.mxu0 0.0
        %3086 = vmatmul.mubr.f32.gmra.mxu0 %v644
        %v3087 = vpop.f32.mrf.mxu0
        %v3088 = vadd.f32 %v628, %v3087
        %v3089 = vpop.f32.mrf.mxu0
        %3090 = vmatprep.mubr.f32.mxu0 0.0
        %3091 = vmatmul.mubr.f32.gmra.mxu0 %v647
        %v3092 = vpop.f32.mrf.mxu0
        %v3093 = vadd.f32 %v633, %v3092
        %v3094 = vpop.f32.mrf.mxu0
        %3095 = vmatprep.mubr.f32.mxu0 0.0
        %3096 = vmatmul.mubr.f32.gmra.mxu0 %v650
        %v3097 = vpop.f32.mrf.mxu0
        %v3098 = vadd.f32 %v638, %v3097
        %v3099 = vpop.f32.mrf.mxu0
        %3100 = vdwg.mxu0
        %v3101 = vmax.f32 %v3083, 0.0
        %v3102 = vmax.f32 %v3088, 0.0
        %v3103 = vmax.f32 %v3093, 0.0
        %v3104 = vmax.f32 %v3098, 0.0
        %v3105 = vmul.f32 %v3101, %v743
        %v3106 = vmul.f32 %v3102, %v747
        %v3107 = vmul.f32 %v3103, %v751
        %v3108 = vmul.f32 %v3104, %v755
        %v3109 = vadd.f32 %v3105, %v3106
        %v3110 = vadd.f32 %v3109, %v3107
        %v3111 = vadd.f32 %v3110, %v3108
        %v3112 = vrot.slane %v3111, 4
        %v3113 = vadd.f32 %v3111, %v3112
        %v3114 = vrot.slane %v3113, 2
        %v3115 = vadd.f32 %v3113, %v3114
        %v3116 = vrot.slane %v3115, 1
        %v3117 = vadd.f32 %v3115, %v3116
        %3118 = vset.pattern.permute.xlu0 14
        %3119 = vperm.xlu0 %3118, %v516
        %v3120 = vpop.permute.xlu0 %3119
        %3122 = vset.pattern.permute.xlu0 14
        %3123 = vperm.xlu0 %3122, %v517
        %v3124 = vpop.permute.xlu0 %3123
        %3126 = vset.pattern.permute.xlu0 14
        %3127 = vperm.xlu0 %3126, %v518
        %v3128 = vpop.permute.xlu0 %3127
        %3130 = vset.pattern.permute.xlu0 14
        %3131 = vperm.xlu0 %3130, %v519
        %v3132 = vpop.permute.xlu0 %3131
        %3134 = vset.pattern.permute.xlu0 14
        %3135 = vperm.xlu0 %3134, %v520
        %v3136 = vpop.permute.xlu0 %3135
        %3138 = vset.pattern.permute.xlu0 14
        %3139 = vperm.xlu0 %3138, %v521
        %v3140 = vpop.permute.xlu0 %3139
        %3142 = vset.pattern.permute.xlu0 14
        %3143 = vperm.xlu0 %3142, %v522
        %v3144 = vpop.permute.xlu0 %3143
        %3146 = vset.pattern.permute.xlu0 14
        %3147 = vperm.xlu0 %3146, %v523
        %v3148 = vpop.permute.xlu0 %3147
        %v3150 = vadd.f32 %v361, %v3120
        %v3151 = vadd.f32 %v366, %v3124
        %v3152 = vadd.f32 %v371, %v3128
        %v3153 = vadd.f32 %v376, %v3132
        %v3154 = vadd.f32 %v381, %v3136
        %v3155 = vadd.f32 %v386, %v3140
        %v3156 = vadd.f32 %v391, %v3144
        %v3157 = vadd.f32 %v396, %v3148
        %v3158 = vmax.f32 %v3150, 0.0
        %v3159 = vmax.f32 %v3151, 0.0
        %v3160 = vmax.f32 %v3152, 0.0
        %v3161 = vmax.f32 %v3153, 0.0
        %v3162 = vmax.f32 %v3154, 0.0
        %v3163 = vmax.f32 %v3155, 0.0
        %v3164 = vmax.f32 %v3156, 0.0
        %v3165 = vmax.f32 %v3157, 0.0
        %3166 = vmatprep.subr.mxu0 0.0
        %3167 = vmatpush1.msra.mxu0 0.0
        %3168 = vmatprep.subr.mxu0 0.0
        %3169 = vmatpush1.msra.mxu0 0.0
        %3170 = vmatprep.subr.mxu0 0.0
        %3171 = vmatpush1.msra.mxu0 0.0
        %3172 = vmatprep.subr.mxu0 0.0
        %3173 = vmatpush1.msra.mxu0 0.0
        %3174 = vmatprep.subr.mxu0 0.0
        %3175 = vmatpush1.msra.mxu0 0.0
        %3176 = vmatprep.subr.mxu0 0.0
        %3177 = vmatpush1.msra.mxu0 0.0
        %3178 = vmatprep.subr.mxu0 0.0
        %3179 = vmatpush1.msra.mxu0 0.0
        %3180 = vmatprep.subr.mxu0 0.0
        %3181 = vmatpush1.msra.mxu0 0.0
        %3182 = vmatprep.subr.mxu0 0.0
        %3183 = vmatpush1.msra.mxu0 %v3165
        %3184 = vmatprep.subr.mxu0 0.0
        %3185 = vmatpush1.msra.mxu0 %v3164
        %3186 = vmatprep.subr.mxu0 0.0
        %3187 = vmatpush1.msra.mxu0 %v3163
        %3188 = vmatprep.subr.mxu0 0.0
        %3189 = vmatpush1.msra.mxu0 %v3162
        %3190 = vmatprep.subr.mxu0 0.0
        %3191 = vmatpush1.msra.mxu0 %v3161
        %3192 = vmatprep.subr.mxu0 0.0
        %3193 = vmatpush1.msra.mxu0 %v3160
        %3194 = vmatprep.subr.mxu0 0.0
        %3195 = vmatpush1.msra.mxu0 %v3159
        %3196 = vmatprep.subr.mxu0 0.0
        %3197 = vmatpush1.msra.mxu0 %v3158
        %3198 = vmatprep.subr.mxu0 0.0
        %3199 = vmatpush2.msra.mxu0 0.0
        %3200 = vmatprep.subr.mxu0 0.0
        %3201 = vmatpush2.msra.mxu0 0.0
        %3202 = vmatprep.subr.mxu0 0.0
        %3203 = vmatpush2.msra.mxu0 0.0
        %3204 = vmatprep.subr.mxu0 0.0
        %3205 = vmatpush2.msra.mxu0 0.0
        %3206 = vmatprep.subr.mxu0 0.0
        %3207 = vmatpush2.msra.mxu0 0.0
        %3208 = vmatprep.subr.mxu0 0.0
        %3209 = vmatpush2.msra.mxu0 0.0
        %3210 = vmatprep.subr.mxu0 0.0
        %3211 = vmatpush2.msra.mxu0 0.0
        %3212 = vmatprep.subr.mxu0 0.0
        %3213 = vmatpush2.msra.mxu0 0.0
        %3214 = vmatprep.subr.mxu0 0.0
        %3215 = vmatpush2.msra.mxu0 0.0
        %3216 = vmatprep.subr.mxu0 0.0
        %3217 = vmatpush2.msra.mxu0 0.0
        %3218 = vmatprep.subr.mxu0 0.0
        %3219 = vmatpush2.msra.mxu0 0.0
        %3220 = vmatprep.subr.mxu0 0.0
        %3221 = vmatpush2.msra.mxu0 0.0
        %3222 = vmatprep.subr.mxu0 0.0
        %3223 = vmatpush2.msra.mxu0 0.0
        %3224 = vmatprep.subr.mxu0 0.0
        %3225 = vmatpush2.msra.mxu0 0.0
        %3226 = vmatprep.subr.mxu0 0.0
        %3227 = vmatpush2.msra.mxu0 0.0
        %3228 = vmatprep.subr.mxu0 0.0
        %3229 = vmatpush2.msra.mxu0 0.0
        %3230 = vmatprep.mubr.f32.mxu0 0.0
        %3231 = vmatmul.mubr.f32.gmra.mxu0 %v641
        %v3232 = vpop.f32.mrf.mxu0
        %v3233 = vadd.f32 %v623, %v3232
        %v3234 = vpop.f32.mrf.mxu0
        %3235 = vmatprep.mubr.f32.mxu0 0.0
        %3236 = vmatmul.mubr.f32.gmra.mxu0 %v644
        %v3237 = vpop.f32.mrf.mxu0
        %v3238 = vadd.f32 %v628, %v3237
        %v3239 = vpop.f32.mrf.mxu0
        %3240 = vmatprep.mubr.f32.mxu0 0.0
        %3241 = vmatmul.mubr.f32.gmra.mxu0 %v647
        %v3242 = vpop.f32.mrf.mxu0
        %v3243 = vadd.f32 %v633, %v3242
        %v3244 = vpop.f32.mrf.mxu0
        %3245 = vmatprep.mubr.f32.mxu0 0.0
        %3246 = vmatmul.mubr.f32.gmra.mxu0 %v650
        %v3247 = vpop.f32.mrf.mxu0
        %v3248 = vadd.f32 %v638, %v3247
        %v3249 = vpop.f32.mrf.mxu0
        %3250 = vdwg.mxu0
        %v3251 = vmax.f32 %v3233, 0.0
        %v3252 = vmax.f32 %v3238, 0.0
        %v3253 = vmax.f32 %v3243, 0.0
        %v3254 = vmax.f32 %v3248, 0.0
        %v3255 = vmul.f32 %v3251, %v743
        %v3256 = vmul.f32 %v3252, %v747
        %v3257 = vmul.f32 %v3253, %v751
        %v3258 = vmul.f32 %v3254, %v755
        %v3259 = vadd.f32 %v3255, %v3256
        %v3260 = vadd.f32 %v3259, %v3257
        %v3261 = vadd.f32 %v3260, %v3258
        %v3262 = vrot.slane %v3261, 4
        %v3263 = vadd.f32 %v3261, %v3262
        %v3264 = vrot.slane %v3263, 2
        %v3265 = vadd.f32 %v3263, %v3264
        %v3266 = vrot.slane %v3265, 1
        %v3267 = vadd.f32 %v3265, %v3266
        %v3268 = vsel %vm1370, %v2667, %v2817
        %v3269 = vsel %vm1372, %v3268, %v2967
        %v3270 = vsel %vm1374, %v3269, %v3117
        %v3271 = vsel %vm1376, %v3270, %v3267
        %v3272 = vsel %vm1378, %v3271, -inf
        %v3273 = vrot.slane %v3272, 4
        %v3274 = vmax.f32 %v3272, %v3273
        %v3275 = vrot.slane %v3274, 2
        %v3276 = vmax.f32 %v3274, %v3275
        %v3277 = vrot.slane %v3276, 1
        %v3278 = vmax.f32 %v3276, %v3277
        %v3279 = vsub.f32 %v3271, %v3278
        %v3280 = vmul.f32 %v3279, 1.442695
        %v3281 = vpow.pop %v3280
        %v3282 = vsel %vm1378, %v3281, 0.0
        %v3283 = vrot.slane %v3282, 4
        %v3284 = vadd.f32 %v3282, %v3283
        %v3285 = vrot.slane %v3284, 2
        %v3286 = vadd.f32 %v3284, %v3285
        %v3287 = vrot.slane %v3286, 1
        %v3288 = vadd.f32 %v3286, %v3287
        %v3289 = vrcp.pop %v3288
        %v3290 = vmul.f32 %v3281, %v3289
        %3291 = vrot.lane.b32.xlu0 %v548, 118
        %v3292 = vpop.permute.xlu0 %3291
        %3293 = vrot.lane.b32.xlu0 %v549, 118
        %v3294 = vpop.permute.xlu0 %3293
        %3295 = vrot.lane.b32.xlu0 %v550, 118
        %v3296 = vpop.permute.xlu0 %3295
        %3297 = vrot.lane.b32.xlu0 %v551, 118
        %v3298 = vpop.permute.xlu0 %3297
        %3299 = vrot.lane.b32.xlu0 %v552, 118
        %v3300 = vpop.permute.xlu0 %3299
        %3301 = vrot.lane.b32.xlu0 %v553, 118
        %v3302 = vpop.permute.xlu0 %3301
        %3303 = vrot.lane.b32.xlu0 %v554, 118
        %v3304 = vpop.permute.xlu0 %3303
        %3305 = vrot.lane.b32.xlu0 %v555, 118
        %v3306 = vpop.permute.xlu0 %3305
        %v3307 = vsel %vm1398, %v3292, 0
        %v3309 = vsel %vm1398, %v3294, 0
        %v3311 = vsel %vm1398, %v3296, 0
        %v3313 = vsel %vm1398, %v3298, 0
        %v3315 = vsel %vm1398, %v3300, 0
        %v3317 = vsel %vm1398, %v3302, 0
        %v3319 = vsel %vm1398, %v3304, 0
        %v3321 = vsel %vm1398, %v3306, 0
        %v3324 = vsel %vm1378, %v3290, 0
        %3326 = vmatprep.subr.mxu0 0.0
        %3327 = vmatpush1.msra.mxu0 0.0
        %3328 = vmatprep.subr.mxu0 0.0
        %3329 = vmatpush1.msra.mxu0 0.0
        %3330 = vmatprep.subr.mxu0 0.0
        %3331 = vmatpush1.msra.mxu0 0.0
        %3332 = vmatprep.subr.mxu0 0.0
        %3333 = vmatpush1.msra.mxu0 0.0
        %3334 = vmatprep.subr.mxu0 0.0
        %3335 = vmatpush1.msra.mxu0 0.0
        %3336 = vmatprep.subr.mxu0 0.0
        %3337 = vmatpush1.msra.mxu0 0.0
        %3338 = vmatprep.subr.mxu0 0.0
        %3339 = vmatpush1.msra.mxu0 0.0
        %3340 = vmatprep.subr.mxu0 0.0
        %3341 = vmatpush1.msra.mxu0 0.0
        %3342 = vmatprep.subr.mxu0 0.0
        %3343 = vmatpush1.msra.mxu0 0.0
        %3344 = vmatprep.subr.mxu0 0.0
        %3345 = vmatpush1.msra.mxu0 0.0
        %3346 = vmatprep.subr.mxu0 0.0
        %3347 = vmatpush1.msra.mxu0 0.0
        %3348 = vmatprep.subr.mxu0 0.0
        %3349 = vmatpush1.msra.mxu0 0.0
        %3350 = vmatprep.subr.mxu0 0.0
        %3351 = vmatpush1.msra.mxu0 0.0
        %3352 = vmatprep.subr.mxu0 0.0
        %3353 = vmatpush1.msra.mxu0 0.0
        %3354 = vmatprep.subr.mxu0 0.0
        %3355 = vmatpush1.msra.mxu0 0.0
        %3356 = vmatprep.subr.mxu0 0.0
        %3357 = vmatpush1.msra.mxu0 %v3324
        %3358 = vmatprep.subr.mxu0 0.0
        %3359 = vmatpush2.msra.mxu0 0.0
        %3360 = vmatprep.subr.mxu0 0.0
        %3361 = vmatpush2.msra.mxu0 0.0
        %3362 = vmatprep.subr.mxu0 0.0
        %3363 = vmatpush2.msra.mxu0 0.0
        %3364 = vmatprep.subr.mxu0 0.0
        %3365 = vmatpush2.msra.mxu0 0.0
        %3366 = vmatprep.subr.mxu0 0.0
        %3367 = vmatpush2.msra.mxu0 0.0
        %3368 = vmatprep.subr.mxu0 0.0
        %3369 = vmatpush2.msra.mxu0 0.0
        %3370 = vmatprep.subr.mxu0 0.0
        %3371 = vmatpush2.msra.mxu0 0.0
        %3372 = vmatprep.subr.mxu0 0.0
        %3373 = vmatpush2.msra.mxu0 0.0
        %3374 = vmatprep.subr.mxu0 0.0
        %3375 = vmatpush2.msra.mxu0 0.0
        %3376 = vmatprep.subr.mxu0 0.0
        %3377 = vmatpush2.msra.mxu0 0.0
        %3378 = vmatprep.subr.mxu0 0.0
        %3379 = vmatpush2.msra.mxu0 0.0
        %3380 = vmatprep.subr.mxu0 0.0
        %3381 = vmatpush2.msra.mxu0 0.0
        %3382 = vmatprep.subr.mxu0 0.0
        %3383 = vmatpush2.msra.mxu0 0.0
        %3384 = vmatprep.subr.mxu0 0.0
        %3385 = vmatpush2.msra.mxu0 0.0
        %3386 = vmatprep.subr.mxu0 0.0
        %3387 = vmatpush2.msra.mxu0 0.0
        %3388 = vmatprep.subr.mxu0 0.0
        %3389 = vmatpush2.msra.mxu0 0.0
        %3390 = vmatprep.mubr.f32.mxu0 0.0
        %3391 = vmatmul.mubr.f32.gmra.mxu0 %v3307
        %v3392 = vpop.f32.mrf.mxu0
        %v3393 = vadd.f32 0.0, %v3392
        %v3394 = vpop.f32.mrf.mxu0
        %3395 = vmatprep.mubr.f32.mxu0 0.0
        %3396 = vmatmul.mubr.f32.gmra.mxu0 %v3309
        %v3397 = vpop.f32.mrf.mxu0
        %v3398 = vadd.f32 0.0, %v3397
        %v3399 = vpop.f32.mrf.mxu0
        %3400 = vmatprep.mubr.f32.mxu0 0.0
        %3401 = vmatmul.mubr.f32.gmra.mxu0 %v3311
        %v3402 = vpop.f32.mrf.mxu0
        %v3403 = vadd.f32 0.0, %v3402
        %v3404 = vpop.f32.mrf.mxu0
        %3405 = vmatprep.mubr.f32.mxu0 0.0
        %3406 = vmatmul.mubr.f32.gmra.mxu0 %v3313
        %v3407 = vpop.f32.mrf.mxu0
        %v3408 = vadd.f32 0.0, %v3407
        %v3409 = vpop.f32.mrf.mxu0
        %3410 = vmatprep.mubr.f32.mxu0 0.0
        %3411 = vmatmul.mubr.f32.gmra.mxu0 %v3315
        %v3412 = vpop.f32.mrf.mxu0
        %v3413 = vadd.f32 0.0, %v3412
        %v3414 = vpop.f32.mrf.mxu0
        %3415 = vmatprep.mubr.f32.mxu0 0.0
        %3416 = vmatmul.mubr.f32.gmra.mxu0 %v3317
        %v3417 = vpop.f32.mrf.mxu0
        %v3418 = vadd.f32 0.0, %v3417
        %v3419 = vpop.f32.mrf.mxu0
        %3420 = vmatprep.mubr.f32.mxu0 0.0
        %3421 = vmatmul.mubr.f32.gmra.mxu0 %v3319
        %v3422 = vpop.f32.mrf.mxu0
        %v3423 = vadd.f32 0.0, %v3422
        %v3424 = vpop.f32.mrf.mxu0
        %3425 = vmatprep.mubr.f32.mxu0 0.0
        %3426 = vmatmul.mubr.f32.gmra.mxu0 %v3321
        %v3427 = vpop.f32.mrf.mxu0
        %v3428 = vadd.f32 0.0, %v3427
        %v3429 = vpop.f32.mrf.mxu0
        %3430 = vdwg.mxu0
        %v3431 = vsub.f32 %v232, %v3393
        %v3432 = vsub.f32 %v233, %v3398
        %v3433 = vsub.f32 %v234, %v3403
        %v3434 = vsub.f32 %v235, %v3408
        %v3435 = vsub.f32 %v236, %v3413
        %v3436 = vsub.f32 %v237, %v3418
        %v3437 = vsub.f32 %v238, %v3423
        %v3438 = vsub.f32 %v239, %v3428
        %v3439 = vmul.f32 %v3431, %v3431
        %v3440 = vmul.f32 %v3432, %v3432
        %v3441 = vmul.f32 %v3433, %v3433
        %v3442 = vmul.f32 %v3434, %v3434
        %v3443 = vmul.f32 %v3435, %v3435
        %v3444 = vmul.f32 %v3436, %v3436
        %v3445 = vmul.f32 %v3437, %v3437
        %v3446 = vmul.f32 %v3438, %v3438
        %v3447 = vadd.f32 %v3439, %v3440
        %v3448 = vadd.f32 %v3447, %v3441
        %v3449 = vadd.f32 %v3448, %v3442
        %v3450 = vadd.f32 %v3449, %v3443
        %v3451 = vadd.f32 %v3450, %v3444
        %v3452 = vadd.f32 %v3451, %v3445
        %v3453 = vadd.f32 %v3452, %v3446
        %v3454 = vrot.slane %v3453, 4
        %v3455 = vadd.f32 %v3453, %v3454
        %v3456 = vrot.slane %v3455, 2
        %v3457 = vadd.f32 %v3455, %v3456
        %v3458 = vrot.slane %v3457, 1
        %v3459 = vadd.f32 %v3457, %v3458
        %v3460 = vrsqrt.pop %v3459
        %v3461 = vmul.f32 %v3459, %v3460
        %vm3462 = vcmp.eq.f32.partialorder %v3459, inf
        %v3463 = vsel %vm3462, %v3459, %v3461
        %vm3464 = vcmp.eq.f32.partialorder %v3459, 0.0
        %v3465 = vand.u32 %v3459, 2147483648
        %v3466 = vsel %vm3464, %v3465, %v3463
        %v3467 = vsub.f32 0.0, %v3466
        %3468 = vset.pattern.permute.xlu0 15
        %3469 = vperm.xlu0 %3468, %v516
        %v3470 = vpop.permute.xlu0 %3469
        %3472 = vset.pattern.permute.xlu0 15
        %3473 = vperm.xlu0 %3472, %v517
        %v3474 = vpop.permute.xlu0 %3473
        %3476 = vset.pattern.permute.xlu0 15
        %3477 = vperm.xlu0 %3476, %v518
        %v3478 = vpop.permute.xlu0 %3477
        %3480 = vset.pattern.permute.xlu0 15
        %3481 = vperm.xlu0 %3480, %v519
        %v3482 = vpop.permute.xlu0 %3481
        %3484 = vset.pattern.permute.xlu0 15
        %3485 = vperm.xlu0 %3484, %v520
        %v3486 = vpop.permute.xlu0 %3485
        %3488 = vset.pattern.permute.xlu0 15
        %3489 = vperm.xlu0 %3488, %v521
        %v3490 = vpop.permute.xlu0 %3489
        %3492 = vset.pattern.permute.xlu0 15
        %3493 = vperm.xlu0 %3492, %v522
        %v3494 = vpop.permute.xlu0 %3493
        %3496 = vset.pattern.permute.xlu0 15
        %3497 = vperm.xlu0 %3496, %v523
        %v3498 = vpop.permute.xlu0 %3497
        %v3500 = vadd.f32 %v361, %v3470
        %v3501 = vadd.f32 %v366, %v3474
        %v3502 = vadd.f32 %v371, %v3478
        %v3503 = vadd.f32 %v376, %v3482
        %v3504 = vadd.f32 %v381, %v3486
        %v3505 = vadd.f32 %v386, %v3490
        %v3506 = vadd.f32 %v391, %v3494
        %v3507 = vadd.f32 %v396, %v3498
        %v3508 = vmax.f32 %v3500, 0.0
        %v3509 = vmax.f32 %v3501, 0.0
        %v3510 = vmax.f32 %v3502, 0.0
        %v3511 = vmax.f32 %v3503, 0.0
        %v3512 = vmax.f32 %v3504, 0.0
        %v3513 = vmax.f32 %v3505, 0.0
        %v3514 = vmax.f32 %v3506, 0.0
        %v3515 = vmax.f32 %v3507, 0.0
        %3516 = vmatprep.subr.mxu0 0.0
        %3517 = vmatpush1.msra.mxu0 0.0
        %3518 = vmatprep.subr.mxu0 0.0
        %3519 = vmatpush1.msra.mxu0 0.0
        %3520 = vmatprep.subr.mxu0 0.0
        %3521 = vmatpush1.msra.mxu0 0.0
        %3522 = vmatprep.subr.mxu0 0.0
        %3523 = vmatpush1.msra.mxu0 0.0
        %3524 = vmatprep.subr.mxu0 0.0
        %3525 = vmatpush1.msra.mxu0 0.0
        %3526 = vmatprep.subr.mxu0 0.0
        %3527 = vmatpush1.msra.mxu0 0.0
        %3528 = vmatprep.subr.mxu0 0.0
        %3529 = vmatpush1.msra.mxu0 0.0
        %3530 = vmatprep.subr.mxu0 0.0
        %3531 = vmatpush1.msra.mxu0 0.0
        %3532 = vmatprep.subr.mxu0 0.0
        %3533 = vmatpush1.msra.mxu0 %v3515
        %3534 = vmatprep.subr.mxu0 0.0
        %3535 = vmatpush1.msra.mxu0 %v3514
        %3536 = vmatprep.subr.mxu0 0.0
        %3537 = vmatpush1.msra.mxu0 %v3513
        %3538 = vmatprep.subr.mxu0 0.0
        %3539 = vmatpush1.msra.mxu0 %v3512
        %3540 = vmatprep.subr.mxu0 0.0
        %3541 = vmatpush1.msra.mxu0 %v3511
        %3542 = vmatprep.subr.mxu0 0.0
        %3543 = vmatpush1.msra.mxu0 %v3510
        %3544 = vmatprep.subr.mxu0 0.0
        %3545 = vmatpush1.msra.mxu0 %v3509
        %3546 = vmatprep.subr.mxu0 0.0
        %3547 = vmatpush1.msra.mxu0 %v3508
        %3548 = vmatprep.subr.mxu0 0.0
        %3549 = vmatpush2.msra.mxu0 0.0
        %3550 = vmatprep.subr.mxu0 0.0
        %3551 = vmatpush2.msra.mxu0 0.0
        %3552 = vmatprep.subr.mxu0 0.0
        %3553 = vmatpush2.msra.mxu0 0.0
        %3554 = vmatprep.subr.mxu0 0.0
        %3555 = vmatpush2.msra.mxu0 0.0
        %3556 = vmatprep.subr.mxu0 0.0
        %3557 = vmatpush2.msra.mxu0 0.0
        %3558 = vmatprep.subr.mxu0 0.0
        %3559 = vmatpush2.msra.mxu0 0.0
        %3560 = vmatprep.subr.mxu0 0.0
        %3561 = vmatpush2.msra.mxu0 0.0
        %3562 = vmatprep.subr.mxu0 0.0
        %3563 = vmatpush2.msra.mxu0 0.0
        %3564 = vmatprep.subr.mxu0 0.0
        %3565 = vmatpush2.msra.mxu0 0.0
        %3566 = vmatprep.subr.mxu0 0.0
        %3567 = vmatpush2.msra.mxu0 0.0
        %3568 = vmatprep.subr.mxu0 0.0
        %3569 = vmatpush2.msra.mxu0 0.0
        %3570 = vmatprep.subr.mxu0 0.0
        %3571 = vmatpush2.msra.mxu0 0.0
        %3572 = vmatprep.subr.mxu0 0.0
        %3573 = vmatpush2.msra.mxu0 0.0
        %3574 = vmatprep.subr.mxu0 0.0
        %3575 = vmatpush2.msra.mxu0 0.0
        %3576 = vmatprep.subr.mxu0 0.0
        %3577 = vmatpush2.msra.mxu0 0.0
        %3578 = vmatprep.subr.mxu0 0.0
        %3579 = vmatpush2.msra.mxu0 0.0
        %3580 = vmatprep.mubr.f32.mxu0 0.0
        %3581 = vmatmul.mubr.f32.gmra.mxu0 %v641
        %v3582 = vpop.f32.mrf.mxu0
        %v3583 = vadd.f32 %v623, %v3582
        %v3584 = vpop.f32.mrf.mxu0
        %3585 = vmatprep.mubr.f32.mxu0 0.0
        %3586 = vmatmul.mubr.f32.gmra.mxu0 %v644
        %v3587 = vpop.f32.mrf.mxu0
        %v3588 = vadd.f32 %v628, %v3587
        %v3589 = vpop.f32.mrf.mxu0
        %3590 = vmatprep.mubr.f32.mxu0 0.0
        %3591 = vmatmul.mubr.f32.gmra.mxu0 %v647
        %v3592 = vpop.f32.mrf.mxu0
        %v3593 = vadd.f32 %v633, %v3592
        %v3594 = vpop.f32.mrf.mxu0
        %3595 = vmatprep.mubr.f32.mxu0 0.0
        %3596 = vmatmul.mubr.f32.gmra.mxu0 %v650
        %v3597 = vpop.f32.mrf.mxu0
        %v3598 = vadd.f32 %v638, %v3597
        %v3599 = vpop.f32.mrf.mxu0
        %3600 = vdwg.mxu0
        %v3601 = vmax.f32 %v3583, 0.0
        %v3602 = vmax.f32 %v3588, 0.0
        %v3603 = vmax.f32 %v3593, 0.0
        %v3604 = vmax.f32 %v3598, 0.0
        %v3605 = vmul.f32 %v3601, %v743
        %v3606 = vmul.f32 %v3602, %v747
        %v3607 = vmul.f32 %v3603, %v751
        %v3608 = vmul.f32 %v3604, %v755
        %v3609 = vadd.f32 %v3605, %v3606
        %v3610 = vadd.f32 %v3609, %v3607
        %v3611 = vadd.f32 %v3610, %v3608
        %v3612 = vrot.slane %v3611, 4
        %v3613 = vadd.f32 %v3611, %v3612
        %v3614 = vrot.slane %v3613, 2
        %v3615 = vadd.f32 %v3613, %v3614
        %v3616 = vrot.slane %v3615, 1
        %v3617 = vadd.f32 %v3615, %v3616
        %3618 = vset.pattern.permute.xlu0 16
        %3619 = vperm.xlu0 %3618, %v516
        %v3620 = vpop.permute.xlu0 %3619
        %3622 = vset.pattern.permute.xlu0 16
        %3623 = vperm.xlu0 %3622, %v517
        %v3624 = vpop.permute.xlu0 %3623
        %3626 = vset.pattern.permute.xlu0 16
        %3627 = vperm.xlu0 %3626, %v518
        %v3628 = vpop.permute.xlu0 %3627
        %3630 = vset.pattern.permute.xlu0 16
        %3631 = vperm.xlu0 %3630, %v519
        %v3632 = vpop.permute.xlu0 %3631
        %3634 = vset.pattern.permute.xlu0 16
        %3635 = vperm.xlu0 %3634, %v520
        %v3636 = vpop.permute.xlu0 %3635
        %3638 = vset.pattern.permute.xlu0 16
        %3639 = vperm.xlu0 %3638, %v521
        %v3640 = vpop.permute.xlu0 %3639
        %3642 = vset.pattern.permute.xlu0 16
        %3643 = vperm.xlu0 %3642, %v522
        %v3644 = vpop.permute.xlu0 %3643
        %3646 = vset.pattern.permute.xlu0 16
        %3647 = vperm.xlu0 %3646, %v523
        %v3648 = vpop.permute.xlu0 %3647
        %v3650 = vadd.f32 %v361, %v3620
        %v3651 = vadd.f32 %v366, %v3624
        %v3652 = vadd.f32 %v371, %v3628
        %v3653 = vadd.f32 %v376, %v3632
        %v3654 = vadd.f32 %v381, %v3636
        %v3655 = vadd.f32 %v386, %v3640
        %v3656 = vadd.f32 %v391, %v3644
        %v3657 = vadd.f32 %v396, %v3648
        %v3658 = vmax.f32 %v3650, 0.0
        %v3659 = vmax.f32 %v3651, 0.0
        %v3660 = vmax.f32 %v3652, 0.0
        %v3661 = vmax.f32 %v3653, 0.0
        %v3662 = vmax.f32 %v3654, 0.0
        %v3663 = vmax.f32 %v3655, 0.0
        %v3664 = vmax.f32 %v3656, 0.0
        %v3665 = vmax.f32 %v3657, 0.0
        %3666 = vmatprep.subr.mxu0 0.0
        %3667 = vmatpush1.msra.mxu0 0.0
        %3668 = vmatprep.subr.mxu0 0.0
        %3669 = vmatpush1.msra.mxu0 0.0
        %3670 = vmatprep.subr.mxu0 0.0
        %3671 = vmatpush1.msra.mxu0 0.0
        %3672 = vmatprep.subr.mxu0 0.0
        %3673 = vmatpush1.msra.mxu0 0.0
        %3674 = vmatprep.subr.mxu0 0.0
        %3675 = vmatpush1.msra.mxu0 0.0
        %3676 = vmatprep.subr.mxu0 0.0
        %3677 = vmatpush1.msra.mxu0 0.0
        %3678 = vmatprep.subr.mxu0 0.0
        %3679 = vmatpush1.msra.mxu0 0.0
        %3680 = vmatprep.subr.mxu0 0.0
        %3681 = vmatpush1.msra.mxu0 0.0
        %3682 = vmatprep.subr.mxu0 0.0
        %3683 = vmatpush1.msra.mxu0 %v3665
        %3684 = vmatprep.subr.mxu0 0.0
        %3685 = vmatpush1.msra.mxu0 %v3664
        %3686 = vmatprep.subr.mxu0 0.0
        %3687 = vmatpush1.msra.mxu0 %v3663
        %3688 = vmatprep.subr.mxu0 0.0
        %3689 = vmatpush1.msra.mxu0 %v3662
        %3690 = vmatprep.subr.mxu0 0.0
        %3691 = vmatpush1.msra.mxu0 %v3661
        %3692 = vmatprep.subr.mxu0 0.0
        %3693 = vmatpush1.msra.mxu0 %v3660
        %3694 = vmatprep.subr.mxu0 0.0
        %3695 = vmatpush1.msra.mxu0 %v3659
        %3696 = vmatprep.subr.mxu0 0.0
        %3697 = vmatpush1.msra.mxu0 %v3658
        %3698 = vmatprep.subr.mxu0 0.0
        %3699 = vmatpush2.msra.mxu0 0.0
        %3700 = vmatprep.subr.mxu0 0.0
        %3701 = vmatpush2.msra.mxu0 0.0
        %3702 = vmatprep.subr.mxu0 0.0
        %3703 = vmatpush2.msra.mxu0 0.0
        %3704 = vmatprep.subr.mxu0 0.0
        %3705 = vmatpush2.msra.mxu0 0.0
        %3706 = vmatprep.subr.mxu0 0.0
        %3707 = vmatpush2.msra.mxu0 0.0
        %3708 = vmatprep.subr.mxu0 0.0
        %3709 = vmatpush2.msra.mxu0 0.0
        %3710 = vmatprep.subr.mxu0 0.0
        %3711 = vmatpush2.msra.mxu0 0.0
        %3712 = vmatprep.subr.mxu0 0.0
        %3713 = vmatpush2.msra.mxu0 0.0
        %3714 = vmatprep.subr.mxu0 0.0
        %3715 = vmatpush2.msra.mxu0 0.0
        %3716 = vmatprep.subr.mxu0 0.0
        %3717 = vmatpush2.msra.mxu0 0.0
        %3718 = vmatprep.subr.mxu0 0.0
        %3719 = vmatpush2.msra.mxu0 0.0
        %3720 = vmatprep.subr.mxu0 0.0
        %3721 = vmatpush2.msra.mxu0 0.0
        %3722 = vmatprep.subr.mxu0 0.0
        %3723 = vmatpush2.msra.mxu0 0.0
        %3724 = vmatprep.subr.mxu0 0.0
        %3725 = vmatpush2.msra.mxu0 0.0
        %3726 = vmatprep.subr.mxu0 0.0
        %3727 = vmatpush2.msra.mxu0 0.0
        %3728 = vmatprep.subr.mxu0 0.0
        %3729 = vmatpush2.msra.mxu0 0.0
        %3730 = vmatprep.mubr.f32.mxu0 0.0
        %3731 = vmatmul.mubr.f32.gmra.mxu0 %v641
        %v3732 = vpop.f32.mrf.mxu0
        %v3733 = vadd.f32 %v623, %v3732
        %v3734 = vpop.f32.mrf.mxu0
        %3735 = vmatprep.mubr.f32.mxu0 0.0
        %3736 = vmatmul.mubr.f32.gmra.mxu0 %v644
        %v3737 = vpop.f32.mrf.mxu0
        %v3738 = vadd.f32 %v628, %v3737
        %v3739 = vpop.f32.mrf.mxu0
        %3740 = vmatprep.mubr.f32.mxu0 0.0
        %3741 = vmatmul.mubr.f32.gmra.mxu0 %v647
        %v3742 = vpop.f32.mrf.mxu0
        %v3743 = vadd.f32 %v633, %v3742
        %v3744 = vpop.f32.mrf.mxu0
        %3745 = vmatprep.mubr.f32.mxu0 0.0
        %3746 = vmatmul.mubr.f32.gmra.mxu0 %v650
        %v3747 = vpop.f32.mrf.mxu0
        %v3748 = vadd.f32 %v638, %v3747
        %v3749 = vpop.f32.mrf.mxu0
        %3750 = vdwg.mxu0
        %v3751 = vmax.f32 %v3733, 0.0
        %v3752 = vmax.f32 %v3738, 0.0
        %v3753 = vmax.f32 %v3743, 0.0
        %v3754 = vmax.f32 %v3748, 0.0
        %v3755 = vmul.f32 %v3751, %v743
        %v3756 = vmul.f32 %v3752, %v747
        %v3757 = vmul.f32 %v3753, %v751
        %v3758 = vmul.f32 %v3754, %v755
        %v3759 = vadd.f32 %v3755, %v3756
        %v3760 = vadd.f32 %v3759, %v3757
        %v3761 = vadd.f32 %v3760, %v3758
        %v3762 = vrot.slane %v3761, 4
        %v3763 = vadd.f32 %v3761, %v3762
        %v3764 = vrot.slane %v3763, 2
        %v3765 = vadd.f32 %v3763, %v3764
        %v3766 = vrot.slane %v3765, 1
        %v3767 = vadd.f32 %v3765, %v3766
        %3768 = vset.pattern.permute.xlu0 17
        %3769 = vperm.xlu0 %3768, %v516
        %v3770 = vpop.permute.xlu0 %3769
        %3772 = vset.pattern.permute.xlu0 17
        %3773 = vperm.xlu0 %3772, %v517
        %v3774 = vpop.permute.xlu0 %3773
        %3776 = vset.pattern.permute.xlu0 17
        %3777 = vperm.xlu0 %3776, %v518
        %v3778 = vpop.permute.xlu0 %3777
        %3780 = vset.pattern.permute.xlu0 17
        %3781 = vperm.xlu0 %3780, %v519
        %v3782 = vpop.permute.xlu0 %3781
        %3784 = vset.pattern.permute.xlu0 17
        %3785 = vperm.xlu0 %3784, %v520
        %v3786 = vpop.permute.xlu0 %3785
        %3788 = vset.pattern.permute.xlu0 17
        %3789 = vperm.xlu0 %3788, %v521
        %v3790 = vpop.permute.xlu0 %3789
        %3792 = vset.pattern.permute.xlu0 17
        %3793 = vperm.xlu0 %3792, %v522
        %v3794 = vpop.permute.xlu0 %3793
        %3796 = vset.pattern.permute.xlu0 17
        %3797 = vperm.xlu0 %3796, %v523
        %v3798 = vpop.permute.xlu0 %3797
        %v3800 = vadd.f32 %v361, %v3770
        %v3801 = vadd.f32 %v366, %v3774
        %v3802 = vadd.f32 %v371, %v3778
        %v3803 = vadd.f32 %v376, %v3782
        %v3804 = vadd.f32 %v381, %v3786
        %v3805 = vadd.f32 %v386, %v3790
        %v3806 = vadd.f32 %v391, %v3794
        %v3807 = vadd.f32 %v396, %v3798
        %v3808 = vmax.f32 %v3800, 0.0
        %v3809 = vmax.f32 %v3801, 0.0
        %v3810 = vmax.f32 %v3802, 0.0
        %v3811 = vmax.f32 %v3803, 0.0
        %v3812 = vmax.f32 %v3804, 0.0
        %v3813 = vmax.f32 %v3805, 0.0
        %v3814 = vmax.f32 %v3806, 0.0
        %v3815 = vmax.f32 %v3807, 0.0
        %3816 = vmatprep.subr.mxu0 0.0
        %3817 = vmatpush1.msra.mxu0 0.0
        %3818 = vmatprep.subr.mxu0 0.0
        %3819 = vmatpush1.msra.mxu0 0.0
        %3820 = vmatprep.subr.mxu0 0.0
        %3821 = vmatpush1.msra.mxu0 0.0
        %3822 = vmatprep.subr.mxu0 0.0
        %3823 = vmatpush1.msra.mxu0 0.0
        %3824 = vmatprep.subr.mxu0 0.0
        %3825 = vmatpush1.msra.mxu0 0.0
        %3826 = vmatprep.subr.mxu0 0.0
        %3827 = vmatpush1.msra.mxu0 0.0
        %3828 = vmatprep.subr.mxu0 0.0
        %3829 = vmatpush1.msra.mxu0 0.0
        %3830 = vmatprep.subr.mxu0 0.0
        %3831 = vmatpush1.msra.mxu0 0.0
        %3832 = vmatprep.subr.mxu0 0.0
        %3833 = vmatpush1.msra.mxu0 %v3815
        %3834 = vmatprep.subr.mxu0 0.0
        %3835 = vmatpush1.msra.mxu0 %v3814
        %3836 = vmatprep.subr.mxu0 0.0
        %3837 = vmatpush1.msra.mxu0 %v3813
        %3838 = vmatprep.subr.mxu0 0.0
        %3839 = vmatpush1.msra.mxu0 %v3812
        %3840 = vmatprep.subr.mxu0 0.0
        %3841 = vmatpush1.msra.mxu0 %v3811
        %3842 = vmatprep.subr.mxu0 0.0
        %3843 = vmatpush1.msra.mxu0 %v3810
        %3844 = vmatprep.subr.mxu0 0.0
        %3845 = vmatpush1.msra.mxu0 %v3809
        %3846 = vmatprep.subr.mxu0 0.0
        %3847 = vmatpush1.msra.mxu0 %v3808
        %3848 = vmatprep.subr.mxu0 0.0
        %3849 = vmatpush2.msra.mxu0 0.0
        %3850 = vmatprep.subr.mxu0 0.0
        %3851 = vmatpush2.msra.mxu0 0.0
        %3852 = vmatprep.subr.mxu0 0.0
        %3853 = vmatpush2.msra.mxu0 0.0
        %3854 = vmatprep.subr.mxu0 0.0
        %3855 = vmatpush2.msra.mxu0 0.0
        %3856 = vmatprep.subr.mxu0 0.0
        %3857 = vmatpush2.msra.mxu0 0.0
        %3858 = vmatprep.subr.mxu0 0.0
        %3859 = vmatpush2.msra.mxu0 0.0
        %3860 = vmatprep.subr.mxu0 0.0
        %3861 = vmatpush2.msra.mxu0 0.0
        %3862 = vmatprep.subr.mxu0 0.0
        %3863 = vmatpush2.msra.mxu0 0.0
        %3864 = vmatprep.subr.mxu0 0.0
        %3865 = vmatpush2.msra.mxu0 0.0
        %3866 = vmatprep.subr.mxu0 0.0
        %3867 = vmatpush2.msra.mxu0 0.0
        %3868 = vmatprep.subr.mxu0 0.0
        %3869 = vmatpush2.msra.mxu0 0.0
        %3870 = vmatprep.subr.mxu0 0.0
        %3871 = vmatpush2.msra.mxu0 0.0
        %3872 = vmatprep.subr.mxu0 0.0
        %3873 = vmatpush2.msra.mxu0 0.0
        %3874 = vmatprep.subr.mxu0 0.0
        %3875 = vmatpush2.msra.mxu0 0.0
        %3876 = vmatprep.subr.mxu0 0.0
        %3877 = vmatpush2.msra.mxu0 0.0
        %3878 = vmatprep.subr.mxu0 0.0
        %3879 = vmatpush2.msra.mxu0 0.0
        %3880 = vmatprep.mubr.f32.mxu0 0.0
        %3881 = vmatmul.mubr.f32.gmra.mxu0 %v641
        %v3882 = vpop.f32.mrf.mxu0
        %v3883 = vadd.f32 %v623, %v3882
        %v3884 = vpop.f32.mrf.mxu0
        %3885 = vmatprep.mubr.f32.mxu0 0.0
        %3886 = vmatmul.mubr.f32.gmra.mxu0 %v644
        %v3887 = vpop.f32.mrf.mxu0
        %v3888 = vadd.f32 %v628, %v3887
        %v3889 = vpop.f32.mrf.mxu0
        %3890 = vmatprep.mubr.f32.mxu0 0.0
        %3891 = vmatmul.mubr.f32.gmra.mxu0 %v647
        %v3892 = vpop.f32.mrf.mxu0
        %v3893 = vadd.f32 %v633, %v3892
        %v3894 = vpop.f32.mrf.mxu0
        %3895 = vmatprep.mubr.f32.mxu0 0.0
        %3896 = vmatmul.mubr.f32.gmra.mxu0 %v650
        %v3897 = vpop.f32.mrf.mxu0
        %v3898 = vadd.f32 %v638, %v3897
        %v3899 = vpop.f32.mrf.mxu0
        %3900 = vdwg.mxu0
        %v3901 = vmax.f32 %v3883, 0.0
        %v3902 = vmax.f32 %v3888, 0.0
        %v3903 = vmax.f32 %v3893, 0.0
        %v3904 = vmax.f32 %v3898, 0.0
        %v3905 = vmul.f32 %v3901, %v743
        %v3906 = vmul.f32 %v3902, %v747
        %v3907 = vmul.f32 %v3903, %v751
        %v3908 = vmul.f32 %v3904, %v755
        %v3909 = vadd.f32 %v3905, %v3906
        %v3910 = vadd.f32 %v3909, %v3907
        %v3911 = vadd.f32 %v3910, %v3908
        %v3912 = vrot.slane %v3911, 4
        %v3913 = vadd.f32 %v3911, %v3912
        %v3914 = vrot.slane %v3913, 2
        %v3915 = vadd.f32 %v3913, %v3914
        %v3916 = vrot.slane %v3915, 1
        %v3917 = vadd.f32 %v3915, %v3916
        %3918 = vset.pattern.permute.xlu0 18
        %3919 = vperm.xlu0 %3918, %v516
        %v3920 = vpop.permute.xlu0 %3919
        %3922 = vset.pattern.permute.xlu0 18
        %3923 = vperm.xlu0 %3922, %v517
        %v3924 = vpop.permute.xlu0 %3923
        %3926 = vset.pattern.permute.xlu0 18
        %3927 = vperm.xlu0 %3926, %v518
        %v3928 = vpop.permute.xlu0 %3927
        %3930 = vset.pattern.permute.xlu0 18
        %3931 = vperm.xlu0 %3930, %v519
        %v3932 = vpop.permute.xlu0 %3931
        %3934 = vset.pattern.permute.xlu0 18
        %3935 = vperm.xlu0 %3934, %v520
        %v3936 = vpop.permute.xlu0 %3935
        %3938 = vset.pattern.permute.xlu0 18
        %3939 = vperm.xlu0 %3938, %v521
        %v3940 = vpop.permute.xlu0 %3939
        %3942 = vset.pattern.permute.xlu0 18
        %3943 = vperm.xlu0 %3942, %v522
        %v3944 = vpop.permute.xlu0 %3943
        %3946 = vset.pattern.permute.xlu0 18
        %3947 = vperm.xlu0 %3946, %v523
        %v3948 = vpop.permute.xlu0 %3947
        %v3950 = vadd.f32 %v361, %v3920
        %v3951 = vadd.f32 %v366, %v3924
        %v3952 = vadd.f32 %v371, %v3928
        %v3953 = vadd.f32 %v376, %v3932
        %v3954 = vadd.f32 %v381, %v3936
        %v3955 = vadd.f32 %v386, %v3940
        %v3956 = vadd.f32 %v391, %v3944
        %v3957 = vadd.f32 %v396, %v3948
        %v3958 = vmax.f32 %v3950, 0.0
        %v3959 = vmax.f32 %v3951, 0.0
        %v3960 = vmax.f32 %v3952, 0.0
        %v3961 = vmax.f32 %v3953, 0.0
        %v3962 = vmax.f32 %v3954, 0.0
        %v3963 = vmax.f32 %v3955, 0.0
        %v3964 = vmax.f32 %v3956, 0.0
        %v3965 = vmax.f32 %v3957, 0.0
        %3966 = vmatprep.subr.mxu0 0.0
        %3967 = vmatpush1.msra.mxu0 0.0
        %3968 = vmatprep.subr.mxu0 0.0
        %3969 = vmatpush1.msra.mxu0 0.0
        %3970 = vmatprep.subr.mxu0 0.0
        %3971 = vmatpush1.msra.mxu0 0.0
        %3972 = vmatprep.subr.mxu0 0.0
        %3973 = vmatpush1.msra.mxu0 0.0
        %3974 = vmatprep.subr.mxu0 0.0
        %3975 = vmatpush1.msra.mxu0 0.0
        %3976 = vmatprep.subr.mxu0 0.0
        %3977 = vmatpush1.msra.mxu0 0.0
        %3978 = vmatprep.subr.mxu0 0.0
        %3979 = vmatpush1.msra.mxu0 0.0
        %3980 = vmatprep.subr.mxu0 0.0
        %3981 = vmatpush1.msra.mxu0 0.0
        %3982 = vmatprep.subr.mxu0 0.0
        %3983 = vmatpush1.msra.mxu0 %v3965
        %3984 = vmatprep.subr.mxu0 0.0
        %3985 = vmatpush1.msra.mxu0 %v3964
        %3986 = vmatprep.subr.mxu0 0.0
        %3987 = vmatpush1.msra.mxu0 %v3963
        %3988 = vmatprep.subr.mxu0 0.0
        %3989 = vmatpush1.msra.mxu0 %v3962
        %3990 = vmatprep.subr.mxu0 0.0
        %3991 = vmatpush1.msra.mxu0 %v3961
        %3992 = vmatprep.subr.mxu0 0.0
        %3993 = vmatpush1.msra.mxu0 %v3960
        %3994 = vmatprep.subr.mxu0 0.0
        %3995 = vmatpush1.msra.mxu0 %v3959
        %3996 = vmatprep.subr.mxu0 0.0
        %3997 = vmatpush1.msra.mxu0 %v3958
        %3998 = vmatprep.subr.mxu0 0.0
        %3999 = vmatpush2.msra.mxu0 0.0
        %4000 = vmatprep.subr.mxu0 0.0
        %4001 = vmatpush2.msra.mxu0 0.0
        %4002 = vmatprep.subr.mxu0 0.0
        %4003 = vmatpush2.msra.mxu0 0.0
        %4004 = vmatprep.subr.mxu0 0.0
        %4005 = vmatpush2.msra.mxu0 0.0
        %4006 = vmatprep.subr.mxu0 0.0
        %4007 = vmatpush2.msra.mxu0 0.0
        %4008 = vmatprep.subr.mxu0 0.0
        %4009 = vmatpush2.msra.mxu0 0.0
        %4010 = vmatprep.subr.mxu0 0.0
        %4011 = vmatpush2.msra.mxu0 0.0
        %4012 = vmatprep.subr.mxu0 0.0
        %4013 = vmatpush2.msra.mxu0 0.0
        %4014 = vmatprep.subr.mxu0 0.0
        %4015 = vmatpush2.msra.mxu0 0.0
        %4016 = vmatprep.subr.mxu0 0.0
        %4017 = vmatpush2.msra.mxu0 0.0
        %4018 = vmatprep.subr.mxu0 0.0
        %4019 = vmatpush2.msra.mxu0 0.0
        %4020 = vmatprep.subr.mxu0 0.0
        %4021 = vmatpush2.msra.mxu0 0.0
        %4022 = vmatprep.subr.mxu0 0.0
        %4023 = vmatpush2.msra.mxu0 0.0
        %4024 = vmatprep.subr.mxu0 0.0
        %4025 = vmatpush2.msra.mxu0 0.0
        %4026 = vmatprep.subr.mxu0 0.0
        %4027 = vmatpush2.msra.mxu0 0.0
        %4028 = vmatprep.subr.mxu0 0.0
        %4029 = vmatpush2.msra.mxu0 0.0
        %4030 = vmatprep.mubr.f32.mxu0 0.0
        %4031 = vmatmul.mubr.f32.gmra.mxu0 %v641
        %v4032 = vpop.f32.mrf.mxu0
        %v4033 = vadd.f32 %v623, %v4032
        %v4034 = vpop.f32.mrf.mxu0
        %4035 = vmatprep.mubr.f32.mxu0 0.0
        %4036 = vmatmul.mubr.f32.gmra.mxu0 %v644
        %v4037 = vpop.f32.mrf.mxu0
        %v4038 = vadd.f32 %v628, %v4037
        %v4039 = vpop.f32.mrf.mxu0
        %4040 = vmatprep.mubr.f32.mxu0 0.0
        %4041 = vmatmul.mubr.f32.gmra.mxu0 %v647
        %v4042 = vpop.f32.mrf.mxu0
        %v4043 = vadd.f32 %v633, %v4042
        %v4044 = vpop.f32.mrf.mxu0
        %4045 = vmatprep.mubr.f32.mxu0 0.0
        %4046 = vmatmul.mubr.f32.gmra.mxu0 %v650
        %v4047 = vpop.f32.mrf.mxu0
        %v4048 = vadd.f32 %v638, %v4047
        %v4049 = vpop.f32.mrf.mxu0
        %4050 = vdwg.mxu0
        %v4051 = vmax.f32 %v4033, 0.0
        %v4052 = vmax.f32 %v4038, 0.0
        %v4053 = vmax.f32 %v4043, 0.0
        %v4054 = vmax.f32 %v4048, 0.0
        %v4055 = vmul.f32 %v4051, %v743
        %v4056 = vmul.f32 %v4052, %v747
        %v4057 = vmul.f32 %v4053, %v751
        %v4058 = vmul.f32 %v4054, %v755
        %v4059 = vadd.f32 %v4055, %v4056
        %v4060 = vadd.f32 %v4059, %v4057
        %v4061 = vadd.f32 %v4060, %v4058
        %v4062 = vrot.slane %v4061, 4
        %v4063 = vadd.f32 %v4061, %v4062
        %v4064 = vrot.slane %v4063, 2
        %v4065 = vadd.f32 %v4063, %v4064
        %v4066 = vrot.slane %v4065, 1
        %v4067 = vadd.f32 %v4065, %v4066
        %4068 = vset.pattern.permute.xlu0 19
        %4069 = vperm.xlu0 %4068, %v516
        %v4070 = vpop.permute.xlu0 %4069
        %4072 = vset.pattern.permute.xlu0 19
        %4073 = vperm.xlu0 %4072, %v517
        %v4074 = vpop.permute.xlu0 %4073
        %4076 = vset.pattern.permute.xlu0 19
        %4077 = vperm.xlu0 %4076, %v518
        %v4078 = vpop.permute.xlu0 %4077
        %4080 = vset.pattern.permute.xlu0 19
        %4081 = vperm.xlu0 %4080, %v519
        %v4082 = vpop.permute.xlu0 %4081
        %4084 = vset.pattern.permute.xlu0 19
        %4085 = vperm.xlu0 %4084, %v520
        %v4086 = vpop.permute.xlu0 %4085
        %4088 = vset.pattern.permute.xlu0 19
        %4089 = vperm.xlu0 %4088, %v521
        %v4090 = vpop.permute.xlu0 %4089
        %4092 = vset.pattern.permute.xlu0 19
        %4093 = vperm.xlu0 %4092, %v522
        %v4094 = vpop.permute.xlu0 %4093
        %4096 = vset.pattern.permute.xlu0 19
        %4097 = vperm.xlu0 %4096, %v523
        %v4098 = vpop.permute.xlu0 %4097
        %v4100 = vadd.f32 %v361, %v4070
        %v4101 = vadd.f32 %v366, %v4074
        %v4102 = vadd.f32 %v371, %v4078
        %v4103 = vadd.f32 %v376, %v4082
        %v4104 = vadd.f32 %v381, %v4086
        %v4105 = vadd.f32 %v386, %v4090
        %v4106 = vadd.f32 %v391, %v4094
        %v4107 = vadd.f32 %v396, %v4098
        %v4108 = vmax.f32 %v4100, 0.0
        %v4109 = vmax.f32 %v4101, 0.0
        %v4110 = vmax.f32 %v4102, 0.0
        %v4111 = vmax.f32 %v4103, 0.0
        %v4112 = vmax.f32 %v4104, 0.0
        %v4113 = vmax.f32 %v4105, 0.0
        %v4114 = vmax.f32 %v4106, 0.0
        %v4115 = vmax.f32 %v4107, 0.0
        %4116 = vmatprep.subr.mxu0 0.0
        %4117 = vmatpush1.msra.mxu0 0.0
        %4118 = vmatprep.subr.mxu0 0.0
        %4119 = vmatpush1.msra.mxu0 0.0
        %4120 = vmatprep.subr.mxu0 0.0
        %4121 = vmatpush1.msra.mxu0 0.0
        %4122 = vmatprep.subr.mxu0 0.0
        %4123 = vmatpush1.msra.mxu0 0.0
        %4124 = vmatprep.subr.mxu0 0.0
        %4125 = vmatpush1.msra.mxu0 0.0
        %4126 = vmatprep.subr.mxu0 0.0
        %4127 = vmatpush1.msra.mxu0 0.0
        %4128 = vmatprep.subr.mxu0 0.0
        %4129 = vmatpush1.msra.mxu0 0.0
        %4130 = vmatprep.subr.mxu0 0.0
        %4131 = vmatpush1.msra.mxu0 0.0
        %4132 = vmatprep.subr.mxu0 0.0
        %4133 = vmatpush1.msra.mxu0 %v4115
        %4134 = vmatprep.subr.mxu0 0.0
        %4135 = vmatpush1.msra.mxu0 %v4114
        %4136 = vmatprep.subr.mxu0 0.0
        %4137 = vmatpush1.msra.mxu0 %v4113
        %4138 = vmatprep.subr.mxu0 0.0
        %4139 = vmatpush1.msra.mxu0 %v4112
        %4140 = vmatprep.subr.mxu0 0.0
        %4141 = vmatpush1.msra.mxu0 %v4111
        %4142 = vmatprep.subr.mxu0 0.0
        %4143 = vmatpush1.msra.mxu0 %v4110
        %4144 = vmatprep.subr.mxu0 0.0
        %4145 = vmatpush1.msra.mxu0 %v4109
        %4146 = vmatprep.subr.mxu0 0.0
        %4147 = vmatpush1.msra.mxu0 %v4108
        %4148 = vmatprep.subr.mxu0 0.0
        %4149 = vmatpush2.msra.mxu0 0.0
        %4150 = vmatprep.subr.mxu0 0.0
        %4151 = vmatpush2.msra.mxu0 0.0
        %4152 = vmatprep.subr.mxu0 0.0
        %4153 = vmatpush2.msra.mxu0 0.0
        %4154 = vmatprep.subr.mxu0 0.0
        %4155 = vmatpush2.msra.mxu0 0.0
        %4156 = vmatprep.subr.mxu0 0.0
        %4157 = vmatpush2.msra.mxu0 0.0
        %4158 = vmatprep.subr.mxu0 0.0
        %4159 = vmatpush2.msra.mxu0 0.0
        %4160 = vmatprep.subr.mxu0 0.0
        %4161 = vmatpush2.msra.mxu0 0.0
        %4162 = vmatprep.subr.mxu0 0.0
        %4163 = vmatpush2.msra.mxu0 0.0
        %4164 = vmatprep.subr.mxu0 0.0
        %4165 = vmatpush2.msra.mxu0 0.0
        %4166 = vmatprep.subr.mxu0 0.0
        %4167 = vmatpush2.msra.mxu0 0.0
        %4168 = vmatprep.subr.mxu0 0.0
        %4169 = vmatpush2.msra.mxu0 0.0
        %4170 = vmatprep.subr.mxu0 0.0
        %4171 = vmatpush2.msra.mxu0 0.0
        %4172 = vmatprep.subr.mxu0 0.0
        %4173 = vmatpush2.msra.mxu0 0.0
        %4174 = vmatprep.subr.mxu0 0.0
        %4175 = vmatpush2.msra.mxu0 0.0
        %4176 = vmatprep.subr.mxu0 0.0
        %4177 = vmatpush2.msra.mxu0 0.0
        %4178 = vmatprep.subr.mxu0 0.0
        %4179 = vmatpush2.msra.mxu0 0.0
        %4180 = vmatprep.mubr.f32.mxu0 0.0
        %4181 = vmatmul.mubr.f32.gmra.mxu0 %v641
        %v4182 = vpop.f32.mrf.mxu0
        %v4183 = vadd.f32 %v623, %v4182
        %v4184 = vpop.f32.mrf.mxu0
        %4185 = vmatprep.mubr.f32.mxu0 0.0
        %4186 = vmatmul.mubr.f32.gmra.mxu0 %v644
        %v4187 = vpop.f32.mrf.mxu0
        %v4188 = vadd.f32 %v628, %v4187
        %v4189 = vpop.f32.mrf.mxu0
        %4190 = vmatprep.mubr.f32.mxu0 0.0
        %4191 = vmatmul.mubr.f32.gmra.mxu0 %v647
        %v4192 = vpop.f32.mrf.mxu0
        %v4193 = vadd.f32 %v633, %v4192
        %v4194 = vpop.f32.mrf.mxu0
        %4195 = vmatprep.mubr.f32.mxu0 0.0
        %4196 = vmatmul.mubr.f32.gmra.mxu0 %v650
        %v4197 = vpop.f32.mrf.mxu0
        %v4198 = vadd.f32 %v638, %v4197
        %v4199 = vpop.f32.mrf.mxu0
        %4200 = vdwg.mxu0
        %v4201 = vmax.f32 %v4183, 0.0
        %v4202 = vmax.f32 %v4188, 0.0
        %v4203 = vmax.f32 %v4193, 0.0
        %v4204 = vmax.f32 %v4198, 0.0
        %v4205 = vmul.f32 %v4201, %v743
        %v4206 = vmul.f32 %v4202, %v747
        %v4207 = vmul.f32 %v4203, %v751
        %v4208 = vmul.f32 %v4204, %v755
        %v4209 = vadd.f32 %v4205, %v4206
        %v4210 = vadd.f32 %v4209, %v4207
        %v4211 = vadd.f32 %v4210, %v4208
        %v4212 = vrot.slane %v4211, 4
        %v4213 = vadd.f32 %v4211, %v4212
        %v4214 = vrot.slane %v4213, 2
        %v4215 = vadd.f32 %v4213, %v4214
        %v4216 = vrot.slane %v4215, 1
        %v4217 = vadd.f32 %v4215, %v4216
        %v4218 = vsel %vm1370, %v3617, %v3767
        %v4219 = vsel %vm1372, %v4218, %v3917
        %v4220 = vsel %vm1374, %v4219, %v4067
        %v4221 = vsel %vm1376, %v4220, %v4217
        %v4222 = vsel %vm1378, %v4221, -inf
        %v4223 = vrot.slane %v4222, 4
        %v4224 = vmax.f32 %v4222, %v4223
        %v4225 = vrot.slane %v4224, 2
        %v4226 = vmax.f32 %v4224, %v4225
        %v4227 = vrot.slane %v4226, 1
        %v4228 = vmax.f32 %v4226, %v4227
        %v4229 = vsub.f32 %v4221, %v4228
        %v4230 = vmul.f32 %v4229, 1.442695
        %v4231 = vpow.pop %v4230
        %v4232 = vsel %vm1378, %v4231, 0.0
        %v4233 = vrot.slane %v4232, 4
        %v4234 = vadd.f32 %v4232, %v4233
        %v4235 = vrot.slane %v4234, 2
        %v4236 = vadd.f32 %v4234, %v4235
        %v4237 = vrot.slane %v4236, 1
        %v4238 = vadd.f32 %v4236, %v4237
        %v4239 = vrcp.pop %v4238
        %v4240 = vmul.f32 %v4231, %v4239
        %4241 = vrot.lane.b32.xlu0 %v548, 113
        %v4242 = vpop.permute.xlu0 %4241
        %4243 = vrot.lane.b32.xlu0 %v549, 113
        %v4244 = vpop.permute.xlu0 %4243
        %4245 = vrot.lane.b32.xlu0 %v550, 113
        %v4246 = vpop.permute.xlu0 %4245
        %4247 = vrot.lane.b32.xlu0 %v551, 113
        %v4248 = vpop.permute.xlu0 %4247
        %4249 = vrot.lane.b32.xlu0 %v552, 113
        %v4250 = vpop.permute.xlu0 %4249
        %4251 = vrot.lane.b32.xlu0 %v553, 113
        %v4252 = vpop.permute.xlu0 %4251
        %4253 = vrot.lane.b32.xlu0 %v554, 113
        %v4254 = vpop.permute.xlu0 %4253
        %4255 = vrot.lane.b32.xlu0 %v555, 113
        %v4256 = vpop.permute.xlu0 %4255
        %v4257 = vsel %vm1398, %v4242, 0
        %v4259 = vsel %vm1398, %v4244, 0
        %v4261 = vsel %vm1398, %v4246, 0
        %v4263 = vsel %vm1398, %v4248, 0
        %v4265 = vsel %vm1398, %v4250, 0
        %v4267 = vsel %vm1398, %v4252, 0
        %v4269 = vsel %vm1398, %v4254, 0
        %v4271 = vsel %vm1398, %v4256, 0
        %v4274 = vsel %vm1378, %v4240, 0
        %4276 = vmatprep.subr.mxu0 0.0
        %4277 = vmatpush1.msra.mxu0 0.0
        %4278 = vmatprep.subr.mxu0 0.0
        %4279 = vmatpush1.msra.mxu0 0.0
        %4280 = vmatprep.subr.mxu0 0.0
        %4281 = vmatpush1.msra.mxu0 0.0
        %4282 = vmatprep.subr.mxu0 0.0
        %4283 = vmatpush1.msra.mxu0 0.0
        %4284 = vmatprep.subr.mxu0 0.0
        %4285 = vmatpush1.msra.mxu0 0.0
        %4286 = vmatprep.subr.mxu0 0.0
        %4287 = vmatpush1.msra.mxu0 0.0
        %4288 = vmatprep.subr.mxu0 0.0
        %4289 = vmatpush1.msra.mxu0 0.0
        %4290 = vmatprep.subr.mxu0 0.0
        %4291 = vmatpush1.msra.mxu0 0.0
        %4292 = vmatprep.subr.mxu0 0.0
        %4293 = vmatpush1.msra.mxu0 0.0
        %4294 = vmatprep.subr.mxu0 0.0
        %4295 = vmatpush1.msra.mxu0 0.0
        %4296 = vmatprep.subr.mxu0 0.0
        %4297 = vmatpush1.msra.mxu0 0.0
        %4298 = vmatprep.subr.mxu0 0.0
        %4299 = vmatpush1.msra.mxu0 0.0
        %4300 = vmatprep.subr.mxu0 0.0
        %4301 = vmatpush1.msra.mxu0 0.0
        %4302 = vmatprep.subr.mxu0 0.0
        %4303 = vmatpush1.msra.mxu0 0.0
        %4304 = vmatprep.subr.mxu0 0.0
        %4305 = vmatpush1.msra.mxu0 0.0
        %4306 = vmatprep.subr.mxu0 0.0
        %4307 = vmatpush1.msra.mxu0 %v4274
        %4308 = vmatprep.subr.mxu0 0.0
        %4309 = vmatpush2.msra.mxu0 0.0
        %4310 = vmatprep.subr.mxu0 0.0
        %4311 = vmatpush2.msra.mxu0 0.0
        %4312 = vmatprep.subr.mxu0 0.0
        %4313 = vmatpush2.msra.mxu0 0.0
        %4314 = vmatprep.subr.mxu0 0.0
        %4315 = vmatpush2.msra.mxu0 0.0
        %4316 = vmatprep.subr.mxu0 0.0
        %4317 = vmatpush2.msra.mxu0 0.0
        %4318 = vmatprep.subr.mxu0 0.0
        %4319 = vmatpush2.msra.mxu0 0.0
        %4320 = vmatprep.subr.mxu0 0.0
        %4321 = vmatpush2.msra.mxu0 0.0
        %4322 = vmatprep.subr.mxu0 0.0
        %4323 = vmatpush2.msra.mxu0 0.0
        %4324 = vmatprep.subr.mxu0 0.0
        %4325 = vmatpush2.msra.mxu0 0.0
        %4326 = vmatprep.subr.mxu0 0.0
        %4327 = vmatpush2.msra.mxu0 0.0
        %4328 = vmatprep.subr.mxu0 0.0
        %4329 = vmatpush2.msra.mxu0 0.0
        %4330 = vmatprep.subr.mxu0 0.0
        %4331 = vmatpush2.msra.mxu0 0.0
        %4332 = vmatprep.subr.mxu0 0.0
        %4333 = vmatpush2.msra.mxu0 0.0
        %4334 = vmatprep.subr.mxu0 0.0
        %4335 = vmatpush2.msra.mxu0 0.0
        %4336 = vmatprep.subr.mxu0 0.0
        %4337 = vmatpush2.msra.mxu0 0.0
        %4338 = vmatprep.subr.mxu0 0.0
        %4339 = vmatpush2.msra.mxu0 0.0
        %4340 = vmatprep.mubr.f32.mxu0 0.0
        %4341 = vmatmul.mubr.f32.gmra.mxu0 %v4257
        %v4342 = vpop.f32.mrf.mxu0
        %v4343 = vadd.f32 0.0, %v4342
        %v4344 = vpop.f32.mrf.mxu0
        %4345 = vmatprep.mubr.f32.mxu0 0.0
        %4346 = vmatmul.mubr.f32.gmra.mxu0 %v4259
        %v4347 = vpop.f32.mrf.mxu0
        %v4348 = vadd.f32 0.0, %v4347
        %v4349 = vpop.f32.mrf.mxu0
        %4350 = vmatprep.mubr.f32.mxu0 0.0
        %4351 = vmatmul.mubr.f32.gmra.mxu0 %v4261
        %v4352 = vpop.f32.mrf.mxu0
        %v4353 = vadd.f32 0.0, %v4352
        %v4354 = vpop.f32.mrf.mxu0
        %4355 = vmatprep.mubr.f32.mxu0 0.0
        %4356 = vmatmul.mubr.f32.gmra.mxu0 %v4263
        %v4357 = vpop.f32.mrf.mxu0
        %v4358 = vadd.f32 0.0, %v4357
        %v4359 = vpop.f32.mrf.mxu0
        %4360 = vmatprep.mubr.f32.mxu0 0.0
        %4361 = vmatmul.mubr.f32.gmra.mxu0 %v4265
        %v4362 = vpop.f32.mrf.mxu0
        %v4363 = vadd.f32 0.0, %v4362
        %v4364 = vpop.f32.mrf.mxu0
        %4365 = vmatprep.mubr.f32.mxu0 0.0
        %4366 = vmatmul.mubr.f32.gmra.mxu0 %v4267
        %v4367 = vpop.f32.mrf.mxu0
        %v4368 = vadd.f32 0.0, %v4367
        %v4369 = vpop.f32.mrf.mxu0
        %4370 = vmatprep.mubr.f32.mxu0 0.0
        %4371 = vmatmul.mubr.f32.gmra.mxu0 %v4269
        %v4372 = vpop.f32.mrf.mxu0
        %v4373 = vadd.f32 0.0, %v4372
        %v4374 = vpop.f32.mrf.mxu0
        %4375 = vmatprep.mubr.f32.mxu0 0.0
        %4376 = vmatmul.mubr.f32.gmra.mxu0 %v4271
        %v4377 = vpop.f32.mrf.mxu0
        %v4378 = vadd.f32 0.0, %v4377
        %v4379 = vpop.f32.mrf.mxu0
        %4380 = vdwg.mxu0
        %v4381 = vsub.f32 %v232, %v4343
        %v4382 = vsub.f32 %v233, %v4348
        %v4383 = vsub.f32 %v234, %v4353
        %v4384 = vsub.f32 %v235, %v4358
        %v4385 = vsub.f32 %v236, %v4363
        %v4386 = vsub.f32 %v237, %v4368
        %v4387 = vsub.f32 %v238, %v4373
        %v4388 = vsub.f32 %v239, %v4378
        %v4389 = vmul.f32 %v4381, %v4381
        %v4390 = vmul.f32 %v4382, %v4382
        %v4391 = vmul.f32 %v4383, %v4383
        %v4392 = vmul.f32 %v4384, %v4384
        %v4393 = vmul.f32 %v4385, %v4385
        %v4394 = vmul.f32 %v4386, %v4386
        %v4395 = vmul.f32 %v4387, %v4387
        %v4396 = vmul.f32 %v4388, %v4388
        %v4397 = vadd.f32 %v4389, %v4390
        %v4398 = vadd.f32 %v4397, %v4391
        %v4399 = vadd.f32 %v4398, %v4392
        %v4400 = vadd.f32 %v4399, %v4393
        %v4401 = vadd.f32 %v4400, %v4394
        %v4402 = vadd.f32 %v4401, %v4395
        %v4403 = vadd.f32 %v4402, %v4396
        %v4404 = vrot.slane %v4403, 4
        %v4405 = vadd.f32 %v4403, %v4404
        %v4406 = vrot.slane %v4405, 2
        %v4407 = vadd.f32 %v4405, %v4406
        %v4408 = vrot.slane %v4407, 1
        %v4409 = vadd.f32 %v4407, %v4408
        %v4410 = vrsqrt.pop %v4409
        %v4411 = vmul.f32 %v4409, %v4410
        %vm4412 = vcmp.eq.f32.partialorder %v4409, inf
        %v4413 = vsel %vm4412, %v4409, %v4411
        %vm4414 = vcmp.eq.f32.partialorder %v4409, 0.0
        %v4415 = vand.u32 %v4409, 2147483648
        %v4416 = vsel %vm4414, %v4415, %v4413
        %v4417 = vsub.f32 0.0, %v4416
        %4418 = vset.pattern.permute.xlu0 20
        %4419 = vperm.xlu0 %4418, %v516
        %v4420 = vpop.permute.xlu0 %4419
        %4422 = vset.pattern.permute.xlu0 20
        %4423 = vperm.xlu0 %4422, %v517
        %v4424 = vpop.permute.xlu0 %4423
        %4426 = vset.pattern.permute.xlu0 20
        %4427 = vperm.xlu0 %4426, %v518
        %v4428 = vpop.permute.xlu0 %4427
        %4430 = vset.pattern.permute.xlu0 20
        %4431 = vperm.xlu0 %4430, %v519
        %v4432 = vpop.permute.xlu0 %4431
        %4434 = vset.pattern.permute.xlu0 20
        %4435 = vperm.xlu0 %4434, %v520
        %v4436 = vpop.permute.xlu0 %4435
        %4438 = vset.pattern.permute.xlu0 20
        %4439 = vperm.xlu0 %4438, %v521
        %v4440 = vpop.permute.xlu0 %4439
        %4442 = vset.pattern.permute.xlu0 20
        %4443 = vperm.xlu0 %4442, %v522
        %v4444 = vpop.permute.xlu0 %4443
        %4446 = vset.pattern.permute.xlu0 20
        %4447 = vperm.xlu0 %4446, %v523
        %v4448 = vpop.permute.xlu0 %4447
        %v4450 = vadd.f32 %v361, %v4420
        %v4451 = vadd.f32 %v366, %v4424
        %v4452 = vadd.f32 %v371, %v4428
        %v4453 = vadd.f32 %v376, %v4432
        %v4454 = vadd.f32 %v381, %v4436
        %v4455 = vadd.f32 %v386, %v4440
        %v4456 = vadd.f32 %v391, %v4444
        %v4457 = vadd.f32 %v396, %v4448
        %v4458 = vmax.f32 %v4450, 0.0
        %v4459 = vmax.f32 %v4451, 0.0
        %v4460 = vmax.f32 %v4452, 0.0
        %v4461 = vmax.f32 %v4453, 0.0
        %v4462 = vmax.f32 %v4454, 0.0
        %v4463 = vmax.f32 %v4455, 0.0
        %v4464 = vmax.f32 %v4456, 0.0
        %v4465 = vmax.f32 %v4457, 0.0
        %4466 = vmatprep.subr.mxu0 0.0
        %4467 = vmatpush1.msra.mxu0 0.0
        %4468 = vmatprep.subr.mxu0 0.0
        %4469 = vmatpush1.msra.mxu0 0.0
        %4470 = vmatprep.subr.mxu0 0.0
        %4471 = vmatpush1.msra.mxu0 0.0
        %4472 = vmatprep.subr.mxu0 0.0
        %4473 = vmatpush1.msra.mxu0 0.0
        %4474 = vmatprep.subr.mxu0 0.0
        %4475 = vmatpush1.msra.mxu0 0.0
        %4476 = vmatprep.subr.mxu0 0.0
        %4477 = vmatpush1.msra.mxu0 0.0
        %4478 = vmatprep.subr.mxu0 0.0
        %4479 = vmatpush1.msra.mxu0 0.0
        %4480 = vmatprep.subr.mxu0 0.0
        %4481 = vmatpush1.msra.mxu0 0.0
        %4482 = vmatprep.subr.mxu0 0.0
        %4483 = vmatpush1.msra.mxu0 %v4465
        %4484 = vmatprep.subr.mxu0 0.0
        %4485 = vmatpush1.msra.mxu0 %v4464
        %4486 = vmatprep.subr.mxu0 0.0
        %4487 = vmatpush1.msra.mxu0 %v4463
        %4488 = vmatprep.subr.mxu0 0.0
        %4489 = vmatpush1.msra.mxu0 %v4462
        %4490 = vmatprep.subr.mxu0 0.0
        %4491 = vmatpush1.msra.mxu0 %v4461
        %4492 = vmatprep.subr.mxu0 0.0
        %4493 = vmatpush1.msra.mxu0 %v4460
        %4494 = vmatprep.subr.mxu0 0.0
        %4495 = vmatpush1.msra.mxu0 %v4459
        %4496 = vmatprep.subr.mxu0 0.0
        %4497 = vmatpush1.msra.mxu0 %v4458
        %4498 = vmatprep.subr.mxu0 0.0
        %4499 = vmatpush2.msra.mxu0 0.0
        %4500 = vmatprep.subr.mxu0 0.0
        %4501 = vmatpush2.msra.mxu0 0.0
        %4502 = vmatprep.subr.mxu0 0.0
        %4503 = vmatpush2.msra.mxu0 0.0
        %4504 = vmatprep.subr.mxu0 0.0
        %4505 = vmatpush2.msra.mxu0 0.0
        %4506 = vmatprep.subr.mxu0 0.0
        %4507 = vmatpush2.msra.mxu0 0.0
        %4508 = vmatprep.subr.mxu0 0.0
        %4509 = vmatpush2.msra.mxu0 0.0
        %4510 = vmatprep.subr.mxu0 0.0
        %4511 = vmatpush2.msra.mxu0 0.0
        %4512 = vmatprep.subr.mxu0 0.0
        %4513 = vmatpush2.msra.mxu0 0.0
        %4514 = vmatprep.subr.mxu0 0.0
        %4515 = vmatpush2.msra.mxu0 0.0
        %4516 = vmatprep.subr.mxu0 0.0
        %4517 = vmatpush2.msra.mxu0 0.0
        %4518 = vmatprep.subr.mxu0 0.0
        %4519 = vmatpush2.msra.mxu0 0.0
        %4520 = vmatprep.subr.mxu0 0.0
        %4521 = vmatpush2.msra.mxu0 0.0
        %4522 = vmatprep.subr.mxu0 0.0
        %4523 = vmatpush2.msra.mxu0 0.0
        %4524 = vmatprep.subr.mxu0 0.0
        %4525 = vmatpush2.msra.mxu0 0.0
        %4526 = vmatprep.subr.mxu0 0.0
        %4527 = vmatpush2.msra.mxu0 0.0
        %4528 = vmatprep.subr.mxu0 0.0
        %4529 = vmatpush2.msra.mxu0 0.0
        %4530 = vmatprep.mubr.f32.mxu0 0.0
        %4531 = vmatmul.mubr.f32.gmra.mxu0 %v641
        %v4532 = vpop.f32.mrf.mxu0
        %v4533 = vadd.f32 %v623, %v4532
        %v4534 = vpop.f32.mrf.mxu0
        %4535 = vmatprep.mubr.f32.mxu0 0.0
        %4536 = vmatmul.mubr.f32.gmra.mxu0 %v644
        %v4537 = vpop.f32.mrf.mxu0
        %v4538 = vadd.f32 %v628, %v4537
        %v4539 = vpop.f32.mrf.mxu0
        %4540 = vmatprep.mubr.f32.mxu0 0.0
        %4541 = vmatmul.mubr.f32.gmra.mxu0 %v647
        %v4542 = vpop.f32.mrf.mxu0
        %v4543 = vadd.f32 %v633, %v4542
        %v4544 = vpop.f32.mrf.mxu0
        %4545 = vmatprep.mubr.f32.mxu0 0.0
        %4546 = vmatmul.mubr.f32.gmra.mxu0 %v650
        %v4547 = vpop.f32.mrf.mxu0
        %v4548 = vadd.f32 %v638, %v4547
        %v4549 = vpop.f32.mrf.mxu0
        %4550 = vdwg.mxu0
        %v4551 = vmax.f32 %v4533, 0.0
        %v4552 = vmax.f32 %v4538, 0.0
        %v4553 = vmax.f32 %v4543, 0.0
        %v4554 = vmax.f32 %v4548, 0.0
        %v4555 = vmul.f32 %v4551, %v743
        %v4556 = vmul.f32 %v4552, %v747
        %v4557 = vmul.f32 %v4553, %v751
        %v4558 = vmul.f32 %v4554, %v755
        %v4559 = vadd.f32 %v4555, %v4556
        %v4560 = vadd.f32 %v4559, %v4557
        %v4561 = vadd.f32 %v4560, %v4558
        %v4562 = vrot.slane %v4561, 4
        %v4563 = vadd.f32 %v4561, %v4562
        %v4564 = vrot.slane %v4563, 2
        %v4565 = vadd.f32 %v4563, %v4564
        %v4566 = vrot.slane %v4565, 1
        %v4567 = vadd.f32 %v4565, %v4566
        %4568 = vset.pattern.permute.xlu0 21
        %4569 = vperm.xlu0 %4568, %v516
        %v4570 = vpop.permute.xlu0 %4569
        %4572 = vset.pattern.permute.xlu0 21
        %4573 = vperm.xlu0 %4572, %v517
        %v4574 = vpop.permute.xlu0 %4573
        %4576 = vset.pattern.permute.xlu0 21
        %4577 = vperm.xlu0 %4576, %v518
        %v4578 = vpop.permute.xlu0 %4577
        %4580 = vset.pattern.permute.xlu0 21
        %4581 = vperm.xlu0 %4580, %v519
        %v4582 = vpop.permute.xlu0 %4581
        %4584 = vset.pattern.permute.xlu0 21
        %4585 = vperm.xlu0 %4584, %v520
        %v4586 = vpop.permute.xlu0 %4585
        %4588 = vset.pattern.permute.xlu0 21
        %4589 = vperm.xlu0 %4588, %v521
        %v4590 = vpop.permute.xlu0 %4589
        %4592 = vset.pattern.permute.xlu0 21
        %4593 = vperm.xlu0 %4592, %v522
        %v4594 = vpop.permute.xlu0 %4593
        %4596 = vset.pattern.permute.xlu0 21
        %4597 = vperm.xlu0 %4596, %v523
        %v4598 = vpop.permute.xlu0 %4597
        %v4600 = vadd.f32 %v361, %v4570
        %v4601 = vadd.f32 %v366, %v4574
        %v4602 = vadd.f32 %v371, %v4578
        %v4603 = vadd.f32 %v376, %v4582
        %v4604 = vadd.f32 %v381, %v4586
        %v4605 = vadd.f32 %v386, %v4590
        %v4606 = vadd.f32 %v391, %v4594
        %v4607 = vadd.f32 %v396, %v4598
        %v4608 = vmax.f32 %v4600, 0.0
        %v4609 = vmax.f32 %v4601, 0.0
        %v4610 = vmax.f32 %v4602, 0.0
        %v4611 = vmax.f32 %v4603, 0.0
        %v4612 = vmax.f32 %v4604, 0.0
        %v4613 = vmax.f32 %v4605, 0.0
        %v4614 = vmax.f32 %v4606, 0.0
        %v4615 = vmax.f32 %v4607, 0.0
        %4616 = vmatprep.subr.mxu0 0.0
        %4617 = vmatpush1.msra.mxu0 0.0
        %4618 = vmatprep.subr.mxu0 0.0
        %4619 = vmatpush1.msra.mxu0 0.0
        %4620 = vmatprep.subr.mxu0 0.0
        %4621 = vmatpush1.msra.mxu0 0.0
        %4622 = vmatprep.subr.mxu0 0.0
        %4623 = vmatpush1.msra.mxu0 0.0
        %4624 = vmatprep.subr.mxu0 0.0
        %4625 = vmatpush1.msra.mxu0 0.0
        %4626 = vmatprep.subr.mxu0 0.0
        %4627 = vmatpush1.msra.mxu0 0.0
        %4628 = vmatprep.subr.mxu0 0.0
        %4629 = vmatpush1.msra.mxu0 0.0
        %4630 = vmatprep.subr.mxu0 0.0
        %4631 = vmatpush1.msra.mxu0 0.0
        %4632 = vmatprep.subr.mxu0 0.0
        %4633 = vmatpush1.msra.mxu0 %v4615
        %4634 = vmatprep.subr.mxu0 0.0
        %4635 = vmatpush1.msra.mxu0 %v4614
        %4636 = vmatprep.subr.mxu0 0.0
        %4637 = vmatpush1.msra.mxu0 %v4613
        %4638 = vmatprep.subr.mxu0 0.0
        %4639 = vmatpush1.msra.mxu0 %v4612
        %4640 = vmatprep.subr.mxu0 0.0
        %4641 = vmatpush1.msra.mxu0 %v4611
        %4642 = vmatprep.subr.mxu0 0.0
        %4643 = vmatpush1.msra.mxu0 %v4610
        %4644 = vmatprep.subr.mxu0 0.0
        %4645 = vmatpush1.msra.mxu0 %v4609
        %4646 = vmatprep.subr.mxu0 0.0
        %4647 = vmatpush1.msra.mxu0 %v4608
        %4648 = vmatprep.subr.mxu0 0.0
        %4649 = vmatpush2.msra.mxu0 0.0
        %4650 = vmatprep.subr.mxu0 0.0
        %4651 = vmatpush2.msra.mxu0 0.0
        %4652 = vmatprep.subr.mxu0 0.0
        %4653 = vmatpush2.msra.mxu0 0.0
        %4654 = vmatprep.subr.mxu0 0.0
        %4655 = vmatpush2.msra.mxu0 0.0
        %4656 = vmatprep.subr.mxu0 0.0
        %4657 = vmatpush2.msra.mxu0 0.0
        %4658 = vmatprep.subr.mxu0 0.0
        %4659 = vmatpush2.msra.mxu0 0.0
        %4660 = vmatprep.subr.mxu0 0.0
        %4661 = vmatpush2.msra.mxu0 0.0
        %4662 = vmatprep.subr.mxu0 0.0
        %4663 = vmatpush2.msra.mxu0 0.0
        %4664 = vmatprep.subr.mxu0 0.0
        %4665 = vmatpush2.msra.mxu0 0.0
        %4666 = vmatprep.subr.mxu0 0.0
        %4667 = vmatpush2.msra.mxu0 0.0
        %4668 = vmatprep.subr.mxu0 0.0
        %4669 = vmatpush2.msra.mxu0 0.0
        %4670 = vmatprep.subr.mxu0 0.0
        %4671 = vmatpush2.msra.mxu0 0.0
        %4672 = vmatprep.subr.mxu0 0.0
        %4673 = vmatpush2.msra.mxu0 0.0
        %4674 = vmatprep.subr.mxu0 0.0
        %4675 = vmatpush2.msra.mxu0 0.0
        %4676 = vmatprep.subr.mxu0 0.0
        %4677 = vmatpush2.msra.mxu0 0.0
        %4678 = vmatprep.subr.mxu0 0.0
        %4679 = vmatpush2.msra.mxu0 0.0
        %4680 = vmatprep.mubr.f32.mxu0 0.0
        %4681 = vmatmul.mubr.f32.gmra.mxu0 %v641
        %v4682 = vpop.f32.mrf.mxu0
        %v4683 = vadd.f32 %v623, %v4682
        %v4684 = vpop.f32.mrf.mxu0
        %4685 = vmatprep.mubr.f32.mxu0 0.0
        %4686 = vmatmul.mubr.f32.gmra.mxu0 %v644
        %v4687 = vpop.f32.mrf.mxu0
        %v4688 = vadd.f32 %v628, %v4687
        %v4689 = vpop.f32.mrf.mxu0
        %4690 = vmatprep.mubr.f32.mxu0 0.0
        %4691 = vmatmul.mubr.f32.gmra.mxu0 %v647
        %v4692 = vpop.f32.mrf.mxu0
        %v4693 = vadd.f32 %v633, %v4692
        %v4694 = vpop.f32.mrf.mxu0
        %4695 = vmatprep.mubr.f32.mxu0 0.0
        %4696 = vmatmul.mubr.f32.gmra.mxu0 %v650
        %v4697 = vpop.f32.mrf.mxu0
        %v4698 = vadd.f32 %v638, %v4697
        %v4699 = vpop.f32.mrf.mxu0
        %4700 = vdwg.mxu0
        %v4701 = vmax.f32 %v4683, 0.0
        %v4702 = vmax.f32 %v4688, 0.0
        %v4703 = vmax.f32 %v4693, 0.0
        %v4704 = vmax.f32 %v4698, 0.0
        %v4705 = vmul.f32 %v4701, %v743
        %v4706 = vmul.f32 %v4702, %v747
        %v4707 = vmul.f32 %v4703, %v751
        %v4708 = vmul.f32 %v4704, %v755
        %v4709 = vadd.f32 %v4705, %v4706
        %v4710 = vadd.f32 %v4709, %v4707
        %v4711 = vadd.f32 %v4710, %v4708
        %v4712 = vrot.slane %v4711, 4
        %v4713 = vadd.f32 %v4711, %v4712
        %v4714 = vrot.slane %v4713, 2
        %v4715 = vadd.f32 %v4713, %v4714
        %v4716 = vrot.slane %v4715, 1
        %v4717 = vadd.f32 %v4715, %v4716
        %4718 = vset.pattern.permute.xlu0 22
        %4719 = vperm.xlu0 %4718, %v516
        %v4720 = vpop.permute.xlu0 %4719
        %4722 = vset.pattern.permute.xlu0 22
        %4723 = vperm.xlu0 %4722, %v517
        %v4724 = vpop.permute.xlu0 %4723
        %4726 = vset.pattern.permute.xlu0 22
        %4727 = vperm.xlu0 %4726, %v518
        %v4728 = vpop.permute.xlu0 %4727
        %4730 = vset.pattern.permute.xlu0 22
        %4731 = vperm.xlu0 %4730, %v519
        %v4732 = vpop.permute.xlu0 %4731
        %4734 = vset.pattern.permute.xlu0 22
        %4735 = vperm.xlu0 %4734, %v520
        %v4736 = vpop.permute.xlu0 %4735
        %4738 = vset.pattern.permute.xlu0 22
        %4739 = vperm.xlu0 %4738, %v521
        %v4740 = vpop.permute.xlu0 %4739
        %4742 = vset.pattern.permute.xlu0 22
        %4743 = vperm.xlu0 %4742, %v522
        %v4744 = vpop.permute.xlu0 %4743
        %4746 = vset.pattern.permute.xlu0 22
        %4747 = vperm.xlu0 %4746, %v523
        %v4748 = vpop.permute.xlu0 %4747
        %v4750 = vadd.f32 %v361, %v4720
        %v4751 = vadd.f32 %v366, %v4724
        %v4752 = vadd.f32 %v371, %v4728
        %v4753 = vadd.f32 %v376, %v4732
        %v4754 = vadd.f32 %v381, %v4736
        %v4755 = vadd.f32 %v386, %v4740
        %v4756 = vadd.f32 %v391, %v4744
        %v4757 = vadd.f32 %v396, %v4748
        %v4758 = vmax.f32 %v4750, 0.0
        %v4759 = vmax.f32 %v4751, 0.0
        %v4760 = vmax.f32 %v4752, 0.0
        %v4761 = vmax.f32 %v4753, 0.0
        %v4762 = vmax.f32 %v4754, 0.0
        %v4763 = vmax.f32 %v4755, 0.0
        %v4764 = vmax.f32 %v4756, 0.0
        %v4765 = vmax.f32 %v4757, 0.0
        %4766 = vmatprep.subr.mxu0 0.0
        %4767 = vmatpush1.msra.mxu0 0.0
        %4768 = vmatprep.subr.mxu0 0.0
        %4769 = vmatpush1.msra.mxu0 0.0
        %4770 = vmatprep.subr.mxu0 0.0
        %4771 = vmatpush1.msra.mxu0 0.0
        %4772 = vmatprep.subr.mxu0 0.0
        %4773 = vmatpush1.msra.mxu0 0.0
        %4774 = vmatprep.subr.mxu0 0.0
        %4775 = vmatpush1.msra.mxu0 0.0
        %4776 = vmatprep.subr.mxu0 0.0
        %4777 = vmatpush1.msra.mxu0 0.0
        %4778 = vmatprep.subr.mxu0 0.0
        %4779 = vmatpush1.msra.mxu0 0.0
        %4780 = vmatprep.subr.mxu0 0.0
        %4781 = vmatpush1.msra.mxu0 0.0
        %4782 = vmatprep.subr.mxu0 0.0
        %4783 = vmatpush1.msra.mxu0 %v4765
        %4784 = vmatprep.subr.mxu0 0.0
        %4785 = vmatpush1.msra.mxu0 %v4764
        %4786 = vmatprep.subr.mxu0 0.0
        %4787 = vmatpush1.msra.mxu0 %v4763
        %4788 = vmatprep.subr.mxu0 0.0
        %4789 = vmatpush1.msra.mxu0 %v4762
        %4790 = vmatprep.subr.mxu0 0.0
        %4791 = vmatpush1.msra.mxu0 %v4761
        %4792 = vmatprep.subr.mxu0 0.0
        %4793 = vmatpush1.msra.mxu0 %v4760
        %4794 = vmatprep.subr.mxu0 0.0
        %4795 = vmatpush1.msra.mxu0 %v4759
        %4796 = vmatprep.subr.mxu0 0.0
        %4797 = vmatpush1.msra.mxu0 %v4758
        %4798 = vmatprep.subr.mxu0 0.0
        %4799 = vmatpush2.msra.mxu0 0.0
        %4800 = vmatprep.subr.mxu0 0.0
        %4801 = vmatpush2.msra.mxu0 0.0
        %4802 = vmatprep.subr.mxu0 0.0
        %4803 = vmatpush2.msra.mxu0 0.0
        %4804 = vmatprep.subr.mxu0 0.0
        %4805 = vmatpush2.msra.mxu0 0.0
        %4806 = vmatprep.subr.mxu0 0.0
        %4807 = vmatpush2.msra.mxu0 0.0
        %4808 = vmatprep.subr.mxu0 0.0
        %4809 = vmatpush2.msra.mxu0 0.0
        %4810 = vmatprep.subr.mxu0 0.0
        %4811 = vmatpush2.msra.mxu0 0.0
        %4812 = vmatprep.subr.mxu0 0.0
        %4813 = vmatpush2.msra.mxu0 0.0
        %4814 = vmatprep.subr.mxu0 0.0
        %4815 = vmatpush2.msra.mxu0 0.0
        %4816 = vmatprep.subr.mxu0 0.0
        %4817 = vmatpush2.msra.mxu0 0.0
        %4818 = vmatprep.subr.mxu0 0.0
        %4819 = vmatpush2.msra.mxu0 0.0
        %4820 = vmatprep.subr.mxu0 0.0
        %4821 = vmatpush2.msra.mxu0 0.0
        %4822 = vmatprep.subr.mxu0 0.0
        %4823 = vmatpush2.msra.mxu0 0.0
        %4824 = vmatprep.subr.mxu0 0.0
        %4825 = vmatpush2.msra.mxu0 0.0
        %4826 = vmatprep.subr.mxu0 0.0
        %4827 = vmatpush2.msra.mxu0 0.0
        %4828 = vmatprep.subr.mxu0 0.0
        %4829 = vmatpush2.msra.mxu0 0.0
        %4830 = vmatprep.mubr.f32.mxu0 0.0
        %4831 = vmatmul.mubr.f32.gmra.mxu0 %v641
        %v4832 = vpop.f32.mrf.mxu0
        %v4833 = vadd.f32 %v623, %v4832
        %v4834 = vpop.f32.mrf.mxu0
        %4835 = vmatprep.mubr.f32.mxu0 0.0
        %4836 = vmatmul.mubr.f32.gmra.mxu0 %v644
        %v4837 = vpop.f32.mrf.mxu0
        %v4838 = vadd.f32 %v628, %v4837
        %v4839 = vpop.f32.mrf.mxu0
        %4840 = vmatprep.mubr.f32.mxu0 0.0
        %4841 = vmatmul.mubr.f32.gmra.mxu0 %v647
        %v4842 = vpop.f32.mrf.mxu0
        %v4843 = vadd.f32 %v633, %v4842
        %v4844 = vpop.f32.mrf.mxu0
        %4845 = vmatprep.mubr.f32.mxu0 0.0
        %4846 = vmatmul.mubr.f32.gmra.mxu0 %v650
        %v4847 = vpop.f32.mrf.mxu0
        %v4848 = vadd.f32 %v638, %v4847
        %v4849 = vpop.f32.mrf.mxu0
        %4850 = vdwg.mxu0
        %v4851 = vmax.f32 %v4833, 0.0
        %v4852 = vmax.f32 %v4838, 0.0
        %v4853 = vmax.f32 %v4843, 0.0
        %v4854 = vmax.f32 %v4848, 0.0
        %v4855 = vmul.f32 %v4851, %v743
        %v4856 = vmul.f32 %v4852, %v747
        %v4857 = vmul.f32 %v4853, %v751
        %v4858 = vmul.f32 %v4854, %v755
        %v4859 = vadd.f32 %v4855, %v4856
        %v4860 = vadd.f32 %v4859, %v4857
        %v4861 = vadd.f32 %v4860, %v4858
        %v4862 = vrot.slane %v4861, 4
        %v4863 = vadd.f32 %v4861, %v4862
        %v4864 = vrot.slane %v4863, 2
        %v4865 = vadd.f32 %v4863, %v4864
        %v4866 = vrot.slane %v4865, 1
        %v4867 = vadd.f32 %v4865, %v4866
        %4868 = vset.pattern.permute.xlu0 23
        %4869 = vperm.xlu0 %4868, %v516
        %v4870 = vpop.permute.xlu0 %4869
        %4872 = vset.pattern.permute.xlu0 23
        %4873 = vperm.xlu0 %4872, %v517
        %v4874 = vpop.permute.xlu0 %4873
        %4876 = vset.pattern.permute.xlu0 23
        %4877 = vperm.xlu0 %4876, %v518
        %v4878 = vpop.permute.xlu0 %4877
        %4880 = vset.pattern.permute.xlu0 23
        %4881 = vperm.xlu0 %4880, %v519
        %v4882 = vpop.permute.xlu0 %4881
        %4884 = vset.pattern.permute.xlu0 23
        %4885 = vperm.xlu0 %4884, %v520
        %v4886 = vpop.permute.xlu0 %4885
        %4888 = vset.pattern.permute.xlu0 23
        %4889 = vperm.xlu0 %4888, %v521
        %v4890 = vpop.permute.xlu0 %4889
        %4892 = vset.pattern.permute.xlu0 23
        %4893 = vperm.xlu0 %4892, %v522
        %v4894 = vpop.permute.xlu0 %4893
        %4896 = vset.pattern.permute.xlu0 23
        %4897 = vperm.xlu0 %4896, %v523
        %v4898 = vpop.permute.xlu0 %4897
        %v4900 = vadd.f32 %v361, %v4870
        %v4901 = vadd.f32 %v366, %v4874
        %v4902 = vadd.f32 %v371, %v4878
        %v4903 = vadd.f32 %v376, %v4882
        %v4904 = vadd.f32 %v381, %v4886
        %v4905 = vadd.f32 %v386, %v4890
        %v4906 = vadd.f32 %v391, %v4894
        %v4907 = vadd.f32 %v396, %v4898
        %v4908 = vmax.f32 %v4900, 0.0
        %v4909 = vmax.f32 %v4901, 0.0
        %v4910 = vmax.f32 %v4902, 0.0
        %v4911 = vmax.f32 %v4903, 0.0
        %v4912 = vmax.f32 %v4904, 0.0
        %v4913 = vmax.f32 %v4905, 0.0
        %v4914 = vmax.f32 %v4906, 0.0
        %v4915 = vmax.f32 %v4907, 0.0
        %4916 = vmatprep.subr.mxu0 0.0
        %4917 = vmatpush1.msra.mxu0 0.0
        %4918 = vmatprep.subr.mxu0 0.0
        %4919 = vmatpush1.msra.mxu0 0.0
        %4920 = vmatprep.subr.mxu0 0.0
        %4921 = vmatpush1.msra.mxu0 0.0
        %4922 = vmatprep.subr.mxu0 0.0
        %4923 = vmatpush1.msra.mxu0 0.0
        %4924 = vmatprep.subr.mxu0 0.0
        %4925 = vmatpush1.msra.mxu0 0.0
        %4926 = vmatprep.subr.mxu0 0.0
        %4927 = vmatpush1.msra.mxu0 0.0
        %4928 = vmatprep.subr.mxu0 0.0
        %4929 = vmatpush1.msra.mxu0 0.0
        %4930 = vmatprep.subr.mxu0 0.0
        %4931 = vmatpush1.msra.mxu0 0.0
        %4932 = vmatprep.subr.mxu0 0.0
        %4933 = vmatpush1.msra.mxu0 %v4915
        %4934 = vmatprep.subr.mxu0 0.0
        %4935 = vmatpush1.msra.mxu0 %v4914
        %4936 = vmatprep.subr.mxu0 0.0
        %4937 = vmatpush1.msra.mxu0 %v4913
        %4938 = vmatprep.subr.mxu0 0.0
        %4939 = vmatpush1.msra.mxu0 %v4912
        %4940 = vmatprep.subr.mxu0 0.0
        %4941 = vmatpush1.msra.mxu0 %v4911
        %4942 = vmatprep.subr.mxu0 0.0
        %4943 = vmatpush1.msra.mxu0 %v4910
        %4944 = vmatprep.subr.mxu0 0.0
        %4945 = vmatpush1.msra.mxu0 %v4909
        %4946 = vmatprep.subr.mxu0 0.0
        %4947 = vmatpush1.msra.mxu0 %v4908
        %4948 = vmatprep.subr.mxu0 0.0
        %4949 = vmatpush2.msra.mxu0 0.0
        %4950 = vmatprep.subr.mxu0 0.0
        %4951 = vmatpush2.msra.mxu0 0.0
        %4952 = vmatprep.subr.mxu0 0.0
        %4953 = vmatpush2.msra.mxu0 0.0
        %4954 = vmatprep.subr.mxu0 0.0
        %4955 = vmatpush2.msra.mxu0 0.0
        %4956 = vmatprep.subr.mxu0 0.0
        %4957 = vmatpush2.msra.mxu0 0.0
        %4958 = vmatprep.subr.mxu0 0.0
        %4959 = vmatpush2.msra.mxu0 0.0
        %4960 = vmatprep.subr.mxu0 0.0
        %4961 = vmatpush2.msra.mxu0 0.0
        %4962 = vmatprep.subr.mxu0 0.0
        %4963 = vmatpush2.msra.mxu0 0.0
        %4964 = vmatprep.subr.mxu0 0.0
        %4965 = vmatpush2.msra.mxu0 0.0
        %4966 = vmatprep.subr.mxu0 0.0
        %4967 = vmatpush2.msra.mxu0 0.0
        %4968 = vmatprep.subr.mxu0 0.0
        %4969 = vmatpush2.msra.mxu0 0.0
        %4970 = vmatprep.subr.mxu0 0.0
        %4971 = vmatpush2.msra.mxu0 0.0
        %4972 = vmatprep.subr.mxu0 0.0
        %4973 = vmatpush2.msra.mxu0 0.0
        %4974 = vmatprep.subr.mxu0 0.0
        %4975 = vmatpush2.msra.mxu0 0.0
        %4976 = vmatprep.subr.mxu0 0.0
        %4977 = vmatpush2.msra.mxu0 0.0
        %4978 = vmatprep.subr.mxu0 0.0
        %4979 = vmatpush2.msra.mxu0 0.0
        %4980 = vmatprep.mubr.f32.mxu0 0.0
        %4981 = vmatmul.mubr.f32.gmra.mxu0 %v641
        %v4982 = vpop.f32.mrf.mxu0
        %v4983 = vadd.f32 %v623, %v4982
        %v4984 = vpop.f32.mrf.mxu0
        %4985 = vmatprep.mubr.f32.mxu0 0.0
        %4986 = vmatmul.mubr.f32.gmra.mxu0 %v644
        %v4987 = vpop.f32.mrf.mxu0
        %v4988 = vadd.f32 %v628, %v4987
        %v4989 = vpop.f32.mrf.mxu0
        %4990 = vmatprep.mubr.f32.mxu0 0.0
        %4991 = vmatmul.mubr.f32.gmra.mxu0 %v647
        %v4992 = vpop.f32.mrf.mxu0
        %v4993 = vadd.f32 %v633, %v4992
        %v4994 = vpop.f32.mrf.mxu0
        %4995 = vmatprep.mubr.f32.mxu0 0.0
        %4996 = vmatmul.mubr.f32.gmra.mxu0 %v650
        %v4997 = vpop.f32.mrf.mxu0
        %v4998 = vadd.f32 %v638, %v4997
        %v4999 = vpop.f32.mrf.mxu0
        %5000 = vdwg.mxu0
        %v5001 = vmax.f32 %v4983, 0.0
        %v5002 = vmax.f32 %v4988, 0.0
        %v5003 = vmax.f32 %v4993, 0.0
        %v5004 = vmax.f32 %v4998, 0.0
        %v5005 = vmul.f32 %v5001, %v743
        %v5006 = vmul.f32 %v5002, %v747
        %v5007 = vmul.f32 %v5003, %v751
        %v5008 = vmul.f32 %v5004, %v755
        %v5009 = vadd.f32 %v5005, %v5006
        %v5010 = vadd.f32 %v5009, %v5007
        %v5011 = vadd.f32 %v5010, %v5008
        %v5012 = vrot.slane %v5011, 4
        %v5013 = vadd.f32 %v5011, %v5012
        %v5014 = vrot.slane %v5013, 2
        %v5015 = vadd.f32 %v5013, %v5014
        %v5016 = vrot.slane %v5015, 1
        %v5017 = vadd.f32 %v5015, %v5016
        %5018 = vset.pattern.permute.xlu0 24
        %5019 = vperm.xlu0 %5018, %v516
        %v5020 = vpop.permute.xlu0 %5019
        %5022 = vset.pattern.permute.xlu0 24
        %5023 = vperm.xlu0 %5022, %v517
        %v5024 = vpop.permute.xlu0 %5023
        %5026 = vset.pattern.permute.xlu0 24
        %5027 = vperm.xlu0 %5026, %v518
        %v5028 = vpop.permute.xlu0 %5027
        %5030 = vset.pattern.permute.xlu0 24
        %5031 = vperm.xlu0 %5030, %v519
        %v5032 = vpop.permute.xlu0 %5031
        %5034 = vset.pattern.permute.xlu0 24
        %5035 = vperm.xlu0 %5034, %v520
        %v5036 = vpop.permute.xlu0 %5035
        %5038 = vset.pattern.permute.xlu0 24
        %5039 = vperm.xlu0 %5038, %v521
        %v5040 = vpop.permute.xlu0 %5039
        %5042 = vset.pattern.permute.xlu0 24
        %5043 = vperm.xlu0 %5042, %v522
        %v5044 = vpop.permute.xlu0 %5043
        %5046 = vset.pattern.permute.xlu0 24
        %5047 = vperm.xlu0 %5046, %v523
        %v5048 = vpop.permute.xlu0 %5047
        %v5050 = vadd.f32 %v361, %v5020
        %v5051 = vadd.f32 %v366, %v5024
        %v5052 = vadd.f32 %v371, %v5028
        %v5053 = vadd.f32 %v376, %v5032
        %v5054 = vadd.f32 %v381, %v5036
        %v5055 = vadd.f32 %v386, %v5040
        %v5056 = vadd.f32 %v391, %v5044
        %v5057 = vadd.f32 %v396, %v5048
        %v5058 = vmax.f32 %v5050, 0.0
        %v5059 = vmax.f32 %v5051, 0.0
        %v5060 = vmax.f32 %v5052, 0.0
        %v5061 = vmax.f32 %v5053, 0.0
        %v5062 = vmax.f32 %v5054, 0.0
        %v5063 = vmax.f32 %v5055, 0.0
        %v5064 = vmax.f32 %v5056, 0.0
        %v5065 = vmax.f32 %v5057, 0.0
        %5066 = vmatprep.subr.mxu0 0.0
        %5067 = vmatpush1.msra.mxu0 0.0
        %5068 = vmatprep.subr.mxu0 0.0
        %5069 = vmatpush1.msra.mxu0 0.0
        %5070 = vmatprep.subr.mxu0 0.0
        %5071 = vmatpush1.msra.mxu0 0.0
        %5072 = vmatprep.subr.mxu0 0.0
        %5073 = vmatpush1.msra.mxu0 0.0
        %5074 = vmatprep.subr.mxu0 0.0
        %5075 = vmatpush1.msra.mxu0 0.0
        %5076 = vmatprep.subr.mxu0 0.0
        %5077 = vmatpush1.msra.mxu0 0.0
        %5078 = vmatprep.subr.mxu0 0.0
        %5079 = vmatpush1.msra.mxu0 0.0
        %5080 = vmatprep.subr.mxu0 0.0
        %5081 = vmatpush1.msra.mxu0 0.0
        %5082 = vmatprep.subr.mxu0 0.0
        %5083 = vmatpush1.msra.mxu0 %v5065
        %5084 = vmatprep.subr.mxu0 0.0
        %5085 = vmatpush1.msra.mxu0 %v5064
        %5086 = vmatprep.subr.mxu0 0.0
        %5087 = vmatpush1.msra.mxu0 %v5063
        %5088 = vmatprep.subr.mxu0 0.0
        %5089 = vmatpush1.msra.mxu0 %v5062
        %5090 = vmatprep.subr.mxu0 0.0
        %5091 = vmatpush1.msra.mxu0 %v5061
        %5092 = vmatprep.subr.mxu0 0.0
        %5093 = vmatpush1.msra.mxu0 %v5060
        %5094 = vmatprep.subr.mxu0 0.0
        %5095 = vmatpush1.msra.mxu0 %v5059
        %5096 = vmatprep.subr.mxu0 0.0
        %5097 = vmatpush1.msra.mxu0 %v5058
        %5098 = vmatprep.subr.mxu0 0.0
        %5099 = vmatpush2.msra.mxu0 0.0
        %5100 = vmatprep.subr.mxu0 0.0
        %5101 = vmatpush2.msra.mxu0 0.0
        %5102 = vmatprep.subr.mxu0 0.0
        %5103 = vmatpush2.msra.mxu0 0.0
        %5104 = vmatprep.subr.mxu0 0.0
        %5105 = vmatpush2.msra.mxu0 0.0
        %5106 = vmatprep.subr.mxu0 0.0
        %5107 = vmatpush2.msra.mxu0 0.0
        %5108 = vmatprep.subr.mxu0 0.0
        %5109 = vmatpush2.msra.mxu0 0.0
        %5110 = vmatprep.subr.mxu0 0.0
        %5111 = vmatpush2.msra.mxu0 0.0
        %5112 = vmatprep.subr.mxu0 0.0
        %5113 = vmatpush2.msra.mxu0 0.0
        %5114 = vmatprep.subr.mxu0 0.0
        %5115 = vmatpush2.msra.mxu0 0.0
        %5116 = vmatprep.subr.mxu0 0.0
        %5117 = vmatpush2.msra.mxu0 0.0
        %5118 = vmatprep.subr.mxu0 0.0
        %5119 = vmatpush2.msra.mxu0 0.0
        %5120 = vmatprep.subr.mxu0 0.0
        %5121 = vmatpush2.msra.mxu0 0.0
        %5122 = vmatprep.subr.mxu0 0.0
        %5123 = vmatpush2.msra.mxu0 0.0
        %5124 = vmatprep.subr.mxu0 0.0
        %5125 = vmatpush2.msra.mxu0 0.0
        %5126 = vmatprep.subr.mxu0 0.0
        %5127 = vmatpush2.msra.mxu0 0.0
        %5128 = vmatprep.subr.mxu0 0.0
        %5129 = vmatpush2.msra.mxu0 0.0
        %5130 = vmatprep.mubr.f32.mxu0 0.0
        %5131 = vmatmul.mubr.f32.gmra.mxu0 %v641
        %v5132 = vpop.f32.mrf.mxu0
        %v5133 = vadd.f32 %v623, %v5132
        %v5134 = vpop.f32.mrf.mxu0
        %5135 = vmatprep.mubr.f32.mxu0 0.0
        %5136 = vmatmul.mubr.f32.gmra.mxu0 %v644
        %v5137 = vpop.f32.mrf.mxu0
        %v5138 = vadd.f32 %v628, %v5137
        %v5139 = vpop.f32.mrf.mxu0
        %5140 = vmatprep.mubr.f32.mxu0 0.0
        %5141 = vmatmul.mubr.f32.gmra.mxu0 %v647
        %v5142 = vpop.f32.mrf.mxu0
        %v5143 = vadd.f32 %v633, %v5142
        %v5144 = vpop.f32.mrf.mxu0
        %5145 = vmatprep.mubr.f32.mxu0 0.0
        %5146 = vmatmul.mubr.f32.gmra.mxu0 %v650
        %v5147 = vpop.f32.mrf.mxu0
        %v5148 = vadd.f32 %v638, %v5147
        %v5149 = vpop.f32.mrf.mxu0
        %5150 = vdwg.mxu0
        %v5151 = vmax.f32 %v5133, 0.0
        %v5152 = vmax.f32 %v5138, 0.0
        %v5153 = vmax.f32 %v5143, 0.0
        %v5154 = vmax.f32 %v5148, 0.0
        %v5155 = vmul.f32 %v5151, %v743
        %v5156 = vmul.f32 %v5152, %v747
        %v5157 = vmul.f32 %v5153, %v751
        %v5158 = vmul.f32 %v5154, %v755
        %v5159 = vadd.f32 %v5155, %v5156
        %v5160 = vadd.f32 %v5159, %v5157
        %v5161 = vadd.f32 %v5160, %v5158
        %v5162 = vrot.slane %v5161, 4
        %v5163 = vadd.f32 %v5161, %v5162
        %v5164 = vrot.slane %v5163, 2
        %v5165 = vadd.f32 %v5163, %v5164
        %v5166 = vrot.slane %v5165, 1
        %v5167 = vadd.f32 %v5165, %v5166
        %v5168 = vsel %vm1370, %v4567, %v4717
        %v5169 = vsel %vm1372, %v5168, %v4867
        %v5170 = vsel %vm1374, %v5169, %v5017
        %v5171 = vsel %vm1376, %v5170, %v5167
        %v5172 = vsel %vm1378, %v5171, -inf
        %v5173 = vrot.slane %v5172, 4
        %v5174 = vmax.f32 %v5172, %v5173
        %v5175 = vrot.slane %v5174, 2
        %v5176 = vmax.f32 %v5174, %v5175
        %v5177 = vrot.slane %v5176, 1
        %v5178 = vmax.f32 %v5176, %v5177
        %v5179 = vsub.f32 %v5171, %v5178
        %v5180 = vmul.f32 %v5179, 1.442695
        %v5181 = vpow.pop %v5180
        %v5182 = vsel %vm1378, %v5181, 0.0
        %v5183 = vrot.slane %v5182, 4
        %v5184 = vadd.f32 %v5182, %v5183
        %v5185 = vrot.slane %v5184, 2
        %v5186 = vadd.f32 %v5184, %v5185
        %v5187 = vrot.slane %v5186, 1
        %v5188 = vadd.f32 %v5186, %v5187
        %v5189 = vrcp.pop %v5188
        %v5190 = vmul.f32 %v5181, %v5189
        %5191 = vrot.lane.b32.xlu0 %v548, 108
        %v5192 = vpop.permute.xlu0 %5191
        %5193 = vrot.lane.b32.xlu0 %v549, 108
        %v5194 = vpop.permute.xlu0 %5193
        %5195 = vrot.lane.b32.xlu0 %v550, 108
        %v5196 = vpop.permute.xlu0 %5195
        %5197 = vrot.lane.b32.xlu0 %v551, 108
        %v5198 = vpop.permute.xlu0 %5197
        %5199 = vrot.lane.b32.xlu0 %v552, 108
        %v5200 = vpop.permute.xlu0 %5199
        %5201 = vrot.lane.b32.xlu0 %v553, 108
        %v5202 = vpop.permute.xlu0 %5201
        %5203 = vrot.lane.b32.xlu0 %v554, 108
        %v5204 = vpop.permute.xlu0 %5203
        %5205 = vrot.lane.b32.xlu0 %v555, 108
        %v5206 = vpop.permute.xlu0 %5205
        %v5207 = vsel %vm1398, %v5192, 0
        %v5209 = vsel %vm1398, %v5194, 0
        %v5211 = vsel %vm1398, %v5196, 0
        %v5213 = vsel %vm1398, %v5198, 0
        %v5215 = vsel %vm1398, %v5200, 0
        %v5217 = vsel %vm1398, %v5202, 0
        %v5219 = vsel %vm1398, %v5204, 0
        %v5221 = vsel %vm1398, %v5206, 0
        %v5224 = vsel %vm1378, %v5190, 0
        %5226 = vmatprep.subr.mxu0 0.0
        %5227 = vmatpush1.msra.mxu0 0.0
        %5228 = vmatprep.subr.mxu0 0.0
        %5229 = vmatpush1.msra.mxu0 0.0
        %5230 = vmatprep.subr.mxu0 0.0
        %5231 = vmatpush1.msra.mxu0 0.0
        %5232 = vmatprep.subr.mxu0 0.0
        %5233 = vmatpush1.msra.mxu0 0.0
        %5234 = vmatprep.subr.mxu0 0.0
        %5235 = vmatpush1.msra.mxu0 0.0
        %5236 = vmatprep.subr.mxu0 0.0
        %5237 = vmatpush1.msra.mxu0 0.0
        %5238 = vmatprep.subr.mxu0 0.0
        %5239 = vmatpush1.msra.mxu0 0.0
        %5240 = vmatprep.subr.mxu0 0.0
        %5241 = vmatpush1.msra.mxu0 0.0
        %5242 = vmatprep.subr.mxu0 0.0
        %5243 = vmatpush1.msra.mxu0 0.0
        %5244 = vmatprep.subr.mxu0 0.0
        %5245 = vmatpush1.msra.mxu0 0.0
        %5246 = vmatprep.subr.mxu0 0.0
        %5247 = vmatpush1.msra.mxu0 0.0
        %5248 = vmatprep.subr.mxu0 0.0
        %5249 = vmatpush1.msra.mxu0 0.0
        %5250 = vmatprep.subr.mxu0 0.0
        %5251 = vmatpush1.msra.mxu0 0.0
        %5252 = vmatprep.subr.mxu0 0.0
        %5253 = vmatpush1.msra.mxu0 0.0
        %5254 = vmatprep.subr.mxu0 0.0
        %5255 = vmatpush1.msra.mxu0 0.0
        %5256 = vmatprep.subr.mxu0 0.0
        %5257 = vmatpush1.msra.mxu0 %v5224
        %5258 = vmatprep.subr.mxu0 0.0
        %5259 = vmatpush2.msra.mxu0 0.0
        %5260 = vmatprep.subr.mxu0 0.0
        %5261 = vmatpush2.msra.mxu0 0.0
        %5262 = vmatprep.subr.mxu0 0.0
        %5263 = vmatpush2.msra.mxu0 0.0
        %5264 = vmatprep.subr.mxu0 0.0
        %5265 = vmatpush2.msra.mxu0 0.0
        %5266 = vmatprep.subr.mxu0 0.0
        %5267 = vmatpush2.msra.mxu0 0.0
        %5268 = vmatprep.subr.mxu0 0.0
        %5269 = vmatpush2.msra.mxu0 0.0
        %5270 = vmatprep.subr.mxu0 0.0
        %5271 = vmatpush2.msra.mxu0 0.0
        %5272 = vmatprep.subr.mxu0 0.0
        %5273 = vmatpush2.msra.mxu0 0.0
        %5274 = vmatprep.subr.mxu0 0.0
        %5275 = vmatpush2.msra.mxu0 0.0
        %5276 = vmatprep.subr.mxu0 0.0
        %5277 = vmatpush2.msra.mxu0 0.0
        %5278 = vmatprep.subr.mxu0 0.0
        %5279 = vmatpush2.msra.mxu0 0.0
        %5280 = vmatprep.subr.mxu0 0.0
        %5281 = vmatpush2.msra.mxu0 0.0
        %5282 = vmatprep.subr.mxu0 0.0
        %5283 = vmatpush2.msra.mxu0 0.0
        %5284 = vmatprep.subr.mxu0 0.0
        %5285 = vmatpush2.msra.mxu0 0.0
        %5286 = vmatprep.subr.mxu0 0.0
        %5287 = vmatpush2.msra.mxu0 0.0
        %5288 = vmatprep.subr.mxu0 0.0
        %5289 = vmatpush2.msra.mxu0 0.0
        %5290 = vmatprep.mubr.f32.mxu0 0.0
        %5291 = vmatmul.mubr.f32.gmra.mxu0 %v5207
        %v5292 = vpop.f32.mrf.mxu0
        %v5293 = vadd.f32 0.0, %v5292
        %v5294 = vpop.f32.mrf.mxu0
        %5295 = vmatprep.mubr.f32.mxu0 0.0
        %5296 = vmatmul.mubr.f32.gmra.mxu0 %v5209
        %v5297 = vpop.f32.mrf.mxu0
        %v5298 = vadd.f32 0.0, %v5297
        %v5299 = vpop.f32.mrf.mxu0
        %5300 = vmatprep.mubr.f32.mxu0 0.0
        %5301 = vmatmul.mubr.f32.gmra.mxu0 %v5211
        %v5302 = vpop.f32.mrf.mxu0
        %v5303 = vadd.f32 0.0, %v5302
        %v5304 = vpop.f32.mrf.mxu0
        %5305 = vmatprep.mubr.f32.mxu0 0.0
        %5306 = vmatmul.mubr.f32.gmra.mxu0 %v5213
        %v5307 = vpop.f32.mrf.mxu0
        %v5308 = vadd.f32 0.0, %v5307
        %v5309 = vpop.f32.mrf.mxu0
        %5310 = vmatprep.mubr.f32.mxu0 0.0
        %5311 = vmatmul.mubr.f32.gmra.mxu0 %v5215
        %v5312 = vpop.f32.mrf.mxu0
        %v5313 = vadd.f32 0.0, %v5312
        %v5314 = vpop.f32.mrf.mxu0
        %5315 = vmatprep.mubr.f32.mxu0 0.0
        %5316 = vmatmul.mubr.f32.gmra.mxu0 %v5217
        %v5317 = vpop.f32.mrf.mxu0
        %v5318 = vadd.f32 0.0, %v5317
        %v5319 = vpop.f32.mrf.mxu0
        %5320 = vmatprep.mubr.f32.mxu0 0.0
        %5321 = vmatmul.mubr.f32.gmra.mxu0 %v5219
        %v5322 = vpop.f32.mrf.mxu0
        %v5323 = vadd.f32 0.0, %v5322
        %v5324 = vpop.f32.mrf.mxu0
        %5325 = vmatprep.mubr.f32.mxu0 0.0
        %5326 = vmatmul.mubr.f32.gmra.mxu0 %v5221
        %v5327 = vpop.f32.mrf.mxu0
        %v5328 = vadd.f32 0.0, %v5327
        %v5329 = vpop.f32.mrf.mxu0
        %5330 = vdwg.mxu0
        %v5331 = vsub.f32 %v232, %v5293
        %v5332 = vsub.f32 %v233, %v5298
        %v5333 = vsub.f32 %v234, %v5303
        %v5334 = vsub.f32 %v235, %v5308
        %v5335 = vsub.f32 %v236, %v5313
        %v5336 = vsub.f32 %v237, %v5318
        %v5337 = vsub.f32 %v238, %v5323
        %v5338 = vsub.f32 %v239, %v5328
        %v5339 = vmul.f32 %v5331, %v5331
        %v5340 = vmul.f32 %v5332, %v5332
        %v5341 = vmul.f32 %v5333, %v5333
        %v5342 = vmul.f32 %v5334, %v5334
        %v5343 = vmul.f32 %v5335, %v5335
        %v5344 = vmul.f32 %v5336, %v5336
        %v5345 = vmul.f32 %v5337, %v5337
        %v5346 = vmul.f32 %v5338, %v5338
        %v5347 = vadd.f32 %v5339, %v5340
        %v5348 = vadd.f32 %v5347, %v5341
        %v5349 = vadd.f32 %v5348, %v5342
        %v5350 = vadd.f32 %v5349, %v5343
        %v5351 = vadd.f32 %v5350, %v5344
        %v5352 = vadd.f32 %v5351, %v5345
        %v5353 = vadd.f32 %v5352, %v5346
        %v5354 = vrot.slane %v5353, 4
        %v5355 = vadd.f32 %v5353, %v5354
        %v5356 = vrot.slane %v5355, 2
        %v5357 = vadd.f32 %v5355, %v5356
        %v5358 = vrot.slane %v5357, 1
        %v5359 = vadd.f32 %v5357, %v5358
        %v5360 = vrsqrt.pop %v5359
        %v5361 = vmul.f32 %v5359, %v5360
        %vm5362 = vcmp.eq.f32.partialorder %v5359, inf
        %v5363 = vsel %vm5362, %v5359, %v5361
        %vm5364 = vcmp.eq.f32.partialorder %v5359, 0.0
        %v5365 = vand.u32 %v5359, 2147483648
        %v5366 = vsel %vm5364, %v5365, %v5363
        %v5367 = vsub.f32 0.0, %v5366
        %v5368 = vsel %vm1370, %v1567, %v2517
        %v5369 = vsel %vm1372, %v5368, %v3467
        %v5370 = vsel %vm1374, %v5369, %v4417
        %v5371 = vsel %vm1376, %v5370, %v5367
        %5372 = vst [vmem:[%s231] sm:$0x1f] %v5371
        %s5373 = sand.u32 %s93, 1
        %s5374 = scalar_lea.sflag [#allocation4], %s5373
        %s5375 = sand.u32 %s93, 1
        %s5376 = smul.addr %s5375, 8
        %s5377 = scalar_lea.vmem [#allocation3], %s5376
        // Predicated region
        $region71: #{prototypical_classifier_forward.1} parent=65 // pred_check
          %p5378 = pneg %p103
        $region72: #{prototypical_classifier_forward.1} parent=65 // pred_check_branch
          %5380 = sbr.rel (%p5378) target = $region74
        $region73: #{prototypical_classifier_forward.1} parent=65 // pred_region
          %s5382 = ssub.s32 128, 128
          %5383 = vsyncadd %s5374, %s5382
          %s5384 = smul.addr %s17, 128
          %s5385 = scalar_lea.hbm %s3, %s5384
          %s5387 = sshll.u32 %s5377, 4
          %s5388 = int_to_ptr.vmem [resolvable:$true] %s5387
          %5390 = dma.vmem_to_hbm [thread:$0]  %s5388, 128, %s5385, %s5374
        $region74: #{prototypical_classifier_forward.1} parent=65 // pred_fallthru
          _
      $region66: #{prototypical_classifier_forward.1} parent=5 // pred_fallthru
        _
      %p5391 = scmp.le.s32.totalorder 2, %s12
      // Predicated region
      $region75: #{prototypical_classifier_forward.1} parent=5 // pred_check
        %p5392 = pneg %p5391
      $region76: #{prototypical_classifier_forward.1} parent=5 // pred_check_branch
        %5394 = sbr.rel (%p5392) target = $region78
      $region77: #{prototypical_classifier_forward.1} parent=5 // pred_region
        %s5395 = ssub.s32 %s12, 2
        // Predicated region
        $region79: #{prototypical_classifier_forward.1} parent=77 // pred_check
          %p5396 = pneg %p109
        $region80: #{prototypical_classifier_forward.1} parent=77 // pred_check_branch
          %5398 = sbr.rel (%p5396) target = $region82
        $region81: #{prototypical_classifier_forward.1} parent=77 // pred_region
          %s5399 = sand.u32 %s94, 1
          %s5400 = scalar_lea.sflag [#allocation4], %s5399
          %s5401 = sand.u32 %s94, 1
          %s5402 = smul.addr %s5401, 8
          %s5403 = scalar_lea.vmem [#allocation3], %s5402
          %5404 = dma.done %s5400, 128
        $region82: #{prototypical_classifier_forward.1} parent=77 // pred_fallthru
          _
      $region78: #{prototypical_classifier_forward.1} parent=5 // pred_fallthru
        _
    $region6: #{prototypical_classifier_forward.1} parent=1 // loop_footer
      %s16 = sadd.s32 1, %s12
    $region7: #{prototypical_classifier_forward.1} parent=1 // loop_footer_branch
      %11 = sbr.rel target = $region3
    $region8: #{prototypical_classifier_forward.1} parent=1 // loop_exit
      _
    %5405 = vsyncpa [#allocation4], 1
    %s5406 = scalar_lea.sflag [#allocation4], 1
    %5407 = vsyncpa %s5406, 1

</llo_original>
